<compile_context>
chip_gen: v5e
topology: v5e:2x2
jax: 0.10.0
libtpu: 0.0.40
codegen_flags: <defaults>
</compile_context>

<pallas_src>
import jax
import jax.numpy as jnp
from jax.experimental import pallas as pl
from jax.experimental.pallas import tpu as pltpu

# ---------------- small deterministic config ----------------
B, C, T, H, W = 2, 3, 4, 16, 16            # input video: [B, C, T, H, W]
PT, PH, PW = 2, 8, 8                       # Conv3d patch (kernel == stride)
NP = (T // PT) * (H // PH) * (W // PW)     # 8 patch tokens
NL = 8                                     # number of latent (1-D) tokens
S = NP + NL                                # per-batch sequence length (16)
D = 32                                     # transformer hidden size
NHEADS = 4
DH = D // NHEADS
FSQ_LEVELS = (5, 5, 5, 5)                  # token_size == len(fsq_levels)
TS = len(FSQ_LEVELS)
NLAYERS = 2                                # encoder / decoder depth
NB = 2 * NLAYERS                           # stacked blocks: [0,NLAYERS)=enc, rest=dec
PATCH_DIM = C * PT * PH * PW               # 384


# ---------------- the single fused Pallas kernel ----------------
def _titok_kernel(
    patches_ref,                                        # [NP, PATCH_DIM] (this batch)
    patch_w_ref, patch_b_ref,                           # [PATCH_DIM, D], [1, D]
    latent_ref,                                         # [NL, D]
    pos_enc_ref, pos_dec_ref,                           # [S, D]
    mask_tok_ref,                                       # [1, D]
    ln1_g_ref, ln1_b_ref, qkv_w_ref, qkv_b_ref,         # stacked over NB blocks
    proj_w_ref, proj_b_ref, ln2_g_ref, ln2_b_ref,
    fc1_w_ref, fc1_b_ref, fc2_w_ref, fc2_b_ref,
    enc_ln_g_ref, enc_ln_b_ref,                         # [1, D]
    enc_head_w_ref, enc_head_b_ref,                     # [D, TS], [1, TS]
    fsq_half_l_ref, fsq_offset_ref, fsq_shift_ref,      # [1, TS]
    fsq_half_w_ref, fsq_inv_half_w_ref, fsq_basis_ref,  # [1, TS]
    dec_embed_w_ref, dec_embed_b_ref,                   # [TS, D], [1, D]
    dec_ln_g_ref, dec_ln_b_ref,                         # [1, D]
    dec_out_w_ref, dec_out_b_ref,                       # [D, PATCH_DIM], [1, PATCH_DIM]
    out_patch_ref, out_q_ref, out_idx_ref):             # [NP,PATCH_DIM],[NL,TS],[NL,1]
  """Whole TiTok forward for one batch element (one grid step)."""

  def mm(a, w):
    # bf16 operands for the MXU, f32 accumulation.
    return jnp.dot(a.astype(jnp.bfloat16), w.astype(jnp.bfloat16),
                   preferred_element_type=jnp.float32)

  def layer_norm(x, g, b):
    mu = jnp.mean(x, axis=-1, keepdims=True)
    var = jnp.mean((x - mu) ** 2, axis=-1, keepdims=True)
    return (x - mu) * jax.lax.rsqrt(var + 1e-5) * g + b

  def gelu(y):
    # tanh-approx GELU  # TODO(synk): PyTorch nn.GELU default is exact erf GELU.
    return 0.5 * y * (1.0 + jnp.tanh(0.7978845608028654 * (y + 0.044715 * y * y * y)))

  scale = 1.0 / (DH ** 0.5)

  def attention(h, l):
    qkv = mm(h, qkv_w_ref[l]) + qkv_b_ref[l]              # [S, 3D]
    heads = []
    for hh in range(NHEADS):                              # static in-kernel head split
      q = qkv[:, hh * DH:(hh + 1) * DH].astype(jnp.bfloat16)
      k = qkv[:, D + hh * DH:D + (hh + 1) * DH].astype(jnp.bfloat16)
      v = qkv[:, 2 * D + hh * DH:2 * D + (hh + 1) * DH].astype(jnp.bfloat16)
      s = jax.lax.dot_general(q, k, (((1,), (1,)), ((), ())),
                              preferred_element_type=jnp.float32) * scale
      s = s - jnp.max(s, axis=-1, keepdims=True)
      p = jnp.exp(s)
      p = p * pl.reciprocal(jnp.sum(p, axis=-1, keepdims=True), approx=True)
      heads.append(jnp.dot(p.astype(jnp.bfloat16), v,
                           preferred_element_type=jnp.float32))
    return jnp.concatenate(heads, axis=-1)                # [S, D] lane-dense

  def block(x2, l):
    h = layer_norm(x2, ln1_g_ref[l], ln1_b_ref[l])
    a = attention(h, l)
    x2 = x2 + mm(a, proj_w_ref[l]) + proj_b_ref[l]
    h = layer_norm(x2, ln2_g_ref[l], ln2_b_ref[l])
    h = gelu(mm(h, fc1_w_ref[l]) + fc1_b_ref[l])
    return x2 + mm(h, fc2_w_ref[l]) + fc2_b_ref[l]

  # ---------------- encoder ----------------
  tok = mm(patches_ref[...], patch_w_ref[...]) + patch_b_ref[...]        # [NP, D]
  x2 = jnp.concatenate([tok, latent_ref[...]], axis=0) + pos_enc_ref[...]  # [S, D]
  for l in range(NLAYERS):
    x2 = block(x2, l)
  zt = layer_norm(x2[NP:, :], enc_ln_g_ref[...], enc_ln_b_ref[...])      # [NL, D]
  # tiny quantizer head kept in f32 (protects FSQ rounding boundaries)
  z = jnp.dot(zt, enc_head_w_ref[...],
              preferred_element_type=jnp.float32) + enc_head_b_ref[...]  # [NL, TS]

  # ---------------- FSQ quantize (+ mixed-radix indices) ----------------
  bounded = (jnp.tanh(z + fsq_shift_ref[...]) * fsq_half_l_ref[...]
             - fsq_offset_ref[...])
  codes = jnp.round(bounded) * fsq_inv_half_w_ref[...]    # normalized codes in [-1, 1]
  out_q_ref[...] = codes
  digits = codes * fsq_half_w_ref[...] + fsq_half_w_ref[...]
  idx = jnp.sum(digits * fsq_basis_ref[...], axis=-1, keepdims=True)
  out_idx_ref[...] = jnp.round(idx).astype(jnp.int32)

  # ---------------- decoder ----------------
  d_emb = jnp.dot(codes, dec_embed_w_ref[...],
                  preferred_element_type=jnp.float32) + dec_embed_b_ref[...]  # [NL, D]
  mask = jnp.broadcast_to(mask_tok_ref[...], (NP, D))
  x2 = jnp.concatenate([mask, d_emb], axis=0) + pos_dec_ref[...]
  for l in range(NLAYERS):
    x2 = block(x2, NLAYERS + l)
  o = layer_norm(x2[:NP, :], dec_ln_g_ref[...], dec_ln_b_ref[...])       # [NP, D]
  out_patch_ref[...] = mm(o, dec_out_w_ref[...]) + dec_out_b_ref[...]


# ---------------- glue: patchify / unpatchify ----------------
def patchify(x):
  # Conv3d(kernel==stride) == patchify + matmul; flatten in (C, kt, kh, kw) order.
  b = x.shape[0]
  x = x.reshape(b, C, T // PT, PT, H // PH, PH, W // PW, PW)
  x = x.transpose(0, 2, 4, 6, 1, 3, 5, 7)
  return x.reshape(b, NP, PATCH_DIM)


def unpatchify(p):
  b = p.shape[0]
  x = p.reshape(b, T // PT, H // PH, W // PW, C, PT, PH, PW)
  x = x.transpose(0, 4, 1, 5, 2, 6, 3, 7)
  return x.reshape(b, C, T, H, W)


def _rep(shape):
  """Whole-array block replicated across the batch grid axis (fetched once)."""
  nd = len(shape)
  return pl.BlockSpec(shape, lambda i, _nd=nd: (0,) * _nd)


def titok_forward(params, x):
  b = x.shape[0]
  patches = patchify(x).reshape(b * NP, PATCH_DIM)

  in_specs = [
      pl.BlockSpec((NP, PATCH_DIM), lambda i: (i, 0)),          # patches (per batch)
      _rep((PATCH_DIM, D)), _rep((1, D)),                        # patch embed
      _rep((NL, D)),                                             # latent tokens
      _rep((S, D)), _rep((S, D)),                                # pos emb enc / dec
      _rep((1, D)),                                              # mask token
      _rep((NB, 1, D)), _rep((NB, 1, D)),                        # ln1 g/b
      _rep((NB, D, 3 * D)), _rep((NB, 1, 3 * D)),                # qkv w/b
      _rep((NB, D, D)), _rep((NB, 1, D)),                        # proj w/b
      _rep((NB, 1, D)), _rep((NB, 1, D)),                        # ln2 g/b
      _rep((NB, D, 4 * D)), _rep((NB, 1, 4 * D)),                # fc1 w/b
      _rep((NB, 4 * D, D)), _rep((NB, 1, D)),                    # fc2 w/b
      _rep((1, D)), _rep((1, D)),                                # enc final LN
      _rep((D, TS)), _rep((1, TS)),                              # enc head
      _rep((1, TS)), _rep((1, TS)), _rep((1, TS)),               # fsq half_l/offset/shift
      _rep((1, TS)), _rep((1, TS)), _rep((1, TS)),               # fsq half_w/inv/basis
      _rep((TS, D)), _rep((1, D)),                               # dec embed
      _rep((1, D)), _rep((1, D)),                                # dec final LN
      _rep((D, PATCH_DIM)), _rep((1, PATCH_DIM)),                # dec out
  ]
  out_specs = (
      pl.BlockSpec((NP, PATCH_DIM), lambda i: (i, 0)),
      pl.BlockSpec((NL, TS), lambda i: (i, 0)),
      pl.BlockSpec((NL, 1), lambda i: (i, 0)),
  )
  out_shape = (
      jax.ShapeDtypeStruct((b * NP, PATCH_DIM), jnp.float32),
      jax.ShapeDtypeStruct((b * NL, TS), jnp.float32),
      jax.ShapeDtypeStruct((b * NL, 1), jnp.int32),
  )

  fused = pl.pallas_call(
      _titok_kernel,
      grid=(b,),
      in_specs=in_specs,
      out_specs=out_specs,
      out_shape=out_shape,
      compiler_params=pltpu.CompilerParams(dimension_semantics=("parallel",)),
  )
  decoded_p, quantized, indices = fused(
      patches,
      params["patch_w"], params["patch_b"],
      params["latent_tokens"],
      params["pos_emb_enc"], params["pos_emb_dec"],
      params["mask_token"],
      params["ln1_g"], params["ln1_b"], params["qkv_w"], params["qkv_b"],
      params["proj_w"], params["proj_b"], params["ln2_g"], params["ln2_b"],
      params["fc1_w"], params["fc1_b"], params["fc2_w"], params["fc2_b"],
      params["enc_ln_g"], params["enc_ln_b"],
      params["enc_head_w"], params["enc_head_b"],
      params["fsq_half_l"], params["fsq_offset"], params["fsq_shift"],
      params["fsq_half_w"], params["fsq_inv_half_w"], params["fsq_basis"],
      params["dec_embed_w"], params["dec_embed_b"],
      params["dec_ln_g"], params["dec_ln_b"],
      params["dec_out_w"], params["dec_out_b"])

  decoded = unpatchify(decoded_p.reshape(b, NP, PATCH_DIM))
  result_dict = {
      "quantized": quantized.reshape(b, NL, TS),
      "min_encoding_indices": indices.reshape(b, NL),
  }
  return decoded, result_dict


# ---------------- deterministic parameter init (mirrors _init_weights) ----------------
def init_params(seed=0):
  key = jax.random.PRNGKey(seed)
  counter = [0]

  def tn(shape):  # trunc_normal_(std=0.02); biases zero; LayerNorm ones/zeros
    counter[0] += 1
    return 0.02 * jax.random.truncated_normal(
        jax.random.fold_in(key, counter[0]), -2.0, 2.0, shape, jnp.float32)

  p = dict(
      patch_w=tn((PATCH_DIM, D)), patch_b=jnp.zeros((1, D), jnp.float32),
      latent_tokens=tn((NL, D)),
      pos_emb_enc=tn((S, D)), pos_emb_dec=tn((S, D)),
      mask_token=tn((1, D)),
      # transformer blocks stacked: [0, NLAYERS) = encoder, [NLAYERS, NB) = decoder
      ln1_g=jnp.ones((NB, 1, D), jnp.float32), ln1_b=jnp.zeros((NB, 1, D), jnp.float32),
      qkv_w=tn((NB, D, 3 * D)), qkv_b=jnp.zeros((NB, 1, 3 * D), jnp.float32),
      proj_w=tn((NB, D, D)), proj_b=jnp.zeros((NB, 1, D), jnp.float32),
      ln2_g=jnp.ones((NB, 1, D), jnp.float32), ln2_b=jnp.zeros((NB, 1, D), jnp.float32),
      fc1_w=tn((NB, D, 4 * D)), fc1_b=jnp.zeros((NB, 1, 4 * D), jnp.float32),
      fc2_w=tn((NB, 4 * D, D)), fc2_b=jnp.zeros((NB, 1, D), jnp.float32),
      enc_ln_g=jnp.ones((1, D), jnp.float32), enc_ln_b=jnp.zeros((1, D), jnp.float32),
      enc_head_w=tn((D, TS)), enc_head_b=jnp.zeros((1, TS), jnp.float32),
      dec_embed_w=tn((TS, D)), dec_embed_b=jnp.zeros((1, D), jnp.float32),
      dec_ln_g=jnp.ones((1, D), jnp.float32), dec_ln_b=jnp.zeros((1, D), jnp.float32),
      dec_out_w=tn((D, PATCH_DIM)), dec_out_b=jnp.zeros((1, PATCH_DIM), jnp.float32),
  )
  # FSQ constants, precomputed once (all-odd levels -> offset = shift = 0)
  lv = jnp.asarray(FSQ_LEVELS, jnp.float32)
  eps = 1e-3
  half_l = (lv - 1.0) * (1.0 + eps) / 2.0
  offset = jnp.where(jnp.asarray(FSQ_LEVELS) % 2 == 0, 0.5, 0.0).astype(jnp.float32)
  shift = jnp.arctanh(offset / half_l)
  half_w = jnp.floor(lv / 2.0)
  basis = jnp.concatenate([jnp.ones((1,), jnp.float32), jnp.cumprod(lv[:-1])])
  p.update(
      fsq_half_l=half_l.reshape(1, TS), fsq_offset=offset.reshape(1, TS),
      fsq_shift=shift.reshape(1, TS), fsq_half_w=half_w.reshape(1, TS),
      fsq_inv_half_w=(1.0 / half_w).reshape(1, TS), fsq_basis=basis.reshape(1, TS),
  )
  return p


if __name__ == "__main__":
  params = init_params(0)
  x = jax.random.normal(jax.random.PRNGKey(0), (B, C, T, H, W), jnp.float32)
  fwd = jax.jit(titok_forward)
  decoded, result_dict = fwd(params, x)
  jax.block_until_ready((decoded, result_dict))
  assert decoded.shape == (B, C, T, H, W)
  assert result_dict["quantized"].shape == (B, NL, TS)
  assert result_dict["min_encoding_indices"].shape == (B, NL)
  print("KERNEL_OK")
</pallas_src>

<mosaic_0001>
module attributes {stable_mosaic.version = 11 : i64} {
  func.func @_titok_kernel(%arg0: i32, %arg1: memref<8x384xf32, #tpu.memory_space<vmem>>, %arg2: memref<384x32xf32, #tpu.memory_space<vmem>>, %arg3: memref<1x32xf32, #tpu.memory_space<vmem>>, %arg4: memref<8x32xf32, #tpu.memory_space<vmem>>, %arg5: memref<16x32xf32, #tpu.memory_space<vmem>>, %arg6: memref<16x32xf32, #tpu.memory_space<vmem>>, %arg7: memref<1x32xf32, #tpu.memory_space<vmem>>, %arg8: memref<4x1x32xf32, #tpu.memory_space<vmem>>, %arg9: memref<4x1x32xf32, #tpu.memory_space<vmem>>, %arg10: memref<4x32x96xf32, #tpu.memory_space<vmem>>, %arg11: memref<4x1x96xf32, #tpu.memory_space<vmem>>, %arg12: memref<4x32x32xf32, #tpu.memory_space<vmem>>, %arg13: memref<4x1x32xf32, #tpu.memory_space<vmem>>, %arg14: memref<4x1x32xf32, #tpu.memory_space<vmem>>, %arg15: memref<4x1x32xf32, #tpu.memory_space<vmem>>, %arg16: memref<4x32x128xf32, #tpu.memory_space<vmem>>, %arg17: memref<4x1x128xf32, #tpu.memory_space<vmem>>, %arg18: memref<4x128x32xf32, #tpu.memory_space<vmem>>, %arg19: memref<4x1x32xf32, #tpu.memory_space<vmem>>, %arg20: memref<1x32xf32, #tpu.memory_space<vmem>>, %arg21: memref<1x32xf32, #tpu.memory_space<vmem>>, %arg22: memref<32x4xf32, #tpu.memory_space<vmem>>, %arg23: memref<1x4xf32, #tpu.memory_space<vmem>>, %arg24: memref<1x4xf32, #tpu.memory_space<vmem>>, %arg25: memref<1x4xf32, #tpu.memory_space<vmem>>, %arg26: memref<1x4xf32, #tpu.memory_space<vmem>>, %arg27: memref<1x4xf32, #tpu.memory_space<vmem>>, %arg28: memref<1x4xf32, #tpu.memory_space<vmem>>, %arg29: memref<1x4xf32, #tpu.memory_space<vmem>>, %arg30: memref<4x32xf32, #tpu.memory_space<vmem>>, %arg31: memref<1x32xf32, #tpu.memory_space<vmem>>, %arg32: memref<1x32xf32, #tpu.memory_space<vmem>>, %arg33: memref<1x32xf32, #tpu.memory_space<vmem>>, %arg34: memref<32x384xf32, #tpu.memory_space<vmem>>, %arg35: memref<1x384xf32, #tpu.memory_space<vmem>>, %arg36: memref<8x384xf32, #tpu.memory_space<vmem>>, %arg37: memref<8x4xf32, #tpu.memory_space<vmem>>, %arg38: memref<8x1xi32, #tpu.memory_space<vmem>>) attributes {dimension_semantics = [#tpu.dimension_semantics<parallel>], iteration_bounds = array<i64: 2>, scalar_prefetch = 0 : i64, scratch_operands = 0 : i64, tpu.core_type = #tpu.core_type<tc>, window_params = [{transform_indices = @transform_0, window_bounds = array<i64: 8, 384>}, {pipeline_mode = #tpu.pipeline_mode<synchronous>, transform_indices = @transform_1, window_bounds = array<i64: 384, 32>}, {pipeline_mode = #tpu.pipeline_mode<synchronous>, transform_indices = @transform_2, window_bounds = array<i64: 1, 32>}, {pipeline_mode = #tpu.pipeline_mode<synchronous>, transform_indices = @transform_3, window_bounds = array<i64: 8, 32>}, {pipeline_mode = #tpu.pipeline_mode<synchronous>, transform_indices = @transform_4, window_bounds = array<i64: 16, 32>}, {pipeline_mode = #tpu.pipeline_mode<synchronous>, transform_indices = @transform_5, window_bounds = array<i64: 16, 32>}, {pipeline_mode = #tpu.pipeline_mode<synchronous>, transform_indices = @transform_6, window_bounds = array<i64: 1, 32>}, {pipeline_mode = #tpu.pipeline_mode<synchronous>, transform_indices = @transform_7, window_bounds = array<i64: 4, 1, 32>}, {pipeline_mode = #tpu.pipeline_mode<synchronous>, transform_indices = @transform_8, window_bounds = array<i64: 4, 1, 32>}, {pipeline_mode = #tpu.pipeline_mode<synchronous>, transform_indices = @transform_9, window_bounds = array<i64: 4, 32, 96>}, {pipeline_mode = #tpu.pipeline_mode<synchronous>, transform_indices = @transform_10, window_bounds = array<i64: 4, 1, 96>}, {pipeline_mode = #tpu.pipeline_mode<synchronous>, transform_indices = @transform_11, window_bounds = array<i64: 4, 32, 32>}, {pipeline_mode = #tpu.pipeline_mode<synchronous>, transform_indices = @transform_12, window_bounds = array<i64: 4, 1, 32>}, {pipeline_mode = #tpu.pipeline_mode<synchronous>, transform_indices = @transform_13, window_bounds = array<i64: 4, 1, 32>}, {pipeline_mode = #tpu.pipeline_mode<synchronous>, transform_indices = @transform_14, window_bounds = array<i64: 4, 1, 32>}, {pipeline_mode = #tpu.pipeline_mode<synchronous>, transform_indices = @transform_15, window_bounds = array<i64: 4, 32, 128>}, {pipeline_mode = #tpu.pipeline_mode<synchronous>, transform_indices = @transform_16, window_bounds = array<i64: 4, 1, 128>}, {pipeline_mode = #tpu.pipeline_mode<synchronous>, transform_indices = @transform_17, window_bounds = array<i64: 4, 128, 32>}, {pipeline_mode = #tpu.pipeline_mode<synchronous>, transform_indices = @transform_18, window_bounds = array<i64: 4, 1, 32>}, {pipeline_mode = #tpu.pipeline_mode<synchronous>, transform_indices = @transform_19, window_bounds = array<i64: 1, 32>}, {pipeline_mode = #tpu.pipeline_mode<synchronous>, transform_indices = @transform_20, window_bounds = array<i64: 1, 32>}, {pipeline_mode = #tpu.pipeline_mode<synchronous>, transform_indices = @transform_21, window_bounds = array<i64: 32, 4>}, {pipeline_mode = #tpu.pipeline_mode<synchronous>, transform_indices = @transform_22, window_bounds = array<i64: 1, 4>}, {pipeline_mode = #tpu.pipeline_mode<synchronous>, transform_indices = @transform_23, window_bounds = array<i64: 1, 4>}, {pipeline_mode = #tpu.pipeline_mode<synchronous>, transform_indices = @transform_24, window_bounds = array<i64: 1, 4>}, {pipeline_mode = #tpu.pipeline_mode<synchronous>, transform_indices = @transform_25, window_bounds = array<i64: 1, 4>}, {pipeline_mode = #tpu.pipeline_mode<synchronous>, transform_indices = @transform_26, window_bounds = array<i64: 1, 4>}, {pipeline_mode = #tpu.pipeline_mode<synchronous>, transform_indices = @transform_27, window_bounds = array<i64: 1, 4>}, {pipeline_mode = #tpu.pipeline_mode<synchronous>, transform_indices = @transform_28, window_bounds = array<i64: 1, 4>}, {pipeline_mode = #tpu.pipeline_mode<synchronous>, transform_indices = @transform_29, window_bounds = array<i64: 4, 32>}, {pipeline_mode = #tpu.pipeline_mode<synchronous>, transform_indices = @transform_30, window_bounds = array<i64: 1, 32>}, {pipeline_mode = #tpu.pipeline_mode<synchronous>, transform_indices = @transform_31, window_bounds = array<i64: 1, 32>}, {pipeline_mode = #tpu.pipeline_mode<synchronous>, transform_indices = @transform_32, window_bounds = array<i64: 1, 32>}, {pipeline_mode = #tpu.pipeline_mode<synchronous>, transform_indices = @transform_33, window_bounds = array<i64: 32, 384>}, {pipeline_mode = #tpu.pipeline_mode<synchronous>, transform_indices = @transform_34, window_bounds = array<i64: 1, 384>}, {transform_indices = @transform_35, window_bounds = array<i64: 8, 384>}, {transform_indices = @transform_36, window_bounds = array<i64: 8, 4>}, {transform_indices = @transform_37, window_bounds = array<i64: 8, 1>}]} {
    %c0 = arith.constant 0 : index
    %c0_0 = arith.constant 0 : index
    %0 = vector.load %arg1[%c0, %c0_0] : memref<8x384xf32, #tpu.memory_space<vmem>>, vector<8x384xf32>
    %c0_1 = arith.constant 0 : index
    %c0_2 = arith.constant 0 : index
    %1 = vector.load %arg2[%c0_1, %c0_2] : memref<384x32xf32, #tpu.memory_space<vmem>>, vector<384x32xf32>
    %2 = arith.truncf %0 : vector<8x384xf32> to vector<8x384xbf16>
    %3 = arith.truncf %1 : vector<384x32xf32> to vector<384x32xbf16>
    %cst = arith.constant dense<0.000000e+00> : vector<8x32xf32>
    %4 = tpu.matmul %2, %3, %cst {dimension_numbers = #tpu.dot_dimension_numbers<[1], [0], [0], [1], [0, 0, 1, 1], [], []>} : vector<8x384xbf16>, vector<384x32xbf16>, vector<8x32xf32> -> vector<8x32xf32>
    %c0_3 = arith.constant 0 : index
    %c0_4 = arith.constant 0 : index
    %5 = vector.load %arg3[%c0_3, %c0_4] : memref<1x32xf32, #tpu.memory_space<vmem>>, vector<1x32xf32>
    %6 = vector.broadcast %5 : vector<1x32xf32> to vector<8x32xf32>
    %7 = arith.addf %4, %6 : vector<8x32xf32>
    %c0_5 = arith.constant 0 : index
    %c0_6 = arith.constant 0 : index
    %8 = vector.load %arg4[%c0_5, %c0_6] : memref<8x32xf32, #tpu.memory_space<vmem>>, vector<8x32xf32>
    %9 = tpu.concatenate %7, %8 in 0 : vector<8x32xf32>, vector<8x32xf32> -> vector<16x32xf32>
    %c0_7 = arith.constant 0 : index
    %c0_8 = arith.constant 0 : index
    %10 = vector.load %arg5[%c0_7, %c0_8] : memref<16x32xf32, #tpu.memory_space<vmem>>, vector<16x32xf32>
    %11 = arith.addf %9, %10 : vector<16x32xf32>
    %c0_9 = arith.constant 0 : index
    %c0_10 = arith.constant 0 : index
    %c0_11 = arith.constant 0 : index
    %12 = vector.load %arg8[%c0_9, %c0_10, %c0_11] : memref<4x1x32xf32, #tpu.memory_space<vmem>>, vector<1x1x32xf32>
    %13 = vector.shape_cast %12 : vector<1x1x32xf32> to vector<1x32xf32>
    %c0_12 = arith.constant 0 : index
    %c0_13 = arith.constant 0 : index
    %c0_14 = arith.constant 0 : index
    %14 = vector.load %arg9[%c0_12, %c0_13, %c0_14] : memref<4x1x32xf32, #tpu.memory_space<vmem>>, vector<1x1x32xf32>
    %15 = vector.shape_cast %14 : vector<1x1x32xf32> to vector<1x32xf32>
    %cst_15 = arith.constant dense<0.000000e+00> : vector<16xf32>
    %16 = vector.multi_reduction <add>, %11, %cst_15 [1] : vector<16x32xf32> to vector<16xf32>
    %17 = vector.shape_cast %16 : vector<16xf32> to vector<16x1xf32>
    %cst_16 = arith.constant 3.200000e+01 : f32
    %18 = vector.broadcast %cst_16 : f32 to vector<16x1xf32>
    %19 = arith.divf %17, %18 : vector<16x1xf32>
    %20 = vector.broadcast %19 : vector<16x1xf32> to vector<16x32xf32>
    %21 = arith.subf %11, %20 : vector<16x32xf32>
    %22 = arith.mulf %21, %21 : vector<16x32xf32>
    %cst_17 = arith.constant dense<0.000000e+00> : vector<16xf32>
    %23 = vector.multi_reduction <add>, %22, %cst_17 [1] : vector<16x32xf32> to vector<16xf32>
    %24 = vector.shape_cast %23 : vector<16xf32> to vector<16x1xf32>
    %cst_18 = arith.constant 3.200000e+01 : f32
    %25 = vector.broadcast %cst_18 : f32 to vector<16x1xf32>
    %26 = arith.divf %24, %25 : vector<16x1xf32>
    %27 = vector.broadcast %19 : vector<16x1xf32> to vector<16x32xf32>
    %28 = arith.subf %11, %27 : vector<16x32xf32>
    %cst_19 = arith.constant 9.99999974E-6 : f32
    %29 = vector.broadcast %cst_19 : f32 to vector<16x1xf32>
    %30 = arith.addf %26, %29 : vector<16x1xf32>
    %31 = math.rsqrt %30 : vector<16x1xf32>
    %32 = vector.broadcast %31 : vector<16x1xf32> to vector<16x32xf32>
    %33 = arith.mulf %28, %32 : vector<16x32xf32>
    %34 = vector.broadcast %13 : vector<1x32xf32> to vector<16x32xf32>
    %35 = arith.mulf %33, %34 : vector<16x32xf32>
    %36 = vector.broadcast %15 : vector<1x32xf32> to vector<16x32xf32>
    %37 = arith.addf %35, %36 : vector<16x32xf32>
    %c0_20 = arith.constant 0 : index
    %c0_21 = arith.constant 0 : index
    %c0_22 = arith.constant 0 : index
    %38 = vector.load %arg10[%c0_20, %c0_21, %c0_22] : memref<4x32x96xf32, #tpu.memory_space<vmem>>, vector<1x32x96xf32>
    %39 = vector.shape_cast %38 : vector<1x32x96xf32> to vector<32x96xf32>
    %40 = arith.truncf %37 : vector<16x32xf32> to vector<16x32xbf16>
    %41 = arith.truncf %39 : vector<32x96xf32> to vector<32x96xbf16>
    %cst_23 = arith.constant dense<0.000000e+00> : vector<16x96xf32>
    %42 = tpu.matmul %40, %41, %cst_23 {dimension_numbers = #tpu.dot_dimension_numbers<[1], [0], [0], [1], [0, 0, 1, 1], [], []>} : vector<16x32xbf16>, vector<32x96xbf16>, vector<16x96xf32> -> vector<16x96xf32>
    %c0_24 = arith.constant 0 : index
    %c0_25 = arith.constant 0 : index
    %c0_26 = arith.constant 0 : index
    %43 = vector.load %arg11[%c0_24, %c0_25, %c0_26] : memref<4x1x96xf32, #tpu.memory_space<vmem>>, vector<1x1x96xf32>
    %44 = vector.shape_cast %43 : vector<1x1x96xf32> to vector<1x96xf32>
    %45 = vector.broadcast %44 : vector<1x96xf32> to vector<16x96xf32>
    %46 = arith.addf %42, %45 : vector<16x96xf32>
    %47 = vector.extract_strided_slice %46 {offsets = [0, 0], sizes = [16, 8], strides = [1, 1]} : vector<16x96xf32> to vector<16x8xf32>
    %48 = arith.truncf %47 : vector<16x8xf32> to vector<16x8xbf16>
    %49 = vector.extract_strided_slice %46 {offsets = [0, 32], sizes = [16, 8], strides = [1, 1]} : vector<16x96xf32> to vector<16x8xf32>
    %50 = arith.truncf %49 : vector<16x8xf32> to vector<16x8xbf16>
    %51 = vector.extract_strided_slice %46 {offsets = [0, 64], sizes = [16, 8], strides = [1, 1]} : vector<16x96xf32> to vector<16x8xf32>
    %52 = arith.truncf %51 : vector<16x8xf32> to vector<16x8xbf16>
    %cst_27 = arith.constant dense<0.000000e+00> : vector<16x16xf32>
    %53 = tpu.matmul %48, %50, %cst_27 {dimension_numbers = #tpu.dot_dimension_numbers<[1], [1], [0], [0], [0, 0, 1, 0], [], []>} : vector<16x8xbf16>, vector<16x8xbf16>, vector<16x16xf32> -> vector<16x16xf32>
    %cst_28 = arith.constant 0.353553385 : f32
    %54 = vector.broadcast %cst_28 : f32 to vector<16x16xf32>
    %55 = arith.mulf %53, %54 : vector<16x16xf32>
    %cst_29 = arith.constant dense<0xFF800000> : vector<16xf32>
    %56 = vector.multi_reduction <maximumf>, %55, %cst_29 [1] : vector<16x16xf32> to vector<16xf32>
    %57 = vector.shape_cast %56 : vector<16xf32> to vector<16x1xf32>
    %58 = vector.broadcast %57 : vector<16x1xf32> to vector<16x16xf32>
    %59 = arith.subf %55, %58 : vector<16x16xf32>
    %60 = math.exp %59 : vector<16x16xf32>
    %cst_30 = arith.constant dense<0.000000e+00> : vector<16xf32>
    %61 = vector.multi_reduction <add>, %60, %cst_30 [1] : vector<16x16xf32> to vector<16xf32>
    %62 = vector.shape_cast %61 : vector<16xf32> to vector<16x1xf32>
    %63 = tpu.reciprocal %62 {approx = true} : vector<16x1xf32> -> vector<16x1xf32>
    %64 = vector.broadcast %63 : vector<16x1xf32> to vector<16x16xf32>
    %65 = arith.mulf %60, %64 : vector<16x16xf32>
    %66 = arith.truncf %65 : vector<16x16xf32> to vector<16x16xbf16>
    %cst_31 = arith.constant dense<0.000000e+00> : vector<16x8xf32>
    %67 = tpu.matmul %66, %52, %cst_31 {dimension_numbers = #tpu.dot_dimension_numbers<[1], [0], [0], [1], [0, 0, 1, 1], [], []>} : vector<16x16xbf16>, vector<16x8xbf16>, vector<16x8xf32> -> vector<16x8xf32>
    %68 = vector.extract_strided_slice %46 {offsets = [0, 8], sizes = [16, 8], strides = [1, 1]} : vector<16x96xf32> to vector<16x8xf32>
    %69 = arith.truncf %68 : vector<16x8xf32> to vector<16x8xbf16>
    %70 = vector.extract_strided_slice %46 {offsets = [0, 40], sizes = [16, 8], strides = [1, 1]} : vector<16x96xf32> to vector<16x8xf32>
    %71 = arith.truncf %70 : vector<16x8xf32> to vector<16x8xbf16>
    %72 = vector.extract_strided_slice %46 {offsets = [0, 72], sizes = [16, 8], strides = [1, 1]} : vector<16x96xf32> to vector<16x8xf32>
    %73 = arith.truncf %72 : vector<16x8xf32> to vector<16x8xbf16>
    %cst_32 = arith.constant dense<0.000000e+00> : vector<16x16xf32>
    %74 = tpu.matmul %69, %71, %cst_32 {dimension_numbers = #tpu.dot_dimension_numbers<[1], [1], [0], [0], [0, 0, 1, 0], [], []>} : vector<16x8xbf16>, vector<16x8xbf16>, vector<16x16xf32> -> vector<16x16xf32>
    %cst_33 = arith.constant 0.353553385 : f32
    %75 = vector.broadcast %cst_33 : f32 to vector<16x16xf32>
    %76 = arith.mulf %74, %75 : vector<16x16xf32>
    %cst_34 = arith.constant dense<0xFF800000> : vector<16xf32>
    %77 = vector.multi_reduction <maximumf>, %76, %cst_34 [1] : vector<16x16xf32> to vector<16xf32>
    %78 = vector.shape_cast %77 : vector<16xf32> to vector<16x1xf32>
    %79 = vector.broadcast %78 : vector<16x1xf32> to vector<16x16xf32>
    %80 = arith.subf %76, %79 : vector<16x16xf32>
    %81 = math.exp %80 : vector<16x16xf32>
    %cst_35 = arith.constant dense<0.000000e+00> : vector<16xf32>
    %82 = vector.multi_reduction <add>, %81, %cst_35 [1] : vector<16x16xf32> to vector<16xf32>
    %83 = vector.shape_cast %82 : vector<16xf32> to vector<16x1xf32>
    %84 = tpu.reciprocal %83 {approx = true} : vector<16x1xf32> -> vector<16x1xf32>
    %85 = vector.broadcast %84 : vector<16x1xf32> to vector<16x16xf32>
    %86 = arith.mulf %81, %85 : vector<16x16xf32>
    %87 = arith.truncf %86 : vector<16x16xf32> to vector<16x16xbf16>
    %cst_36 = arith.constant dense<0.000000e+00> : vector<16x8xf32>
    %88 = tpu.matmul %87, %73, %cst_36 {dimension_numbers = #tpu.dot_dimension_numbers<[1], [0], [0], [1], [0, 0, 1, 1], [], []>} : vector<16x16xbf16>, vector<16x8xbf16>, vector<16x8xf32> -> vector<16x8xf32>
    %89 = vector.extract_strided_slice %46 {offsets = [0, 16], sizes = [16, 8], strides = [1, 1]} : vector<16x96xf32> to vector<16x8xf32>
    %90 = arith.truncf %89 : vector<16x8xf32> to vector<16x8xbf16>
    %91 = vector.extract_strided_slice %46 {offsets = [0, 48], sizes = [16, 8], strides = [1, 1]} : vector<16x96xf32> to vector<16x8xf32>
    %92 = arith.truncf %91 : vector<16x8xf32> to vector<16x8xbf16>
    %93 = vector.extract_strided_slice %46 {offsets = [0, 80], sizes = [16, 8], strides = [1, 1]} : vector<16x96xf32> to vector<16x8xf32>
    %94 = arith.truncf %93 : vector<16x8xf32> to vector<16x8xbf16>
    %cst_37 = arith.constant dense<0.000000e+00> : vector<16x16xf32>
    %95 = tpu.matmul %90, %92, %cst_37 {dimension_numbers = #tpu.dot_dimension_numbers<[1], [1], [0], [0], [0, 0, 1, 0], [], []>} : vector<16x8xbf16>, vector<16x8xbf16>, vector<16x16xf32> -> vector<16x16xf32>
    %cst_38 = arith.constant 0.353553385 : f32
    %96 = vector.broadcast %cst_38 : f32 to vector<16x16xf32>
    %97 = arith.mulf %95, %96 : vector<16x16xf32>
    %cst_39 = arith.constant dense<0xFF800000> : vector<16xf32>
    %98 = vector.multi_reduction <maximumf>, %97, %cst_39 [1] : vector<16x16xf32> to vector<16xf32>
    %99 = vector.shape_cast %98 : vector<16xf32> to vector<16x1xf32>
    %100 = vector.broadcast %99 : vector<16x1xf32> to vector<16x16xf32>
    %101 = arith.subf %97, %100 : vector<16x16xf32>
    %102 = math.exp %101 : vector<16x16xf32>
    %cst_40 = arith.constant dense<0.000000e+00> : vector<16xf32>
    %103 = vector.multi_reduction <add>, %102, %cst_40 [1] : vector<16x16xf32> to vector<16xf32>
    %104 = vector.shape_cast %103 : vector<16xf32> to vector<16x1xf32>
    %105 = tpu.reciprocal %104 {approx = true} : vector<16x1xf32> -> vector<16x1xf32>
    %106 = vector.broadcast %105 : vector<16x1xf32> to vector<16x16xf32>
    %107 = arith.mulf %102, %106 : vector<16x16xf32>
    %108 = arith.truncf %107 : vector<16x16xf32> to vector<16x16xbf16>
    %cst_41 = arith.constant dense<0.000000e+00> : vector<16x8xf32>
    %109 = tpu.matmul %108, %94, %cst_41 {dimension_numbers = #tpu.dot_dimension_numbers<[1], [0], [0], [1], [0, 0, 1, 1], [], []>} : vector<16x16xbf16>, vector<16x8xbf16>, vector<16x8xf32> -> vector<16x8xf32>
    %110 = vector.extract_strided_slice %46 {offsets = [0, 24], sizes = [16, 8], strides = [1, 1]} : vector<16x96xf32> to vector<16x8xf32>
    %111 = arith.truncf %110 : vector<16x8xf32> to vector<16x8xbf16>
    %112 = vector.extract_strided_slice %46 {offsets = [0, 56], sizes = [16, 8], strides = [1, 1]} : vector<16x96xf32> to vector<16x8xf32>
    %113 = arith.truncf %112 : vector<16x8xf32> to vector<16x8xbf16>
    %114 = vector.extract_strided_slice %46 {offsets = [0, 88], sizes = [16, 8], strides = [1, 1]} : vector<16x96xf32> to vector<16x8xf32>
    %115 = arith.truncf %114 : vector<16x8xf32> to vector<16x8xbf16>
    %cst_42 = arith.constant dense<0.000000e+00> : vector<16x16xf32>
    %116 = tpu.matmul %111, %113, %cst_42 {dimension_numbers = #tpu.dot_dimension_numbers<[1], [1], [0], [0], [0, 0, 1, 0], [], []>} : vector<16x8xbf16>, vector<16x8xbf16>, vector<16x16xf32> -> vector<16x16xf32>
    %cst_43 = arith.constant 0.353553385 : f32
    %117 = vector.broadcast %cst_43 : f32 to vector<16x16xf32>
    %118 = arith.mulf %116, %117 : vector<16x16xf32>
    %cst_44 = arith.constant dense<0xFF800000> : vector<16xf32>
    %119 = vector.multi_reduction <maximumf>, %118, %cst_44 [1] : vector<16x16xf32> to vector<16xf32>
    %120 = vector.shape_cast %119 : vector<16xf32> to vector<16x1xf32>
    %121 = vector.broadcast %120 : vector<16x1xf32> to vector<16x16xf32>
    %122 = arith.subf %118, %121 : vector<16x16xf32>
    %123 = math.exp %122 : vector<16x16xf32>
    %cst_45 = arith.constant dense<0.000000e+00> : vector<16xf32>
    %124 = vector.multi_reduction <add>, %123, %cst_45 [1] : vector<16x16xf32> to vector<16xf32>
    %125 = vector.shape_cast %124 : vector<16xf32> to vector<16x1xf32>
    %126 = tpu.reciprocal %125 {approx = true} : vector<16x1xf32> -> vector<16x1xf32>
    %127 = vector.broadcast %126 : vector<16x1xf32> to vector<16x16xf32>
    %128 = arith.mulf %123, %127 : vector<16x16xf32>
    %129 = arith.truncf %128 : vector<16x16xf32> to vector<16x16xbf16>
    %cst_46 = arith.constant dense<0.000000e+00> : vector<16x8xf32>
    %130 = tpu.matmul %129, %115, %cst_46 {dimension_numbers = #tpu.dot_dimension_numbers<[1], [0], [0], [1], [0, 0, 1, 1], [], []>} : vector<16x16xbf16>, vector<16x8xbf16>, vector<16x8xf32> -> vector<16x8xf32>
    %131 = tpu.concatenate %67, %88, %109, %130 in 1 : vector<16x8xf32>, vector<16x8xf32>, vector<16x8xf32>, vector<16x8xf32> -> vector<16x32xf32>
    %c0_47 = arith.constant 0 : index
    %c0_48 = arith.constant 0 : index
    %c0_49 = arith.constant 0 : index
    %132 = vector.load %arg12[%c0_47, %c0_48, %c0_49] : memref<4x32x32xf32, #tpu.memory_space<vmem>>, vector<1x32x32xf32>
    %133 = vector.shape_cast %132 : vector<1x32x32xf32> to vector<32x32xf32>
    %134 = arith.truncf %131 : vector<16x32xf32> to vector<16x32xbf16>
    %135 = arith.truncf %133 : vector<32x32xf32> to vector<32x32xbf16>
    %cst_50 = arith.constant dense<0.000000e+00> : vector<16x32xf32>
    %136 = tpu.matmul %134, %135, %cst_50 {dimension_numbers = #tpu.dot_dimension_numbers<[1], [0], [0], [1], [0, 0, 1, 1], [], []>} : vector<16x32xbf16>, vector<32x32xbf16>, vector<16x32xf32> -> vector<16x32xf32>
    %137 = arith.addf %11, %136 : vector<16x32xf32>
    %c0_51 = arith.constant 0 : index
    %c0_52 = arith.constant 0 : index
    %c0_53 = arith.constant 0 : index
    %138 = vector.load %arg13[%c0_51, %c0_52, %c0_53] : memref<4x1x32xf32, #tpu.memory_space<vmem>>, vector<1x1x32xf32>
    %139 = vector.shape_cast %138 : vector<1x1x32xf32> to vector<1x32xf32>
    %140 = vector.broadcast %139 : vector<1x32xf32> to vector<16x32xf32>
    %141 = arith.addf %137, %140 : vector<16x32xf32>
    %c0_54 = arith.constant 0 : index
    %c0_55 = arith.constant 0 : index
    %c0_56 = arith.constant 0 : index
    %142 = vector.load %arg14[%c0_54, %c0_55, %c0_56] : memref<4x1x32xf32, #tpu.memory_space<vmem>>, vector<1x1x32xf32>
    %143 = vector.shape_cast %142 : vector<1x1x32xf32> to vector<1x32xf32>
    %c0_57 = arith.constant 0 : index
    %c0_58 = arith.constant 0 : index
    %c0_59 = arith.constant 0 : index
    %144 = vector.load %arg15[%c0_57, %c0_58, %c0_59] : memref<4x1x32xf32, #tpu.memory_space<vmem>>, vector<1x1x32xf32>
    %145 = vector.shape_cast %144 : vector<1x1x32xf32> to vector<1x32xf32>
    %cst_60 = arith.constant dense<0.000000e+00> : vector<16xf32>
    %146 = vector.multi_reduction <add>, %141, %cst_60 [1] : vector<16x32xf32> to vector<16xf32>
    %147 = vector.shape_cast %146 : vector<16xf32> to vector<16x1xf32>
    %cst_61 = arith.constant 3.200000e+01 : f32
    %148 = vector.broadcast %cst_61 : f32 to vector<16x1xf32>
    %149 = arith.divf %147, %148 : vector<16x1xf32>
    %150 = vector.broadcast %149 : vector<16x1xf32> to vector<16x32xf32>
    %151 = arith.subf %141, %150 : vector<16x32xf32>
    %152 = arith.mulf %151, %151 : vector<16x32xf32>
    %cst_62 = arith.constant dense<0.000000e+00> : vector<16xf32>
    %153 = vector.multi_reduction <add>, %152, %cst_62 [1] : vector<16x32xf32> to vector<16xf32>
    %154 = vector.shape_cast %153 : vector<16xf32> to vector<16x1xf32>
    %cst_63 = arith.constant 3.200000e+01 : f32
    %155 = vector.broadcast %cst_63 : f32 to vector<16x1xf32>
    %156 = arith.divf %154, %155 : vector<16x1xf32>
    %157 = vector.broadcast %149 : vector<16x1xf32> to vector<16x32xf32>
    %158 = arith.subf %141, %157 : vector<16x32xf32>
    %cst_64 = arith.constant 9.99999974E-6 : f32
    %159 = vector.broadcast %cst_64 : f32 to vector<16x1xf32>
    %160 = arith.addf %156, %159 : vector<16x1xf32>
    %161 = math.rsqrt %160 : vector<16x1xf32>
    %162 = vector.broadcast %161 : vector<16x1xf32> to vector<16x32xf32>
    %163 = arith.mulf %158, %162 : vector<16x32xf32>
    %164 = vector.broadcast %143 : vector<1x32xf32> to vector<16x32xf32>
    %165 = arith.mulf %163, %164 : vector<16x32xf32>
    %166 = vector.broadcast %145 : vector<1x32xf32> to vector<16x32xf32>
    %167 = arith.addf %165, %166 : vector<16x32xf32>
    %c0_65 = arith.constant 0 : index
    %c0_66 = arith.constant 0 : index
    %c0_67 = arith.constant 0 : index
    %168 = vector.load %arg16[%c0_65, %c0_66, %c0_67] : memref<4x32x128xf32, #tpu.memory_space<vmem>>, vector<1x32x128xf32>
    %169 = vector.shape_cast %168 : vector<1x32x128xf32> to vector<32x128xf32>
    %170 = arith.truncf %167 : vector<16x32xf32> to vector<16x32xbf16>
    %171 = arith.truncf %169 : vector<32x128xf32> to vector<32x128xbf16>
    %cst_68 = arith.constant dense<0.000000e+00> : vector<16x128xf32>
    %172 = tpu.matmul %170, %171, %cst_68 {dimension_numbers = #tpu.dot_dimension_numbers<[1], [0], [0], [1], [0, 0, 1, 1], [], []>} : vector<16x32xbf16>, vector<32x128xbf16>, vector<16x128xf32> -> vector<16x128xf32>
    %c0_69 = arith.constant 0 : index
    %c0_70 = arith.constant 0 : index
    %c0_71 = arith.constant 0 : index
    %173 = vector.load %arg17[%c0_69, %c0_70, %c0_71] : memref<4x1x128xf32, #tpu.memory_space<vmem>>, vector<1x1x128xf32>
    %174 = vector.shape_cast %173 : vector<1x1x128xf32> to vector<1x128xf32>
    %175 = vector.broadcast %174 : vector<1x128xf32> to vector<16x128xf32>
    %176 = arith.addf %172, %175 : vector<16x128xf32>
    %cst_72 = arith.constant 5.000000e-01 : f32
    %177 = vector.broadcast %cst_72 : f32 to vector<16x128xf32>
    %178 = arith.mulf %177, %176 : vector<16x128xf32>
    %cst_73 = arith.constant 4.471500e-02 : f32
    %179 = vector.broadcast %cst_73 : f32 to vector<16x128xf32>
    %180 = arith.mulf %179, %176 : vector<16x128xf32>
    %181 = arith.mulf %180, %176 : vector<16x128xf32>
    %182 = arith.mulf %181, %176 : vector<16x128xf32>
    %183 = arith.addf %176, %182 : vector<16x128xf32>
    %cst_74 = arith.constant 0.797884583 : f32
    %184 = vector.broadcast %cst_74 : f32 to vector<16x128xf32>
    %185 = arith.mulf %184, %183 : vector<16x128xf32>
    %186 = math.tanh %185 : vector<16x128xf32>
    %cst_75 = arith.constant 1.000000e+00 : f32
    %187 = vector.broadcast %cst_75 : f32 to vector<16x128xf32>
    %188 = arith.addf %187, %186 : vector<16x128xf32>
    %189 = arith.mulf %178, %188 : vector<16x128xf32>
    %c0_76 = arith.constant 0 : index
    %c0_77 = arith.constant 0 : index
    %c0_78 = arith.constant 0 : index
    %190 = vector.load %arg18[%c0_76, %c0_77, %c0_78] : memref<4x128x32xf32, #tpu.memory_space<vmem>>, vector<1x128x32xf32>
    %191 = vector.shape_cast %190 : vector<1x128x32xf32> to vector<128x32xf32>
    %192 = arith.truncf %189 : vector<16x128xf32> to vector<16x128xbf16>
    %193 = arith.truncf %191 : vector<128x32xf32> to vector<128x32xbf16>
    %cst_79 = arith.constant dense<0.000000e+00> : vector<16x32xf32>
    %194 = tpu.matmul %192, %193, %cst_79 {dimension_numbers = #tpu.dot_dimension_numbers<[1], [0], [0], [1], [0, 0, 1, 1], [], []>} : vector<16x128xbf16>, vector<128x32xbf16>, vector<16x32xf32> -> vector<16x32xf32>
    %195 = arith.addf %141, %194 : vector<16x32xf32>
    %c0_80 = arith.constant 0 : index
    %c0_81 = arith.constant 0 : index
    %c0_82 = arith.constant 0 : index
    %196 = vector.load %arg19[%c0_80, %c0_81, %c0_82] : memref<4x1x32xf32, #tpu.memory_space<vmem>>, vector<1x1x32xf32>
    %197 = vector.shape_cast %196 : vector<1x1x32xf32> to vector<1x32xf32>
    %198 = vector.broadcast %197 : vector<1x32xf32> to vector<16x32xf32>
    %199 = arith.addf %195, %198 : vector<16x32xf32>
    %c1 = arith.constant 1 : index
    %c0_83 = arith.constant 0 : index
    %c0_84 = arith.constant 0 : index
    %200 = vector.load %arg8[%c1, %c0_83, %c0_84] : memref<4x1x32xf32, #tpu.memory_space<vmem>>, vector<1x1x32xf32>
    %201 = vector.shape_cast %200 : vector<1x1x32xf32> to vector<1x32xf32>
    %c1_85 = arith.constant 1 : index
    %c0_86 = arith.constant 0 : index
    %c0_87 = arith.constant 0 : index
    %202 = vector.load %arg9[%c1_85, %c0_86, %c0_87] : memref<4x1x32xf32, #tpu.memory_space<vmem>>, vector<1x1x32xf32>
    %203 = vector.shape_cast %202 : vector<1x1x32xf32> to vector<1x32xf32>
    %cst_88 = arith.constant dense<0.000000e+00> : vector<16xf32>
    %204 = vector.multi_reduction <add>, %199, %cst_88 [1] : vector<16x32xf32> to vector<16xf32>
    %205 = vector.shape_cast %204 : vector<16xf32> to vector<16x1xf32>
    %cst_89 = arith.constant 3.200000e+01 : f32
    %206 = vector.broadcast %cst_89 : f32 to vector<16x1xf32>
    %207 = arith.divf %205, %206 : vector<16x1xf32>
    %208 = vector.broadcast %207 : vector<16x1xf32> to vector<16x32xf32>
    %209 = arith.subf %199, %208 : vector<16x32xf32>
    %210 = arith.mulf %209, %209 : vector<16x32xf32>
    %cst_90 = arith.constant dense<0.000000e+00> : vector<16xf32>
    %211 = vector.multi_reduction <add>, %210, %cst_90 [1] : vector<16x32xf32> to vector<16xf32>
    %212 = vector.shape_cast %211 : vector<16xf32> to vector<16x1xf32>
    %cst_91 = arith.constant 3.200000e+01 : f32
    %213 = vector.broadcast %cst_91 : f32 to vector<16x1xf32>
    %214 = arith.divf %212, %213 : vector<16x1xf32>
    %215 = vector.broadcast %207 : vector<16x1xf32> to vector<16x32xf32>
    %216 = arith.subf %199, %215 : vector<16x32xf32>
    %cst_92 = arith.constant 9.99999974E-6 : f32
    %217 = vector.broadcast %cst_92 : f32 to vector<16x1xf32>
    %218 = arith.addf %214, %217 : vector<16x1xf32>
    %219 = math.rsqrt %218 : vector<16x1xf32>
    %220 = vector.broadcast %219 : vector<16x1xf32> to vector<16x32xf32>
    %221 = arith.mulf %216, %220 : vector<16x32xf32>
    %222 = vector.broadcast %201 : vector<1x32xf32> to vector<16x32xf32>
    %223 = arith.mulf %221, %222 : vector<16x32xf32>
    %224 = vector.broadcast %203 : vector<1x32xf32> to vector<16x32xf32>
    %225 = arith.addf %223, %224 : vector<16x32xf32>
    %c1_93 = arith.constant 1 : index
    %c0_94 = arith.constant 0 : index
    %c0_95 = arith.constant 0 : index
    %226 = vector.load %arg10[%c1_93, %c0_94, %c0_95] : memref<4x32x96xf32, #tpu.memory_space<vmem>>, vector<1x32x96xf32>
    %227 = vector.shape_cast %226 : vector<1x32x96xf32> to vector<32x96xf32>
    %228 = arith.truncf %225 : vector<16x32xf32> to vector<16x32xbf16>
    %229 = arith.truncf %227 : vector<32x96xf32> to vector<32x96xbf16>
    %cst_96 = arith.constant dense<0.000000e+00> : vector<16x96xf32>
    %230 = tpu.matmul %228, %229, %cst_96 {dimension_numbers = #tpu.dot_dimension_numbers<[1], [0], [0], [1], [0, 0, 1, 1], [], []>} : vector<16x32xbf16>, vector<32x96xbf16>, vector<16x96xf32> -> vector<16x96xf32>
    %c1_97 = arith.constant 1 : index
    %c0_98 = arith.constant 0 : index
    %c0_99 = arith.constant 0 : index
    %231 = vector.load %arg11[%c1_97, %c0_98, %c0_99] : memref<4x1x96xf32, #tpu.memory_space<vmem>>, vector<1x1x96xf32>
    %232 = vector.shape_cast %231 : vector<1x1x96xf32> to vector<1x96xf32>
    %233 = vector.broadcast %232 : vector<1x96xf32> to vector<16x96xf32>
    %234 = arith.addf %230, %233 : vector<16x96xf32>
    %235 = vector.extract_strided_slice %234 {offsets = [0, 0], sizes = [16, 8], strides = [1, 1]} : vector<16x96xf32> to vector<16x8xf32>
    %236 = arith.truncf %235 : vector<16x8xf32> to vector<16x8xbf16>
    %237 = vector.extract_strided_slice %234 {offsets = [0, 32], sizes = [16, 8], strides = [1, 1]} : vector<16x96xf32> to vector<16x8xf32>
    %238 = arith.truncf %237 : vector<16x8xf32> to vector<16x8xbf16>
    %239 = vector.extract_strided_slice %234 {offsets = [0, 64], sizes = [16, 8], strides = [1, 1]} : vector<16x96xf32> to vector<16x8xf32>
    %240 = arith.truncf %239 : vector<16x8xf32> to vector<16x8xbf16>
    %cst_100 = arith.constant dense<0.000000e+00> : vector<16x16xf32>
    %241 = tpu.matmul %236, %238, %cst_100 {dimension_numbers = #tpu.dot_dimension_numbers<[1], [1], [0], [0], [0, 0, 1, 0], [], []>} : vector<16x8xbf16>, vector<16x8xbf16>, vector<16x16xf32> -> vector<16x16xf32>
    %cst_101 = arith.constant 0.353553385 : f32
    %242 = vector.broadcast %cst_101 : f32 to vector<16x16xf32>
    %243 = arith.mulf %241, %242 : vector<16x16xf32>
    %cst_102 = arith.constant dense<0xFF800000> : vector<16xf32>
    %244 = vector.multi_reduction <maximumf>, %243, %cst_102 [1] : vector<16x16xf32> to vector<16xf32>
    %245 = vector.shape_cast %244 : vector<16xf32> to vector<16x1xf32>
    %246 = vector.broadcast %245 : vector<16x1xf32> to vector<16x16xf32>
    %247 = arith.subf %243, %246 : vector<16x16xf32>
    %248 = math.exp %247 : vector<16x16xf32>
    %cst_103 = arith.constant dense<0.000000e+00> : vector<16xf32>
    %249 = vector.multi_reduction <add>, %248, %cst_103 [1] : vector<16x16xf32> to vector<16xf32>
    %250 = vector.shape_cast %249 : vector<16xf32> to vector<16x1xf32>
    %251 = tpu.reciprocal %250 {approx = true} : vector<16x1xf32> -> vector<16x1xf32>
    %252 = vector.broadcast %251 : vector<16x1xf32> to vector<16x16xf32>
    %253 = arith.mulf %248, %252 : vector<16x16xf32>
    %254 = arith.truncf %253 : vector<16x16xf32> to vector<16x16xbf16>
    %cst_104 = arith.constant dense<0.000000e+00> : vector<16x8xf32>
    %255 = tpu.matmul %254, %240, %cst_104 {dimension_numbers = #tpu.dot_dimension_numbers<[1], [0], [0], [1], [0, 0, 1, 1], [], []>} : vector<16x16xbf16>, vector<16x8xbf16>, vector<16x8xf32> -> vector<16x8xf32>
    %256 = vector.extract_strided_slice %234 {offsets = [0, 8], sizes = [16, 8], strides = [1, 1]} : vector<16x96xf32> to vector<16x8xf32>
    %257 = arith.truncf %256 : vector<16x8xf32> to vector<16x8xbf16>
    %258 = vector.extract_strided_slice %234 {offsets = [0, 40], sizes = [16, 8], strides = [1, 1]} : vector<16x96xf32> to vector<16x8xf32>
    %259 = arith.truncf %258 : vector<16x8xf32> to vector<16x8xbf16>
    %260 = vector.extract_strided_slice %234 {offsets = [0, 72], sizes = [16, 8], strides = [1, 1]} : vector<16x96xf32> to vector<16x8xf32>
    %261 = arith.truncf %260 : vector<16x8xf32> to vector<16x8xbf16>
    %cst_105 = arith.constant dense<0.000000e+00> : vector<16x16xf32>
    %262 = tpu.matmul %257, %259, %cst_105 {dimension_numbers = #tpu.dot_dimension_numbers<[1], [1], [0], [0], [0, 0, 1, 0], [], []>} : vector<16x8xbf16>, vector<16x8xbf16>, vector<16x16xf32> -> vector<16x16xf32>
    %cst_106 = arith.constant 0.353553385 : f32
    %263 = vector.broadcast %cst_106 : f32 to vector<16x16xf32>
    %264 = arith.mulf %262, %263 : vector<16x16xf32>
    %cst_107 = arith.constant dense<0xFF800000> : vector<16xf32>
    %265 = vector.multi_reduction <maximumf>, %264, %cst_107 [1] : vector<16x16xf32> to vector<16xf32>
    %266 = vector.shape_cast %265 : vector<16xf32> to vector<16x1xf32>
    %267 = vector.broadcast %266 : vector<16x1xf32> to vector<16x16xf32>
    %268 = arith.subf %264, %267 : vector<16x16xf32>
    %269 = math.exp %268 : vector<16x16xf32>
    %cst_108 = arith.constant dense<0.000000e+00> : vector<16xf32>
    %270 = vector.multi_reduction <add>, %269, %cst_108 [1] : vector<16x16xf32> to vector<16xf32>
    %271 = vector.shape_cast %270 : vector<16xf32> to vector<16x1xf32>
    %272 = tpu.reciprocal %271 {approx = true} : vector<16x1xf32> -> vector<16x1xf32>
    %273 = vector.broadcast %272 : vector<16x1xf32> to vector<16x16xf32>
    %274 = arith.mulf %269, %273 : vector<16x16xf32>
    %275 = arith.truncf %274 : vector<16x16xf32> to vector<16x16xbf16>
    %cst_109 = arith.constant dense<0.000000e+00> : vector<16x8xf32>
    %276 = tpu.matmul %275, %261, %cst_109 {dimension_numbers = #tpu.dot_dimension_numbers<[1], [0], [0], [1], [0, 0, 1, 1], [], []>} : vector<16x16xbf16>, vector<16x8xbf16>, vector<16x8xf32> -> vector<16x8xf32>
    %277 = vector.extract_strided_slice %234 {offsets = [0, 16], sizes = [16, 8], strides = [1, 1]} : vector<16x96xf32> to vector<16x8xf32>
    %278 = arith.truncf %277 : vector<16x8xf32> to vector<16x8xbf16>
    %279 = vector.extract_strided_slice %234 {offsets = [0, 48], sizes = [16, 8], strides = [1, 1]} : vector<16x96xf32> to vector<16x8xf32>
    %280 = arith.truncf %279 : vector<16x8xf32> to vector<16x8xbf16>
    %281 = vector.extract_strided_slice %234 {offsets = [0, 80], sizes = [16, 8], strides = [1, 1]} : vector<16x96xf32> to vector<16x8xf32>
    %282 = arith.truncf %281 : vector<16x8xf32> to vector<16x8xbf16>
    %cst_110 = arith.constant dense<0.000000e+00> : vector<16x16xf32>
    %283 = tpu.matmul %278, %280, %cst_110 {dimension_numbers = #tpu.dot_dimension_numbers<[1], [1], [0], [0], [0, 0, 1, 0], [], []>} : vector<16x8xbf16>, vector<16x8xbf16>, vector<16x16xf32> -> vector<16x16xf32>
    %cst_111 = arith.constant 0.353553385 : f32
    %284 = vector.broadcast %cst_111 : f32 to vector<16x16xf32>
    %285 = arith.mulf %283, %284 : vector<16x16xf32>
    %cst_112 = arith.constant dense<0xFF800000> : vector<16xf32>
    %286 = vector.multi_reduction <maximumf>, %285, %cst_112 [1] : vector<16x16xf32> to vector<16xf32>
    %287 = vector.shape_cast %286 : vector<16xf32> to vector<16x1xf32>
    %288 = vector.broadcast %287 : vector<16x1xf32> to vector<16x16xf32>
    %289 = arith.subf %285, %288 : vector<16x16xf32>
    %290 = math.exp %289 : vector<16x16xf32>
    %cst_113 = arith.constant dense<0.000000e+00> : vector<16xf32>
    %291 = vector.multi_reduction <add>, %290, %cst_113 [1] : vector<16x16xf32> to vector<16xf32>
    %292 = vector.shape_cast %291 : vector<16xf32> to vector<16x1xf32>
    %293 = tpu.reciprocal %292 {approx = true} : vector<16x1xf32> -> vector<16x1xf32>
    %294 = vector.broadcast %293 : vector<16x1xf32> to vector<16x16xf32>
    %295 = arith.mulf %290, %294 : vector<16x16xf32>
    %296 = arith.truncf %295 : vector<16x16xf32> to vector<16x16xbf16>
    %cst_114 = arith.constant dense<0.000000e+00> : vector<16x8xf32>
    %297 = tpu.matmul %296, %282, %cst_114 {dimension_numbers = #tpu.dot_dimension_numbers<[1], [0], [0], [1], [0, 0, 1, 1], [], []>} : vector<16x16xbf16>, vector<16x8xbf16>, vector<16x8xf32> -> vector<16x8xf32>
    %298 = vector.extract_strided_slice %234 {offsets = [0, 24], sizes = [16, 8], strides = [1, 1]} : vector<16x96xf32> to vector<16x8xf32>
    %299 = arith.truncf %298 : vector<16x8xf32> to vector<16x8xbf16>
    %300 = vector.extract_strided_slice %234 {offsets = [0, 56], sizes = [16, 8], strides = [1, 1]} : vector<16x96xf32> to vector<16x8xf32>
    %301 = arith.truncf %300 : vector<16x8xf32> to vector<16x8xbf16>
    %302 = vector.extract_strided_slice %234 {offsets = [0, 88], sizes = [16, 8], strides = [1, 1]} : vector<16x96xf32> to vector<16x8xf32>
    %303 = arith.truncf %302 : vector<16x8xf32> to vector<16x8xbf16>
    %cst_115 = arith.constant dense<0.000000e+00> : vector<16x16xf32>
    %304 = tpu.matmul %299, %301, %cst_115 {dimension_numbers = #tpu.dot_dimension_numbers<[1], [1], [0], [0], [0, 0, 1, 0], [], []>} : vector<16x8xbf16>, vector<16x8xbf16>, vector<16x16xf32> -> vector<16x16xf32>
    %cst_116 = arith.constant 0.353553385 : f32
    %305 = vector.broadcast %cst_116 : f32 to vector<16x16xf32>
    %306 = arith.mulf %304, %305 : vector<16x16xf32>
    %cst_117 = arith.constant dense<0xFF800000> : vector<16xf32>
    %307 = vector.multi_reduction <maximumf>, %306, %cst_117 [1] : vector<16x16xf32> to vector<16xf32>
    %308 = vector.shape_cast %307 : vector<16xf32> to vector<16x1xf32>
    %309 = vector.broadcast %308 : vector<16x1xf32> to vector<16x16xf32>
    %310 = arith.subf %306, %309 : vector<16x16xf32>
    %311 = math.exp %310 : vector<16x16xf32>
    %cst_118 = arith.constant dense<0.000000e+00> : vector<16xf32>
    %312 = vector.multi_reduction <add>, %311, %cst_118 [1] : vector<16x16xf32> to vector<16xf32>
    %313 = vector.shape_cast %312 : vector<16xf32> to vector<16x1xf32>
    %314 = tpu.reciprocal %313 {approx = true} : vector<16x1xf32> -> vector<16x1xf32>
    %315 = vector.broadcast %314 : vector<16x1xf32> to vector<16x16xf32>
    %316 = arith.mulf %311, %315 : vector<16x16xf32>
    %317 = arith.truncf %316 : vector<16x16xf32> to vector<16x16xbf16>
    %cst_119 = arith.constant dense<0.000000e+00> : vector<16x8xf32>
    %318 = tpu.matmul %317, %303, %cst_119 {dimension_numbers = #tpu.dot_dimension_numbers<[1], [0], [0], [1], [0, 0, 1, 1], [], []>} : vector<16x16xbf16>, vector<16x8xbf16>, vector<16x8xf32> -> vector<16x8xf32>
    %319 = tpu.concatenate %255, %276, %297, %318 in 1 : vector<16x8xf32>, vector<16x8xf32>, vector<16x8xf32>, vector<16x8xf32> -> vector<16x32xf32>
    %c1_120 = arith.constant 1 : index
    %c0_121 = arith.constant 0 : index
    %c0_122 = arith.constant 0 : index
    %320 = vector.load %arg12[%c1_120, %c0_121, %c0_122] : memref<4x32x32xf32, #tpu.memory_space<vmem>>, vector<1x32x32xf32>
    %321 = vector.shape_cast %320 : vector<1x32x32xf32> to vector<32x32xf32>
    %322 = arith.truncf %319 : vector<16x32xf32> to vector<16x32xbf16>
    %323 = arith.truncf %321 : vector<32x32xf32> to vector<32x32xbf16>
    %cst_123 = arith.constant dense<0.000000e+00> : vector<16x32xf32>
    %324 = tpu.matmul %322, %323, %cst_123 {dimension_numbers = #tpu.dot_dimension_numbers<[1], [0], [0], [1], [0, 0, 1, 1], [], []>} : vector<16x32xbf16>, vector<32x32xbf16>, vector<16x32xf32> -> vector<16x32xf32>
    %325 = arith.addf %199, %324 : vector<16x32xf32>
    %c1_124 = arith.constant 1 : index
    %c0_125 = arith.constant 0 : index
    %c0_126 = arith.constant 0 : index
    %326 = vector.load %arg13[%c1_124, %c0_125, %c0_126] : memref<4x1x32xf32, #tpu.memory_space<vmem>>, vector<1x1x32xf32>
    %327 = vector.shape_cast %326 : vector<1x1x32xf32> to vector<1x32xf32>
    %328 = vector.broadcast %327 : vector<1x32xf32> to vector<16x32xf32>
    %329 = arith.addf %325, %328 : vector<16x32xf32>
    %c1_127 = arith.constant 1 : index
    %c0_128 = arith.constant 0 : index
    %c0_129 = arith.constant 0 : index
    %330 = vector.load %arg14[%c1_127, %c0_128, %c0_129] : memref<4x1x32xf32, #tpu.memory_space<vmem>>, vector<1x1x32xf32>
    %331 = vector.shape_cast %330 : vector<1x1x32xf32> to vector<1x32xf32>
    %c1_130 = arith.constant 1 : index
    %c0_131 = arith.constant 0 : index
    %c0_132 = arith.constant 0 : index
    %332 = vector.load %arg15[%c1_130, %c0_131, %c0_132] : memref<4x1x32xf32, #tpu.memory_space<vmem>>, vector<1x1x32xf32>
    %333 = vector.shape_cast %332 : vector<1x1x32xf32> to vector<1x32xf32>
    %cst_133 = arith.constant dense<0.000000e+00> : vector<16xf32>
    %334 = vector.multi_reduction <add>, %329, %cst_133 [1] : vector<16x32xf32> to vector<16xf32>
    %335 = vector.shape_cast %334 : vector<16xf32> to vector<16x1xf32>
    %cst_134 = arith.constant 3.200000e+01 : f32
    %336 = vector.broadcast %cst_134 : f32 to vector<16x1xf32>
    %337 = arith.divf %335, %336 : vector<16x1xf32>
    %338 = vector.broadcast %337 : vector<16x1xf32> to vector<16x32xf32>
    %339 = arith.subf %329, %338 : vector<16x32xf32>
    %340 = arith.mulf %339, %339 : vector<16x32xf32>
    %cst_135 = arith.constant dense<0.000000e+00> : vector<16xf32>
    %341 = vector.multi_reduction <add>, %340, %cst_135 [1] : vector<16x32xf32> to vector<16xf32>
    %342 = vector.shape_cast %341 : vector<16xf32> to vector<16x1xf32>
    %cst_136 = arith.constant 3.200000e+01 : f32
    %343 = vector.broadcast %cst_136 : f32 to vector<16x1xf32>
    %344 = arith.divf %342, %343 : vector<16x1xf32>
    %345 = vector.broadcast %337 : vector<16x1xf32> to vector<16x32xf32>
    %346 = arith.subf %329, %345 : vector<16x32xf32>
    %cst_137 = arith.constant 9.99999974E-6 : f32
    %347 = vector.broadcast %cst_137 : f32 to vector<16x1xf32>
    %348 = arith.addf %344, %347 : vector<16x1xf32>
    %349 = math.rsqrt %348 : vector<16x1xf32>
    %350 = vector.broadcast %349 : vector<16x1xf32> to vector<16x32xf32>
    %351 = arith.mulf %346, %350 : vector<16x32xf32>
    %352 = vector.broadcast %331 : vector<1x32xf32> to vector<16x32xf32>
    %353 = arith.mulf %351, %352 : vector<16x32xf32>
    %354 = vector.broadcast %333 : vector<1x32xf32> to vector<16x32xf32>
    %355 = arith.addf %353, %354 : vector<16x32xf32>
    %c1_138 = arith.constant 1 : index
    %c0_139 = arith.constant 0 : index
    %c0_140 = arith.constant 0 : index
    %356 = vector.load %arg16[%c1_138, %c0_139, %c0_140] : memref<4x32x128xf32, #tpu.memory_space<vmem>>, vector<1x32x128xf32>
    %357 = vector.shape_cast %356 : vector<1x32x128xf32> to vector<32x128xf32>
    %358 = arith.truncf %355 : vector<16x32xf32> to vector<16x32xbf16>
    %359 = arith.truncf %357 : vector<32x128xf32> to vector<32x128xbf16>
    %cst_141 = arith.constant dense<0.000000e+00> : vector<16x128xf32>
    %360 = tpu.matmul %358, %359, %cst_141 {dimension_numbers = #tpu.dot_dimension_numbers<[1], [0], [0], [1], [0, 0, 1, 1], [], []>} : vector<16x32xbf16>, vector<32x128xbf16>, vector<16x128xf32> -> vector<16x128xf32>
    %c1_142 = arith.constant 1 : index
    %c0_143 = arith.constant 0 : index
    %c0_144 = arith.constant 0 : index
    %361 = vector.load %arg17[%c1_142, %c0_143, %c0_144] : memref<4x1x128xf32, #tpu.memory_space<vmem>>, vector<1x1x128xf32>
    %362 = vector.shape_cast %361 : vector<1x1x128xf32> to vector<1x128xf32>
    %363 = vector.broadcast %362 : vector<1x128xf32> to vector<16x128xf32>
    %364 = arith.addf %360, %363 : vector<16x128xf32>
    %cst_145 = arith.constant 5.000000e-01 : f32
    %365 = vector.broadcast %cst_145 : f32 to vector<16x128xf32>
    %366 = arith.mulf %365, %364 : vector<16x128xf32>
    %cst_146 = arith.constant 4.471500e-02 : f32
    %367 = vector.broadcast %cst_146 : f32 to vector<16x128xf32>
    %368 = arith.mulf %367, %364 : vector<16x128xf32>
    %369 = arith.mulf %368, %364 : vector<16x128xf32>
    %370 = arith.mulf %369, %364 : vector<16x128xf32>
    %371 = arith.addf %364, %370 : vector<16x128xf32>
    %cst_147 = arith.constant 0.797884583 : f32
    %372 = vector.broadcast %cst_147 : f32 to vector<16x128xf32>
    %373 = arith.mulf %372, %371 : vector<16x128xf32>
    %374 = math.tanh %373 : vector<16x128xf32>
    %cst_148 = arith.constant 1.000000e+00 : f32
    %375 = vector.broadcast %cst_148 : f32 to vector<16x128xf32>
    %376 = arith.addf %375, %374 : vector<16x128xf32>
    %377 = arith.mulf %366, %376 : vector<16x128xf32>
    %c1_149 = arith.constant 1 : index
    %c0_150 = arith.constant 0 : index
    %c0_151 = arith.constant 0 : index
    %378 = vector.load %arg18[%c1_149, %c0_150, %c0_151] : memref<4x128x32xf32, #tpu.memory_space<vmem>>, vector<1x128x32xf32>
    %379 = vector.shape_cast %378 : vector<1x128x32xf32> to vector<128x32xf32>
    %380 = arith.truncf %377 : vector<16x128xf32> to vector<16x128xbf16>
    %381 = arith.truncf %379 : vector<128x32xf32> to vector<128x32xbf16>
    %cst_152 = arith.constant dense<0.000000e+00> : vector<16x32xf32>
    %382 = tpu.matmul %380, %381, %cst_152 {dimension_numbers = #tpu.dot_dimension_numbers<[1], [0], [0], [1], [0, 0, 1, 1], [], []>} : vector<16x128xbf16>, vector<128x32xbf16>, vector<16x32xf32> -> vector<16x32xf32>
    %383 = arith.addf %329, %382 : vector<16x32xf32>
    %c1_153 = arith.constant 1 : index
    %c0_154 = arith.constant 0 : index
    %c0_155 = arith.constant 0 : index
    %384 = vector.load %arg19[%c1_153, %c0_154, %c0_155] : memref<4x1x32xf32, #tpu.memory_space<vmem>>, vector<1x1x32xf32>
    %385 = vector.shape_cast %384 : vector<1x1x32xf32> to vector<1x32xf32>
    %386 = vector.broadcast %385 : vector<1x32xf32> to vector<16x32xf32>
    %387 = arith.addf %383, %386 : vector<16x32xf32>
    %388 = vector.extract_strided_slice %387 {offsets = [8, 0], sizes = [8, 32], strides = [1, 1]} : vector<16x32xf32> to vector<8x32xf32>
    %c0_156 = arith.constant 0 : index
    %c0_157 = arith.constant 0 : index
    %389 = vector.load %arg20[%c0_156, %c0_157] : memref<1x32xf32, #tpu.memory_space<vmem>>, vector<1x32xf32>
    %c0_158 = arith.constant 0 : index
    %c0_159 = arith.constant 0 : index
    %390 = vector.load %arg21[%c0_158, %c0_159] : memref<1x32xf32, #tpu.memory_space<vmem>>, vector<1x32xf32>
    %cst_160 = arith.constant dense<0.000000e+00> : vector<8xf32>
    %391 = vector.multi_reduction <add>, %388, %cst_160 [1] : vector<8x32xf32> to vector<8xf32>
    %392 = vector.shape_cast %391 : vector<8xf32> to vector<8x1xf32>
    %cst_161 = arith.constant 3.200000e+01 : f32
    %393 = vector.broadcast %cst_161 : f32 to vector<8x1xf32>
    %394 = arith.divf %392, %393 : vector<8x1xf32>
    %395 = vector.broadcast %394 : vector<8x1xf32> to vector<8x32xf32>
    %396 = arith.subf %388, %395 : vector<8x32xf32>
    %397 = arith.mulf %396, %396 : vector<8x32xf32>
    %cst_162 = arith.constant dense<0.000000e+00> : vector<8xf32>
    %398 = vector.multi_reduction <add>, %397, %cst_162 [1] : vector<8x32xf32> to vector<8xf32>
    %399 = vector.shape_cast %398 : vector<8xf32> to vector<8x1xf32>
    %cst_163 = arith.constant 3.200000e+01 : f32
    %400 = vector.broadcast %cst_163 : f32 to vector<8x1xf32>
    %401 = arith.divf %399, %400 : vector<8x1xf32>
    %402 = vector.broadcast %394 : vector<8x1xf32> to vector<8x32xf32>
    %403 = arith.subf %388, %402 : vector<8x32xf32>
    %cst_164 = arith.constant 9.99999974E-6 : f32
    %404 = vector.broadcast %cst_164 : f32 to vector<8x1xf32>
    %405 = arith.addf %401, %404 : vector<8x1xf32>
    %406 = math.rsqrt %405 : vector<8x1xf32>
    %407 = vector.broadcast %406 : vector<8x1xf32> to vector<8x32xf32>
    %408 = arith.mulf %403, %407 : vector<8x32xf32>
    %409 = vector.broadcast %389 : vector<1x32xf32> to vector<8x32xf32>
    %410 = arith.mulf %408, %409 : vector<8x32xf32>
    %411 = vector.broadcast %390 : vector<1x32xf32> to vector<8x32xf32>
    %412 = arith.addf %410, %411 : vector<8x32xf32>
    %c0_165 = arith.constant 0 : index
    %c0_166 = arith.constant 0 : index
    %413 = vector.load %arg22[%c0_165, %c0_166] : memref<32x4xf32, #tpu.memory_space<vmem>>, vector<32x4xf32>
    %cst_167 = arith.constant dense<0.000000e+00> : vector<8x4xf32>
    %414 = tpu.matmul %412, %413, %cst_167 {dimension_numbers = #tpu.dot_dimension_numbers<[1], [0], [0], [1], [0, 0, 1, 1], [], []>} : vector<8x32xf32>, vector<32x4xf32>, vector<8x4xf32> -> vector<8x4xf32>
    %c0_168 = arith.constant 0 : index
    %c0_169 = arith.constant 0 : index
    %415 = vector.load %arg23[%c0_168, %c0_169] : memref<1x4xf32, #tpu.memory_space<vmem>>, vector<1x4xf32>
    %416 = vector.broadcast %415 : vector<1x4xf32> to vector<8x4xf32>
    %417 = arith.addf %414, %416 : vector<8x4xf32>
    %c0_170 = arith.constant 0 : index
    %c0_171 = arith.constant 0 : index
    %418 = vector.load %arg26[%c0_170, %c0_171] : memref<1x4xf32, #tpu.memory_space<vmem>>, vector<1x4xf32>
    %419 = vector.broadcast %418 : vector<1x4xf32> to vector<8x4xf32>
    %420 = arith.addf %417, %419 : vector<8x4xf32>
    %421 = math.tanh %420 : vector<8x4xf32>
    %c0_172 = arith.constant 0 : index
    %c0_173 = arith.constant 0 : index
    %422 = vector.load %arg24[%c0_172, %c0_173] : memref<1x4xf32, #tpu.memory_space<vmem>>, vector<1x4xf32>
    %423 = vector.broadcast %422 : vector<1x4xf32> to vector<8x4xf32>
    %424 = arith.mulf %421, %423 : vector<8x4xf32>
    %c0_174 = arith.constant 0 : index
    %c0_175 = arith.constant 0 : index
    %425 = vector.load %arg25[%c0_174, %c0_175] : memref<1x4xf32, #tpu.memory_space<vmem>>, vector<1x4xf32>
    %426 = vector.broadcast %425 : vector<1x4xf32> to vector<8x4xf32>
    %427 = arith.subf %424, %426 : vector<8x4xf32>
    %428 = math.roundeven %427 : vector<8x4xf32>
    %c0_176 = arith.constant 0 : index
    %c0_177 = arith.constant 0 : index
    %429 = vector.load %arg28[%c0_176, %c0_177] : memref<1x4xf32, #tpu.memory_space<vmem>>, vector<1x4xf32>
    %430 = vector.broadcast %429 : vector<1x4xf32> to vector<8x4xf32>
    %431 = arith.mulf %428, %430 : vector<8x4xf32>
    %c0_178 = arith.constant 0 : index
    %c0_179 = arith.constant 0 : index
    %432 = vector.load %arg37[%c0_178, %c0_179] : memref<8x4xf32, #tpu.memory_space<vmem>>, vector<8x4xf32>
    tpu.vector_store %arg37[%c0_178, %c0_179], %431 {strides = array<i32>} : memref<8x4xf32, #tpu.memory_space<vmem>>, vector<8x4xf32>,
    %c0_180 = arith.constant 0 : index
    %c0_181 = arith.constant 0 : index
    %433 = vector.load %arg27[%c0_180, %c0_181] : memref<1x4xf32, #tpu.memory_space<vmem>>, vector<1x4xf32>
    %434 = vector.broadcast %433 : vector<1x4xf32> to vector<8x4xf32>
    %435 = arith.mulf %431, %434 : vector<8x4xf32>
    %c0_182 = arith.constant 0 : index
    %c0_183 = arith.constant 0 : index
    %436 = vector.load %arg27[%c0_182, %c0_183] : memref<1x4xf32, #tpu.memory_space<vmem>>, vector<1x4xf32>
    %437 = vector.broadcast %436 : vector<1x4xf32> to vector<8x4xf32>
    %438 = arith.addf %435, %437 : vector<8x4xf32>
    %c0_184 = arith.constant 0 : index
    %c0_185 = arith.constant 0 : index
    %439 = vector.load %arg29[%c0_184, %c0_185] : memref<1x4xf32, #tpu.memory_space<vmem>>, vector<1x4xf32>
    %440 = vector.broadcast %439 : vector<1x4xf32> to vector<8x4xf32>
    %441 = arith.mulf %438, %440 : vector<8x4xf32>
    %cst_186 = arith.constant dense<0.000000e+00> : vector<8xf32>
    %442 = vector.multi_reduction <add>, %441, %cst_186 [1] : vector<8x4xf32> to vector<8xf32>
    %443 = vector.shape_cast %442 : vector<8xf32> to vector<8x1xf32>
    %444 = math.roundeven %443 : vector<8x1xf32>
    %445 = arith.fptosi %444 : vector<8x1xf32> to vector<8x1xi32>
    %c0_187 = arith.constant 0 : index
    %c0_188 = arith.constant 0 : index
    %446 = vector.load %arg38[%c0_187, %c0_188] : memref<8x1xi32, #tpu.memory_space<vmem>>, vector<8x1xi32>
    tpu.vector_store %arg38[%c0_187, %c0_188], %445 {strides = array<i32>} : memref<8x1xi32, #tpu.memory_space<vmem>>, vector<8x1xi32>,
    %c0_189 = arith.constant 0 : index
    %c0_190 = arith.constant 0 : index
    %447 = vector.load %arg30[%c0_189, %c0_190] : memref<4x32xf32, #tpu.memory_space<vmem>>, vector<4x32xf32>
    %cst_191 = arith.constant dense<0.000000e+00> : vector<8x32xf32>
    %448 = tpu.matmul %431, %447, %cst_191 {dimension_numbers = #tpu.dot_dimension_numbers<[1], [0], [0], [1], [0, 0, 1, 1], [], []>} : vector<8x4xf32>, vector<4x32xf32>, vector<8x32xf32> -> vector<8x32xf32>
    %c0_192 = arith.constant 0 : index
    %c0_193 = arith.constant 0 : index
    %449 = vector.load %arg31[%c0_192, %c0_193] : memref<1x32xf32, #tpu.memory_space<vmem>>, vector<1x32xf32>
    %450 = vector.broadcast %449 : vector<1x32xf32> to vector<8x32xf32>
    %451 = arith.addf %448, %450 : vector<8x32xf32>
    %c0_194 = arith.constant 0 : index
    %c0_195 = arith.constant 0 : index
    %452 = vector.load %arg7[%c0_194, %c0_195] : memref<1x32xf32, #tpu.memory_space<vmem>>, vector<1x32xf32>
    %453 = vector.shape_cast %452 : vector<1x32xf32> to vector<1x32xf32>
    %454 = vector.broadcast %453 : vector<1x32xf32> to vector<8x32xf32>
    %455 = tpu.concatenate %454, %451 in 0 : vector<8x32xf32>, vector<8x32xf32> -> vector<16x32xf32>
    %c0_196 = arith.constant 0 : index
    %c0_197 = arith.constant 0 : index
    %456 = vector.load %arg6[%c0_196, %c0_197] : memref<16x32xf32, #tpu.memory_space<vmem>>, vector<16x32xf32>
    %457 = arith.addf %455, %456 : vector<16x32xf32>
    %c2 = arith.constant 2 : index
    %c0_198 = arith.constant 0 : index
    %c0_199 = arith.constant 0 : index
    %458 = vector.load %arg8[%c2, %c0_198, %c0_199] : memref<4x1x32xf32, #tpu.memory_space<vmem>>, vector<1x1x32xf32>
    %459 = vector.shape_cast %458 : vector<1x1x32xf32> to vector<1x32xf32>
    %c2_200 = arith.constant 2 : index
    %c0_201 = arith.constant 0 : index
    %c0_202 = arith.constant 0 : index
    %460 = vector.load %arg9[%c2_200, %c0_201, %c0_202] : memref<4x1x32xf32, #tpu.memory_space<vmem>>, vector<1x1x32xf32>
    %461 = vector.shape_cast %460 : vector<1x1x32xf32> to vector<1x32xf32>
    %cst_203 = arith.constant dense<0.000000e+00> : vector<16xf32>
    %462 = vector.multi_reduction <add>, %457, %cst_203 [1] : vector<16x32xf32> to vector<16xf32>
    %463 = vector.shape_cast %462 : vector<16xf32> to vector<16x1xf32>
    %cst_204 = arith.constant 3.200000e+01 : f32
    %464 = vector.broadcast %cst_204 : f32 to vector<16x1xf32>
    %465 = arith.divf %463, %464 : vector<16x1xf32>
    %466 = vector.broadcast %465 : vector<16x1xf32> to vector<16x32xf32>
    %467 = arith.subf %457, %466 : vector<16x32xf32>
    %468 = arith.mulf %467, %467 : vector<16x32xf32>
    %cst_205 = arith.constant dense<0.000000e+00> : vector<16xf32>
    %469 = vector.multi_reduction <add>, %468, %cst_205 [1] : vector<16x32xf32> to vector<16xf32>
    %470 = vector.shape_cast %469 : vector<16xf32> to vector<16x1xf32>
    %cst_206 = arith.constant 3.200000e+01 : f32
    %471 = vector.broadcast %cst_206 : f32 to vector<16x1xf32>
    %472 = arith.divf %470, %471 : vector<16x1xf32>
    %473 = vector.broadcast %465 : vector<16x1xf32> to vector<16x32xf32>
    %474 = arith.subf %457, %473 : vector<16x32xf32>
    %cst_207 = arith.constant 9.99999974E-6 : f32
    %475 = vector.broadcast %cst_207 : f32 to vector<16x1xf32>
    %476 = arith.addf %472, %475 : vector<16x1xf32>
    %477 = math.rsqrt %476 : vector<16x1xf32>
    %478 = vector.broadcast %477 : vector<16x1xf32> to vector<16x32xf32>
    %479 = arith.mulf %474, %478 : vector<16x32xf32>
    %480 = vector.broadcast %459 : vector<1x32xf32> to vector<16x32xf32>
    %481 = arith.mulf %479, %480 : vector<16x32xf32>
    %482 = vector.broadcast %461 : vector<1x32xf32> to vector<16x32xf32>
    %483 = arith.addf %481, %482 : vector<16x32xf32>
    %c2_208 = arith.constant 2 : index
    %c0_209 = arith.constant 0 : index
    %c0_210 = arith.constant 0 : index
    %484 = vector.load %arg10[%c2_208, %c0_209, %c0_210] : memref<4x32x96xf32, #tpu.memory_space<vmem>>, vector<1x32x96xf32>
    %485 = vector.shape_cast %484 : vector<1x32x96xf32> to vector<32x96xf32>
    %486 = arith.truncf %483 : vector<16x32xf32> to vector<16x32xbf16>
    %487 = arith.truncf %485 : vector<32x96xf32> to vector<32x96xbf16>
    %cst_211 = arith.constant dense<0.000000e+00> : vector<16x96xf32>
    %488 = tpu.matmul %486, %487, %cst_211 {dimension_numbers = #tpu.dot_dimension_numbers<[1], [0], [0], [1], [0, 0, 1, 1], [], []>} : vector<16x32xbf16>, vector<32x96xbf16>, vector<16x96xf32> -> vector<16x96xf32>
    %c2_212 = arith.constant 2 : index
    %c0_213 = arith.constant 0 : index
    %c0_214 = arith.constant 0 : index
    %489 = vector.load %arg11[%c2_212, %c0_213, %c0_214] : memref<4x1x96xf32, #tpu.memory_space<vmem>>, vector<1x1x96xf32>
    %490 = vector.shape_cast %489 : vector<1x1x96xf32> to vector<1x96xf32>
    %491 = vector.broadcast %490 : vector<1x96xf32> to vector<16x96xf32>
    %492 = arith.addf %488, %491 : vector<16x96xf32>
    %493 = vector.extract_strided_slice %492 {offsets = [0, 0], sizes = [16, 8], strides = [1, 1]} : vector<16x96xf32> to vector<16x8xf32>
    %494 = arith.truncf %493 : vector<16x8xf32> to vector<16x8xbf16>
    %495 = vector.extract_strided_slice %492 {offsets = [0, 32], sizes = [16, 8], strides = [1, 1]} : vector<16x96xf32> to vector<16x8xf32>
    %496 = arith.truncf %495 : vector<16x8xf32> to vector<16x8xbf16>
    %497 = vector.extract_strided_slice %492 {offsets = [0, 64], sizes = [16, 8], strides = [1, 1]} : vector<16x96xf32> to vector<16x8xf32>
    %498 = arith.truncf %497 : vector<16x8xf32> to vector<16x8xbf16>
    %cst_215 = arith.constant dense<0.000000e+00> : vector<16x16xf32>
    %499 = tpu.matmul %494, %496, %cst_215 {dimension_numbers = #tpu.dot_dimension_numbers<[1], [1], [0], [0], [0, 0, 1, 0], [], []>} : vector<16x8xbf16>, vector<16x8xbf16>, vector<16x16xf32> -> vector<16x16xf32>
    %cst_216 = arith.constant 0.353553385 : f32
    %500 = vector.broadcast %cst_216 : f32 to vector<16x16xf32>
    %501 = arith.mulf %499, %500 : vector<16x16xf32>
    %cst_217 = arith.constant dense<0xFF800000> : vector<16xf32>
    %502 = vector.multi_reduction <maximumf>, %501, %cst_217 [1] : vector<16x16xf32> to vector<16xf32>
    %503 = vector.shape_cast %502 : vector<16xf32> to vector<16x1xf32>
    %504 = vector.broadcast %503 : vector<16x1xf32> to vector<16x16xf32>
    %505 = arith.subf %501, %504 : vector<16x16xf32>
    %506 = math.exp %505 : vector<16x16xf32>
    %cst_218 = arith.constant dense<0.000000e+00> : vector<16xf32>
    %507 = vector.multi_reduction <add>, %506, %cst_218 [1] : vector<16x16xf32> to vector<16xf32>
    %508 = vector.shape_cast %507 : vector<16xf32> to vector<16x1xf32>
    %509 = tpu.reciprocal %508 {approx = true} : vector<16x1xf32> -> vector<16x1xf32>
    %510 = vector.broadcast %509 : vector<16x1xf32> to vector<16x16xf32>
    %511 = arith.mulf %506, %510 : vector<16x16xf32>
    %512 = arith.truncf %511 : vector<16x16xf32> to vector<16x16xbf16>
    %cst_219 = arith.constant dense<0.000000e+00> : vector<16x8xf32>
    %513 = tpu.matmul %512, %498, %cst_219 {dimension_numbers = #tpu.dot_dimension_numbers<[1], [0], [0], [1], [0, 0, 1, 1], [], []>} : vector<16x16xbf16>, vector<16x8xbf16>, vector<16x8xf32> -> vector<16x8xf32>
    %514 = vector.extract_strided_slice %492 {offsets = [0, 8], sizes = [16, 8], strides = [1, 1]} : vector<16x96xf32> to vector<16x8xf32>
    %515 = arith.truncf %514 : vector<16x8xf32> to vector<16x8xbf16>
    %516 = vector.extract_strided_slice %492 {offsets = [0, 40], sizes = [16, 8], strides = [1, 1]} : vector<16x96xf32> to vector<16x8xf32>
    %517 = arith.truncf %516 : vector<16x8xf32> to vector<16x8xbf16>
    %518 = vector.extract_strided_slice %492 {offsets = [0, 72], sizes = [16, 8], strides = [1, 1]} : vector<16x96xf32> to vector<16x8xf32>
    %519 = arith.truncf %518 : vector<16x8xf32> to vector<16x8xbf16>
    %cst_220 = arith.constant dense<0.000000e+00> : vector<16x16xf32>
    %520 = tpu.matmul %515, %517, %cst_220 {dimension_numbers = #tpu.dot_dimension_numbers<[1], [1], [0], [0], [0, 0, 1, 0], [], []>} : vector<16x8xbf16>, vector<16x8xbf16>, vector<16x16xf32> -> vector<16x16xf32>
    %cst_221 = arith.constant 0.353553385 : f32
    %521 = vector.broadcast %cst_221 : f32 to vector<16x16xf32>
    %522 = arith.mulf %520, %521 : vector<16x16xf32>
    %cst_222 = arith.constant dense<0xFF800000> : vector<16xf32>
    %523 = vector.multi_reduction <maximumf>, %522, %cst_222 [1] : vector<16x16xf32> to vector<16xf32>
    %524 = vector.shape_cast %523 : vector<16xf32> to vector<16x1xf32>
    %525 = vector.broadcast %524 : vector<16x1xf32> to vector<16x16xf32>
    %526 = arith.subf %522, %525 : vector<16x16xf32>
    %527 = math.exp %526 : vector<16x16xf32>
    %cst_223 = arith.constant dense<0.000000e+00> : vector<16xf32>
    %528 = vector.multi_reduction <add>, %527, %cst_223 [1] : vector<16x16xf32> to vector<16xf32>
    %529 = vector.shape_cast %528 : vector<16xf32> to vector<16x1xf32>
    %530 = tpu.reciprocal %529 {approx = true} : vector<16x1xf32> -> vector<16x1xf32>
    %531 = vector.broadcast %530 : vector<16x1xf32> to vector<16x16xf32>
    %532 = arith.mulf %527, %531 : vector<16x16xf32>
    %533 = arith.truncf %532 : vector<16x16xf32> to vector<16x16xbf16>
    %cst_224 = arith.constant dense<0.000000e+00> : vector<16x8xf32>
    %534 = tpu.matmul %533, %519, %cst_224 {dimension_numbers = #tpu.dot_dimension_numbers<[1], [0], [0], [1], [0, 0, 1, 1], [], []>} : vector<16x16xbf16>, vector<16x8xbf16>, vector<16x8xf32> -> vector<16x8xf32>
    %535 = vector.extract_strided_slice %492 {offsets = [0, 16], sizes = [16, 8], strides = [1, 1]} : vector<16x96xf32> to vector<16x8xf32>
    %536 = arith.truncf %535 : vector<16x8xf32> to vector<16x8xbf16>
    %537 = vector.extract_strided_slice %492 {offsets = [0, 48], sizes = [16, 8], strides = [1, 1]} : vector<16x96xf32> to vector<16x8xf32>
    %538 = arith.truncf %537 : vector<16x8xf32> to vector<16x8xbf16>
    %539 = vector.extract_strided_slice %492 {offsets = [0, 80], sizes = [16, 8], strides = [1, 1]} : vector<16x96xf32> to vector<16x8xf32>
    %540 = arith.truncf %539 : vector<16x8xf32> to vector<16x8xbf16>
    %cst_225 = arith.constant dense<0.000000e+00> : vector<16x16xf32>
    %541 = tpu.matmul %536, %538, %cst_225 {dimension_numbers = #tpu.dot_dimension_numbers<[1], [1], [0], [0], [0, 0, 1, 0], [], []>} : vector<16x8xbf16>, vector<16x8xbf16>, vector<16x16xf32> -> vector<16x16xf32>
    %cst_226 = arith.constant 0.353553385 : f32
    %542 = vector.broadcast %cst_226 : f32 to vector<16x16xf32>
    %543 = arith.mulf %541, %542 : vector<16x16xf32>
    %cst_227 = arith.constant dense<0xFF800000> : vector<16xf32>
    %544 = vector.multi_reduction <maximumf>, %543, %cst_227 [1] : vector<16x16xf32> to vector<16xf32>
    %545 = vector.shape_cast %544 : vector<16xf32> to vector<16x1xf32>
    %546 = vector.broadcast %545 : vector<16x1xf32> to vector<16x16xf32>
    %547 = arith.subf %543, %546 : vector<16x16xf32>
    %548 = math.exp %547 : vector<16x16xf32>
    %cst_228 = arith.constant dense<0.000000e+00> : vector<16xf32>
    %549 = vector.multi_reduction <add>, %548, %cst_228 [1] : vector<16x16xf32> to vector<16xf32>
    %550 = vector.shape_cast %549 : vector<16xf32> to vector<16x1xf32>
    %551 = tpu.reciprocal %550 {approx = true} : vector<16x1xf32> -> vector<16x1xf32>
    %552 = vector.broadcast %551 : vector<16x1xf32> to vector<16x16xf32>
    %553 = arith.mulf %548, %552 : vector<16x16xf32>
    %554 = arith.truncf %553 : vector<16x16xf32> to vector<16x16xbf16>
    %cst_229 = arith.constant dense<0.000000e+00> : vector<16x8xf32>
    %555 = tpu.matmul %554, %540, %cst_229 {dimension_numbers = #tpu.dot_dimension_numbers<[1], [0], [0], [1], [0, 0, 1, 1], [], []>} : vector<16x16xbf16>, vector<16x8xbf16>, vector<16x8xf32> -> vector<16x8xf32>
    %556 = vector.extract_strided_slice %492 {offsets = [0, 24], sizes = [16, 8], strides = [1, 1]} : vector<16x96xf32> to vector<16x8xf32>
    %557 = arith.truncf %556 : vector<16x8xf32> to vector<16x8xbf16>
    %558 = vector.extract_strided_slice %492 {offsets = [0, 56], sizes = [16, 8], strides = [1, 1]} : vector<16x96xf32> to vector<16x8xf32>
    %559 = arith.truncf %558 : vector<16x8xf32> to vector<16x8xbf16>
    %560 = vector.extract_strided_slice %492 {offsets = [0, 88], sizes = [16, 8], strides = [1, 1]} : vector<16x96xf32> to vector<16x8xf32>
    %561 = arith.truncf %560 : vector<16x8xf32> to vector<16x8xbf16>
    %cst_230 = arith.constant dense<0.000000e+00> : vector<16x16xf32>
    %562 = tpu.matmul %557, %559, %cst_230 {dimension_numbers = #tpu.dot_dimension_numbers<[1], [1], [0], [0], [0, 0, 1, 0], [], []>} : vector<16x8xbf16>, vector<16x8xbf16>, vector<16x16xf32> -> vector<16x16xf32>
    %cst_231 = arith.constant 0.353553385 : f32
    %563 = vector.broadcast %cst_231 : f32 to vector<16x16xf32>
    %564 = arith.mulf %562, %563 : vector<16x16xf32>
    %cst_232 = arith.constant dense<0xFF800000> : vector<16xf32>
    %565 = vector.multi_reduction <maximumf>, %564, %cst_232 [1] : vector<16x16xf32> to vector<16xf32>
    %566 = vector.shape_cast %565 : vector<16xf32> to vector<16x1xf32>
    %567 = vector.broadcast %566 : vector<16x1xf32> to vector<16x16xf32>
    %568 = arith.subf %564, %567 : vector<16x16xf32>
    %569 = math.exp %568 : vector<16x16xf32>
    %cst_233 = arith.constant dense<0.000000e+00> : vector<16xf32>
    %570 = vector.multi_reduction <add>, %569, %cst_233 [1] : vector<16x16xf32> to vector<16xf32>
    %571 = vector.shape_cast %570 : vector<16xf32> to vector<16x1xf32>
    %572 = tpu.reciprocal %571 {approx = true} : vector<16x1xf32> -> vector<16x1xf32>
    %573 = vector.broadcast %572 : vector<16x1xf32> to vector<16x16xf32>
    %574 = arith.mulf %569, %573 : vector<16x16xf32>
    %575 = arith.truncf %574 : vector<16x16xf32> to vector<16x16xbf16>
    %cst_234 = arith.constant dense<0.000000e+00> : vector<16x8xf32>
    %576 = tpu.matmul %575, %561, %cst_234 {dimension_numbers = #tpu.dot_dimension_numbers<[1], [0], [0], [1], [0, 0, 1, 1], [], []>} : vector<16x16xbf16>, vector<16x8xbf16>, vector<16x8xf32> -> vector<16x8xf32>
    %577 = tpu.concatenate %513, %534, %555, %576 in 1 : vector<16x8xf32>, vector<16x8xf32>, vector<16x8xf32>, vector<16x8xf32> -> vector<16x32xf32>
    %c2_235 = arith.constant 2 : index
    %c0_236 = arith.constant 0 : index
    %c0_237 = arith.constant 0 : index
    %578 = vector.load %arg12[%c2_235, %c0_236, %c0_237] : memref<4x32x32xf32, #tpu.memory_space<vmem>>, vector<1x32x32xf32>
    %579 = vector.shape_cast %578 : vector<1x32x32xf32> to vector<32x32xf32>
    %580 = arith.truncf %577 : vector<16x32xf32> to vector<16x32xbf16>
    %581 = arith.truncf %579 : vector<32x32xf32> to vector<32x32xbf16>
    %cst_238 = arith.constant dense<0.000000e+00> : vector<16x32xf32>
    %582 = tpu.matmul %580, %581, %cst_238 {dimension_numbers = #tpu.dot_dimension_numbers<[1], [0], [0], [1], [0, 0, 1, 1], [], []>} : vector<16x32xbf16>, vector<32x32xbf16>, vector<16x32xf32> -> vector<16x32xf32>
    %583 = arith.addf %457, %582 : vector<16x32xf32>
    %c2_239 = arith.constant 2 : index
    %c0_240 = arith.constant 0 : index
    %c0_241 = arith.constant 0 : index
    %584 = vector.load %arg13[%c2_239, %c0_240, %c0_241] : memref<4x1x32xf32, #tpu.memory_space<vmem>>, vector<1x1x32xf32>
    %585 = vector.shape_cast %584 : vector<1x1x32xf32> to vector<1x32xf32>
    %586 = vector.broadcast %585 : vector<1x32xf32> to vector<16x32xf32>
    %587 = arith.addf %583, %586 : vector<16x32xf32>
    %c2_242 = arith.constant 2 : index
    %c0_243 = arith.constant 0 : index
    %c0_244 = arith.constant 0 : index
    %588 = vector.load %arg14[%c2_242, %c0_243, %c0_244] : memref<4x1x32xf32, #tpu.memory_space<vmem>>, vector<1x1x32xf32>
    %589 = vector.shape_cast %588 : vector<1x1x32xf32> to vector<1x32xf32>
    %c2_245 = arith.constant 2 : index
    %c0_246 = arith.constant 0 : index
    %c0_247 = arith.constant 0 : index
    %590 = vector.load %arg15[%c2_245, %c0_246, %c0_247] : memref<4x1x32xf32, #tpu.memory_space<vmem>>, vector<1x1x32xf32>
    %591 = vector.shape_cast %590 : vector<1x1x32xf32> to vector<1x32xf32>
    %cst_248 = arith.constant dense<0.000000e+00> : vector<16xf32>
    %592 = vector.multi_reduction <add>, %587, %cst_248 [1] : vector<16x32xf32> to vector<16xf32>
    %593 = vector.shape_cast %592 : vector<16xf32> to vector<16x1xf32>
    %cst_249 = arith.constant 3.200000e+01 : f32
    %594 = vector.broadcast %cst_249 : f32 to vector<16x1xf32>
    %595 = arith.divf %593, %594 : vector<16x1xf32>
    %596 = vector.broadcast %595 : vector<16x1xf32> to vector<16x32xf32>
    %597 = arith.subf %587, %596 : vector<16x32xf32>
    %598 = arith.mulf %597, %597 : vector<16x32xf32>
    %cst_250 = arith.constant dense<0.000000e+00> : vector<16xf32>
    %599 = vector.multi_reduction <add>, %598, %cst_250 [1] : vector<16x32xf32> to vector<16xf32>
    %600 = vector.shape_cast %599 : vector<16xf32> to vector<16x1xf32>
    %cst_251 = arith.constant 3.200000e+01 : f32
    %601 = vector.broadcast %cst_251 : f32 to vector<16x1xf32>
    %602 = arith.divf %600, %601 : vector<16x1xf32>
    %603 = vector.broadcast %595 : vector<16x1xf32> to vector<16x32xf32>
    %604 = arith.subf %587, %603 : vector<16x32xf32>
    %cst_252 = arith.constant 9.99999974E-6 : f32
    %605 = vector.broadcast %cst_252 : f32 to vector<16x1xf32>
    %606 = arith.addf %602, %605 : vector<16x1xf32>
    %607 = math.rsqrt %606 : vector<16x1xf32>
    %608 = vector.broadcast %607 : vector<16x1xf32> to vector<16x32xf32>
    %609 = arith.mulf %604, %608 : vector<16x32xf32>
    %610 = vector.broadcast %589 : vector<1x32xf32> to vector<16x32xf32>
    %611 = arith.mulf %609, %610 : vector<16x32xf32>
    %612 = vector.broadcast %591 : vector<1x32xf32> to vector<16x32xf32>
    %613 = arith.addf %611, %612 : vector<16x32xf32>
    %c2_253 = arith.constant 2 : index
    %c0_254 = arith.constant 0 : index
    %c0_255 = arith.constant 0 : index
    %614 = vector.load %arg16[%c2_253, %c0_254, %c0_255] : memref<4x32x128xf32, #tpu.memory_space<vmem>>, vector<1x32x128xf32>
    %615 = vector.shape_cast %614 : vector<1x32x128xf32> to vector<32x128xf32>
    %616 = arith.truncf %613 : vector<16x32xf32> to vector<16x32xbf16>
    %617 = arith.truncf %615 : vector<32x128xf32> to vector<32x128xbf16>
    %cst_256 = arith.constant dense<0.000000e+00> : vector<16x128xf32>
    %618 = tpu.matmul %616, %617, %cst_256 {dimension_numbers = #tpu.dot_dimension_numbers<[1], [0], [0], [1], [0, 0, 1, 1], [], []>} : vector<16x32xbf16>, vector<32x128xbf16>, vector<16x128xf32> -> vector<16x128xf32>
    %c2_257 = arith.constant 2 : index
    %c0_258 = arith.constant 0 : index
    %c0_259 = arith.constant 0 : index
    %619 = vector.load %arg17[%c2_257, %c0_258, %c0_259] : memref<4x1x128xf32, #tpu.memory_space<vmem>>, vector<1x1x128xf32>
    %620 = vector.shape_cast %619 : vector<1x1x128xf32> to vector<1x128xf32>
    %621 = vector.broadcast %620 : vector<1x128xf32> to vector<16x128xf32>
    %622 = arith.addf %618, %621 : vector<16x128xf32>
    %cst_260 = arith.constant 5.000000e-01 : f32
    %623 = vector.broadcast %cst_260 : f32 to vector<16x128xf32>
    %624 = arith.mulf %623, %622 : vector<16x128xf32>
    %cst_261 = arith.constant 4.471500e-02 : f32
    %625 = vector.broadcast %cst_261 : f32 to vector<16x128xf32>
    %626 = arith.mulf %625, %622 : vector<16x128xf32>
    %627 = arith.mulf %626, %622 : vector<16x128xf32>
    %628 = arith.mulf %627, %622 : vector<16x128xf32>
    %629 = arith.addf %622, %628 : vector<16x128xf32>
    %cst_262 = arith.constant 0.797884583 : f32
    %630 = vector.broadcast %cst_262 : f32 to vector<16x128xf32>
    %631 = arith.mulf %630, %629 : vector<16x128xf32>
    %632 = math.tanh %631 : vector<16x128xf32>
    %cst_263 = arith.constant 1.000000e+00 : f32
    %633 = vector.broadcast %cst_263 : f32 to vector<16x128xf32>
    %634 = arith.addf %633, %632 : vector<16x128xf32>
    %635 = arith.mulf %624, %634 : vector<16x128xf32>
    %c2_264 = arith.constant 2 : index
    %c0_265 = arith.constant 0 : index
    %c0_266 = arith.constant 0 : index
    %636 = vector.load %arg18[%c2_264, %c0_265, %c0_266] : memref<4x128x32xf32, #tpu.memory_space<vmem>>, vector<1x128x32xf32>
    %637 = vector.shape_cast %636 : vector<1x128x32xf32> to vector<128x32xf32>
    %638 = arith.truncf %635 : vector<16x128xf32> to vector<16x128xbf16>
    %639 = arith.truncf %637 : vector<128x32xf32> to vector<128x32xbf16>
    %cst_267 = arith.constant dense<0.000000e+00> : vector<16x32xf32>
    %640 = tpu.matmul %638, %639, %cst_267 {dimension_numbers = #tpu.dot_dimension_numbers<[1], [0], [0], [1], [0, 0, 1, 1], [], []>} : vector<16x128xbf16>, vector<128x32xbf16>, vector<16x32xf32> -> vector<16x32xf32>
    %641 = arith.addf %587, %640 : vector<16x32xf32>
    %c2_268 = arith.constant 2 : index
    %c0_269 = arith.constant 0 : index
    %c0_270 = arith.constant 0 : index
    %642 = vector.load %arg19[%c2_268, %c0_269, %c0_270] : memref<4x1x32xf32, #tpu.memory_space<vmem>>, vector<1x1x32xf32>
    %643 = vector.shape_cast %642 : vector<1x1x32xf32> to vector<1x32xf32>
    %644 = vector.broadcast %643 : vector<1x32xf32> to vector<16x32xf32>
    %645 = arith.addf %641, %644 : vector<16x32xf32>
    %c3 = arith.constant 3 : index
    %c0_271 = arith.constant 0 : index
    %c0_272 = arith.constant 0 : index
    %646 = vector.load %arg8[%c3, %c0_271, %c0_272] : memref<4x1x32xf32, #tpu.memory_space<vmem>>, vector<1x1x32xf32>
    %647 = vector.shape_cast %646 : vector<1x1x32xf32> to vector<1x32xf32>
    %c3_273 = arith.constant 3 : index
    %c0_274 = arith.constant 0 : index
    %c0_275 = arith.constant 0 : index
    %648 = vector.load %arg9[%c3_273, %c0_274, %c0_275] : memref<4x1x32xf32, #tpu.memory_space<vmem>>, vector<1x1x32xf32>
    %649 = vector.shape_cast %648 : vector<1x1x32xf32> to vector<1x32xf32>
    %cst_276 = arith.constant dense<0.000000e+00> : vector<16xf32>
    %650 = vector.multi_reduction <add>, %645, %cst_276 [1] : vector<16x32xf32> to vector<16xf32>
    %651 = vector.shape_cast %650 : vector<16xf32> to vector<16x1xf32>
    %cst_277 = arith.constant 3.200000e+01 : f32
    %652 = vector.broadcast %cst_277 : f32 to vector<16x1xf32>
    %653 = arith.divf %651, %652 : vector<16x1xf32>
    %654 = vector.broadcast %653 : vector<16x1xf32> to vector<16x32xf32>
    %655 = arith.subf %645, %654 : vector<16x32xf32>
    %656 = arith.mulf %655, %655 : vector<16x32xf32>
    %cst_278 = arith.constant dense<0.000000e+00> : vector<16xf32>
    %657 = vector.multi_reduction <add>, %656, %cst_278 [1] : vector<16x32xf32> to vector<16xf32>
    %658 = vector.shape_cast %657 : vector<16xf32> to vector<16x1xf32>
    %cst_279 = arith.constant 3.200000e+01 : f32
    %659 = vector.broadcast %cst_279 : f32 to vector<16x1xf32>
    %660 = arith.divf %658, %659 : vector<16x1xf32>
    %661 = vector.broadcast %653 : vector<16x1xf32> to vector<16x32xf32>
    %662 = arith.subf %645, %661 : vector<16x32xf32>
    %cst_280 = arith.constant 9.99999974E-6 : f32
    %663 = vector.broadcast %cst_280 : f32 to vector<16x1xf32>
    %664 = arith.addf %660, %663 : vector<16x1xf32>
    %665 = math.rsqrt %664 : vector<16x1xf32>
    %666 = vector.broadcast %665 : vector<16x1xf32> to vector<16x32xf32>
    %667 = arith.mulf %662, %666 : vector<16x32xf32>
    %668 = vector.broadcast %647 : vector<1x32xf32> to vector<16x32xf32>
    %669 = arith.mulf %667, %668 : vector<16x32xf32>
    %670 = vector.broadcast %649 : vector<1x32xf32> to vector<16x32xf32>
    %671 = arith.addf %669, %670 : vector<16x32xf32>
    %c3_281 = arith.constant 3 : index
    %c0_282 = arith.constant 0 : index
    %c0_283 = arith.constant 0 : index
    %672 = vector.load %arg10[%c3_281, %c0_282, %c0_283] : memref<4x32x96xf32, #tpu.memory_space<vmem>>, vector<1x32x96xf32>
    %673 = vector.shape_cast %672 : vector<1x32x96xf32> to vector<32x96xf32>
    %674 = arith.truncf %671 : vector<16x32xf32> to vector<16x32xbf16>
    %675 = arith.truncf %673 : vector<32x96xf32> to vector<32x96xbf16>
    %cst_284 = arith.constant dense<0.000000e+00> : vector<16x96xf32>
    %676 = tpu.matmul %674, %675, %cst_284 {dimension_numbers = #tpu.dot_dimension_numbers<[1], [0], [0], [1], [0, 0, 1, 1], [], []>} : vector<16x32xbf16>, vector<32x96xbf16>, vector<16x96xf32> -> vector<16x96xf32>
    %c3_285 = arith.constant 3 : index
    %c0_286 = arith.constant 0 : index
    %c0_287 = arith.constant 0 : index
    %677 = vector.load %arg11[%c3_285, %c0_286, %c0_287] : memref<4x1x96xf32, #tpu.memory_space<vmem>>, vector<1x1x96xf32>
    %678 = vector.shape_cast %677 : vector<1x1x96xf32> to vector<1x96xf32>
    %679 = vector.broadcast %678 : vector<1x96xf32> to vector<16x96xf32>
    %680 = arith.addf %676, %679 : vector<16x96xf32>
    %681 = vector.extract_strided_slice %680 {offsets = [0, 0], sizes = [16, 8], strides = [1, 1]} : vector<16x96xf32> to vector<16x8xf32>
    %682 = arith.truncf %681 : vector<16x8xf32> to vector<16x8xbf16>
    %683 = vector.extract_strided_slice %680 {offsets = [0, 32], sizes = [16, 8], strides = [1, 1]} : vector<16x96xf32> to vector<16x8xf32>
    %684 = arith.truncf %683 : vector<16x8xf32> to vector<16x8xbf16>
    %685 = vector.extract_strided_slice %680 {offsets = [0, 64], sizes = [16, 8], strides = [1, 1]} : vector<16x96xf32> to vector<16x8xf32>
    %686 = arith.truncf %685 : vector<16x8xf32> to vector<16x8xbf16>
    %cst_288 = arith.constant dense<0.000000e+00> : vector<16x16xf32>
    %687 = tpu.matmul %682, %684, %cst_288 {dimension_numbers = #tpu.dot_dimension_numbers<[1], [1], [0], [0], [0, 0, 1, 0], [], []>} : vector<16x8xbf16>, vector<16x8xbf16>, vector<16x16xf32> -> vector<16x16xf32>
    %cst_289 = arith.constant 0.353553385 : f32
    %688 = vector.broadcast %cst_289 : f32 to vector<16x16xf32>
    %689 = arith.mulf %687, %688 : vector<16x16xf32>
    %cst_290 = arith.constant dense<0xFF800000> : vector<16xf32>
    %690 = vector.multi_reduction <maximumf>, %689, %cst_290 [1] : vector<16x16xf32> to vector<16xf32>
    %691 = vector.shape_cast %690 : vector<16xf32> to vector<16x1xf32>
    %692 = vector.broadcast %691 : vector<16x1xf32> to vector<16x16xf32>
    %693 = arith.subf %689, %692 : vector<16x16xf32>
    %694 = math.exp %693 : vector<16x16xf32>
    %cst_291 = arith.constant dense<0.000000e+00> : vector<16xf32>
    %695 = vector.multi_reduction <add>, %694, %cst_291 [1] : vector<16x16xf32> to vector<16xf32>
    %696 = vector.shape_cast %695 : vector<16xf32> to vector<16x1xf32>
    %697 = tpu.reciprocal %696 {approx = true} : vector<16x1xf32> -> vector<16x1xf32>
    %698 = vector.broadcast %697 : vector<16x1xf32> to vector<16x16xf32>
    %699 = arith.mulf %694, %698 : vector<16x16xf32>
    %700 = arith.truncf %699 : vector<16x16xf32> to vector<16x16xbf16>
    %cst_292 = arith.constant dense<0.000000e+00> : vector<16x8xf32>
    %701 = tpu.matmul %700, %686, %cst_292 {dimension_numbers = #tpu.dot_dimension_numbers<[1], [0], [0], [1], [0, 0, 1, 1], [], []>} : vector<16x16xbf16>, vector<16x8xbf16>, vector<16x8xf32> -> vector<16x8xf32>
    %702 = vector.extract_strided_slice %680 {offsets = [0, 8], sizes = [16, 8], strides = [1, 1]} : vector<16x96xf32> to vector<16x8xf32>
    %703 = arith.truncf %702 : vector<16x8xf32> to vector<16x8xbf16>
    %704 = vector.extract_strided_slice %680 {offsets = [0, 40], sizes = [16, 8], strides = [1, 1]} : vector<16x96xf32> to vector<16x8xf32>
    %705 = arith.truncf %704 : vector<16x8xf32> to vector<16x8xbf16>
    %706 = vector.extract_strided_slice %680 {offsets = [0, 72], sizes = [16, 8], strides = [1, 1]} : vector<16x96xf32> to vector<16x8xf32>
    %707 = arith.truncf %706 : vector<16x8xf32> to vector<16x8xbf16>
    %cst_293 = arith.constant dense<0.000000e+00> : vector<16x16xf32>
    %708 = tpu.matmul %703, %705, %cst_293 {dimension_numbers = #tpu.dot_dimension_numbers<[1], [1], [0], [0], [0, 0, 1, 0], [], []>} : vector<16x8xbf16>, vector<16x8xbf16>, vector<16x16xf32> -> vector<16x16xf32>
    %cst_294 = arith.constant 0.353553385 : f32
    %709 = vector.broadcast %cst_294 : f32 to vector<16x16xf32>
    %710 = arith.mulf %708, %709 : vector<16x16xf32>
    %cst_295 = arith.constant dense<0xFF800000> : vector<16xf32>
    %711 = vector.multi_reduction <maximumf>, %710, %cst_295 [1] : vector<16x16xf32> to vector<16xf32>
    %712 = vector.shape_cast %711 : vector<16xf32> to vector<16x1xf32>
    %713 = vector.broadcast %712 : vector<16x1xf32> to vector<16x16xf32>
    %714 = arith.subf %710, %713 : vector<16x16xf32>
    %715 = math.exp %714 : vector<16x16xf32>
    %cst_296 = arith.constant dense<0.000000e+00> : vector<16xf32>
    %716 = vector.multi_reduction <add>, %715, %cst_296 [1] : vector<16x16xf32> to vector<16xf32>
    %717 = vector.shape_cast %716 : vector<16xf32> to vector<16x1xf32>
    %718 = tpu.reciprocal %717 {approx = true} : vector<16x1xf32> -> vector<16x1xf32>
    %719 = vector.broadcast %718 : vector<16x1xf32> to vector<16x16xf32>
    %720 = arith.mulf %715, %719 : vector<16x16xf32>
    %721 = arith.truncf %720 : vector<16x16xf32> to vector<16x16xbf16>
    %cst_297 = arith.constant dense<0.000000e+00> : vector<16x8xf32>
    %722 = tpu.matmul %721, %707, %cst_297 {dimension_numbers = #tpu.dot_dimension_numbers<[1], [0], [0], [1], [0, 0, 1, 1], [], []>} : vector<16x16xbf16>, vector<16x8xbf16>, vector<16x8xf32> -> vector<16x8xf32>
    %723 = vector.extract_strided_slice %680 {offsets = [0, 16], sizes = [16, 8], strides = [1, 1]} : vector<16x96xf32> to vector<16x8xf32>
    %724 = arith.truncf %723 : vector<16x8xf32> to vector<16x8xbf16>
    %725 = vector.extract_strided_slice %680 {offsets = [0, 48], sizes = [16, 8], strides = [1, 1]} : vector<16x96xf32> to vector<16x8xf32>
    %726 = arith.truncf %725 : vector<16x8xf32> to vector<16x8xbf16>
    %727 = vector.extract_strided_slice %680 {offsets = [0, 80], sizes = [16, 8], strides = [1, 1]} : vector<16x96xf32> to vector<16x8xf32>
    %728 = arith.truncf %727 : vector<16x8xf32> to vector<16x8xbf16>
    %cst_298 = arith.constant dense<0.000000e+00> : vector<16x16xf32>
    %729 = tpu.matmul %724, %726, %cst_298 {dimension_numbers = #tpu.dot_dimension_numbers<[1], [1], [0], [0], [0, 0, 1, 0], [], []>} : vector<16x8xbf16>, vector<16x8xbf16>, vector<16x16xf32> -> vector<16x16xf32>
    %cst_299 = arith.constant 0.353553385 : f32
    %730 = vector.broadcast %cst_299 : f32 to vector<16x16xf32>
    %731 = arith.mulf %729, %730 : vector<16x16xf32>
    %cst_300 = arith.constant dense<0xFF800000> : vector<16xf32>
    %732 = vector.multi_reduction <maximumf>, %731, %cst_300 [1] : vector<16x16xf32> to vector<16xf32>
    %733 = vector.shape_cast %732 : vector<16xf32> to vector<16x1xf32>
    %734 = vector.broadcast %733 : vector<16x1xf32> to vector<16x16xf32>
    %735 = arith.subf %731, %734 : vector<16x16xf32>
    %736 = math.exp %735 : vector<16x16xf32>
    %cst_301 = arith.constant dense<0.000000e+00> : vector<16xf32>
    %737 = vector.multi_reduction <add>, %736, %cst_301 [1] : vector<16x16xf32> to vector<16xf32>
    %738 = vector.shape_cast %737 : vector<16xf32> to vector<16x1xf32>
    %739 = tpu.reciprocal %738 {approx = true} : vector<16x1xf32> -> vector<16x1xf32>
    %740 = vector.broadcast %739 : vector<16x1xf32> to vector<16x16xf32>
    %741 = arith.mulf %736, %740 : vector<16x16xf32>
    %742 = arith.truncf %741 : vector<16x16xf32> to vector<16x16xbf16>
    %cst_302 = arith.constant dense<0.000000e+00> : vector<16x8xf32>
    %743 = tpu.matmul %742, %728, %cst_302 {dimension_numbers = #tpu.dot_dimension_numbers<[1], [0], [0], [1], [0, 0, 1, 1], [], []>} : vector<16x16xbf16>, vector<16x8xbf16>, vector<16x8xf32> -> vector<16x8xf32>
    %744 = vector.extract_strided_slice %680 {offsets = [0, 24], sizes = [16, 8], strides = [1, 1]} : vector<16x96xf32> to vector<16x8xf32>
    %745 = arith.truncf %744 : vector<16x8xf32> to vector<16x8xbf16>
    %746 = vector.extract_strided_slice %680 {offsets = [0, 56], sizes = [16, 8], strides = [1, 1]} : vector<16x96xf32> to vector<16x8xf32>
    %747 = arith.truncf %746 : vector<16x8xf32> to vector<16x8xbf16>
    %748 = vector.extract_strided_slice %680 {offsets = [0, 88], sizes = [16, 8], strides = [1, 1]} : vector<16x96xf32> to vector<16x8xf32>
    %749 = arith.truncf %748 : vector<16x8xf32> to vector<16x8xbf16>
    %cst_303 = arith.constant dense<0.000000e+00> : vector<16x16xf32>
    %750 = tpu.matmul %745, %747, %cst_303 {dimension_numbers = #tpu.dot_dimension_numbers<[1], [1], [0], [0], [0, 0, 1, 0], [], []>} : vector<16x8xbf16>, vector<16x8xbf16>, vector<16x16xf32> -> vector<16x16xf32>
    %cst_304 = arith.constant 0.353553385 : f32
    %751 = vector.broadcast %cst_304 : f32 to vector<16x16xf32>
    %752 = arith.mulf %750, %751 : vector<16x16xf32>
    %cst_305 = arith.constant dense<0xFF800000> : vector<16xf32>
    %753 = vector.multi_reduction <maximumf>, %752, %cst_305 [1] : vector<16x16xf32> to vector<16xf32>
    %754 = vector.shape_cast %753 : vector<16xf32> to vector<16x1xf32>
    %755 = vector.broadcast %754 : vector<16x1xf32> to vector<16x16xf32>
    %756 = arith.subf %752, %755 : vector<16x16xf32>
    %757 = math.exp %756 : vector<16x16xf32>
    %cst_306 = arith.constant dense<0.000000e+00> : vector<16xf32>
    %758 = vector.multi_reduction <add>, %757, %cst_306 [1] : vector<16x16xf32> to vector<16xf32>
    %759 = vector.shape_cast %758 : vector<16xf32> to vector<16x1xf32>
    %760 = tpu.reciprocal %759 {approx = true} : vector<16x1xf32> -> vector<16x1xf32>
    %761 = vector.broadcast %760 : vector<16x1xf32> to vector<16x16xf32>
    %762 = arith.mulf %757, %761 : vector<16x16xf32>
    %763 = arith.truncf %762 : vector<16x16xf32> to vector<16x16xbf16>
    %cst_307 = arith.constant dense<0.000000e+00> : vector<16x8xf32>
    %764 = tpu.matmul %763, %749, %cst_307 {dimension_numbers = #tpu.dot_dimension_numbers<[1], [0], [0], [1], [0, 0, 1, 1], [], []>} : vector<16x16xbf16>, vector<16x8xbf16>, vector<16x8xf32> -> vector<16x8xf32>
    %765 = tpu.concatenate %701, %722, %743, %764 in 1 : vector<16x8xf32>, vector<16x8xf32>, vector<16x8xf32>, vector<16x8xf32> -> vector<16x32xf32>
    %c3_308 = arith.constant 3 : index
    %c0_309 = arith.constant 0 : index
    %c0_310 = arith.constant 0 : index
    %766 = vector.load %arg12[%c3_308, %c0_309, %c0_310] : memref<4x32x32xf32, #tpu.memory_space<vmem>>, vector<1x32x32xf32>
    %767 = vector.shape_cast %766 : vector<1x32x32xf32> to vector<32x32xf32>
    %768 = arith.truncf %765 : vector<16x32xf32> to vector<16x32xbf16>
    %769 = arith.truncf %767 : vector<32x32xf32> to vector<32x32xbf16>
    %cst_311 = arith.constant dense<0.000000e+00> : vector<16x32xf32>
    %770 = tpu.matmul %768, %769, %cst_311 {dimension_numbers = #tpu.dot_dimension_numbers<[1], [0], [0], [1], [0, 0, 1, 1], [], []>} : vector<16x32xbf16>, vector<32x32xbf16>, vector<16x32xf32> -> vector<16x32xf32>
    %771 = arith.addf %645, %770 : vector<16x32xf32>
    %c3_312 = arith.constant 3 : index
    %c0_313 = arith.constant 0 : index
    %c0_314 = arith.constant 0 : index
    %772 = vector.load %arg13[%c3_312, %c0_313, %c0_314] : memref<4x1x32xf32, #tpu.memory_space<vmem>>, vector<1x1x32xf32>
    %773 = vector.shape_cast %772 : vector<1x1x32xf32> to vector<1x32xf32>
    %774 = vector.broadcast %773 : vector<1x32xf32> to vector<16x32xf32>
    %775 = arith.addf %771, %774 : vector<16x32xf32>
    %c3_315 = arith.constant 3 : index
    %c0_316 = arith.constant 0 : index
    %c0_317 = arith.constant 0 : index
    %776 = vector.load %arg14[%c3_315, %c0_316, %c0_317] : memref<4x1x32xf32, #tpu.memory_space<vmem>>, vector<1x1x32xf32>
    %777 = vector.shape_cast %776 : vector<1x1x32xf32> to vector<1x32xf32>
    %c3_318 = arith.constant 3 : index
    %c0_319 = arith.constant 0 : index
    %c0_320 = arith.constant 0 : index
    %778 = vector.load %arg15[%c3_318, %c0_319, %c0_320] : memref<4x1x32xf32, #tpu.memory_space<vmem>>, vector<1x1x32xf32>
    %779 = vector.shape_cast %778 : vector<1x1x32xf32> to vector<1x32xf32>
    %cst_321 = arith.constant dense<0.000000e+00> : vector<16xf32>
    %780 = vector.multi_reduction <add>, %775, %cst_321 [1] : vector<16x32xf32> to vector<16xf32>
    %781 = vector.shape_cast %780 : vector<16xf32> to vector<16x1xf32>
    %cst_322 = arith.constant 3.200000e+01 : f32
    %782 = vector.broadcast %cst_322 : f32 to vector<16x1xf32>
    %783 = arith.divf %781, %782 : vector<16x1xf32>
    %784 = vector.broadcast %783 : vector<16x1xf32> to vector<16x32xf32>
    %785 = arith.subf %775, %784 : vector<16x32xf32>
    %786 = arith.mulf %785, %785 : vector<16x32xf32>
    %cst_323 = arith.constant dense<0.000000e+00> : vector<16xf32>
    %787 = vector.multi_reduction <add>, %786, %cst_323 [1] : vector<16x32xf32> to vector<16xf32>
    %788 = vector.shape_cast %787 : vector<16xf32> to vector<16x1xf32>
    %cst_324 = arith.constant 3.200000e+01 : f32
    %789 = vector.broadcast %cst_324 : f32 to vector<16x1xf32>
    %790 = arith.divf %788, %789 : vector<16x1xf32>
    %791 = vector.broadcast %783 : vector<16x1xf32> to vector<16x32xf32>
    %792 = arith.subf %775, %791 : vector<16x32xf32>
    %cst_325 = arith.constant 9.99999974E-6 : f32
    %793 = vector.broadcast %cst_325 : f32 to vector<16x1xf32>
    %794 = arith.addf %790, %793 : vector<16x1xf32>
    %795 = math.rsqrt %794 : vector<16x1xf32>
    %796 = vector.broadcast %795 : vector<16x1xf32> to vector<16x32xf32>
    %797 = arith.mulf %792, %796 : vector<16x32xf32>
    %798 = vector.broadcast %777 : vector<1x32xf32> to vector<16x32xf32>
    %799 = arith.mulf %797, %798 : vector<16x32xf32>
    %800 = vector.broadcast %779 : vector<1x32xf32> to vector<16x32xf32>
    %801 = arith.addf %799, %800 : vector<16x32xf32>
    %c3_326 = arith.constant 3 : index
    %c0_327 = arith.constant 0 : index
    %c0_328 = arith.constant 0 : index
    %802 = vector.load %arg16[%c3_326, %c0_327, %c0_328] : memref<4x32x128xf32, #tpu.memory_space<vmem>>, vector<1x32x128xf32>
    %803 = vector.shape_cast %802 : vector<1x32x128xf32> to vector<32x128xf32>
    %804 = arith.truncf %801 : vector<16x32xf32> to vector<16x32xbf16>
    %805 = arith.truncf %803 : vector<32x128xf32> to vector<32x128xbf16>
    %cst_329 = arith.constant dense<0.000000e+00> : vector<16x128xf32>
    %806 = tpu.matmul %804, %805, %cst_329 {dimension_numbers = #tpu.dot_dimension_numbers<[1], [0], [0], [1], [0, 0, 1, 1], [], []>} : vector<16x32xbf16>, vector<32x128xbf16>, vector<16x128xf32> -> vector<16x128xf32>
    %c3_330 = arith.constant 3 : index
    %c0_331 = arith.constant 0 : index
    %c0_332 = arith.constant 0 : index
    %807 = vector.load %arg17[%c3_330, %c0_331, %c0_332] : memref<4x1x128xf32, #tpu.memory_space<vmem>>, vector<1x1x128xf32>
    %808 = vector.shape_cast %807 : vector<1x1x128xf32> to vector<1x128xf32>
    %809 = vector.broadcast %808 : vector<1x128xf32> to vector<16x128xf32>
    %810 = arith.addf %806, %809 : vector<16x128xf32>
    %cst_333 = arith.constant 5.000000e-01 : f32
    %811 = vector.broadcast %cst_333 : f32 to vector<16x128xf32>
    %812 = arith.mulf %811, %810 : vector<16x128xf32>
    %cst_334 = arith.constant 4.471500e-02 : f32
    %813 = vector.broadcast %cst_334 : f32 to vector<16x128xf32>
    %814 = arith.mulf %813, %810 : vector<16x128xf32>
    %815 = arith.mulf %814, %810 : vector<16x128xf32>
    %816 = arith.mulf %815, %810 : vector<16x128xf32>
    %817 = arith.addf %810, %816 : vector<16x128xf32>
    %cst_335 = arith.constant 0.797884583 : f32
    %818 = vector.broadcast %cst_335 : f32 to vector<16x128xf32>
    %819 = arith.mulf %818, %817 : vector<16x128xf32>
    %820 = math.tanh %819 : vector<16x128xf32>
    %cst_336 = arith.constant 1.000000e+00 : f32
    %821 = vector.broadcast %cst_336 : f32 to vector<16x128xf32>
    %822 = arith.addf %821, %820 : vector<16x128xf32>
    %823 = arith.mulf %812, %822 : vector<16x128xf32>
    %c3_337 = arith.constant 3 : index
    %c0_338 = arith.constant 0 : index
    %c0_339 = arith.constant 0 : index
    %824 = vector.load %arg18[%c3_337, %c0_338, %c0_339] : memref<4x128x32xf32, #tpu.memory_space<vmem>>, vector<1x128x32xf32>
    %825 = vector.shape_cast %824 : vector<1x128x32xf32> to vector<128x32xf32>
    %826 = arith.truncf %823 : vector<16x128xf32> to vector<16x128xbf16>
    %827 = arith.truncf %825 : vector<128x32xf32> to vector<128x32xbf16>
    %cst_340 = arith.constant dense<0.000000e+00> : vector<16x32xf32>
    %828 = tpu.matmul %826, %827, %cst_340 {dimension_numbers = #tpu.dot_dimension_numbers<[1], [0], [0], [1], [0, 0, 1, 1], [], []>} : vector<16x128xbf16>, vector<128x32xbf16>, vector<16x32xf32> -> vector<16x32xf32>
    %829 = arith.addf %775, %828 : vector<16x32xf32>
    %c3_341 = arith.constant 3 : index
    %c0_342 = arith.constant 0 : index
    %c0_343 = arith.constant 0 : index
    %830 = vector.load %arg19[%c3_341, %c0_342, %c0_343] : memref<4x1x32xf32, #tpu.memory_space<vmem>>, vector<1x1x32xf32>
    %831 = vector.shape_cast %830 : vector<1x1x32xf32> to vector<1x32xf32>
    %832 = vector.broadcast %831 : vector<1x32xf32> to vector<16x32xf32>
    %833 = arith.addf %829, %832 : vector<16x32xf32>
    %834 = vector.extract_strided_slice %833 {offsets = [0, 0], sizes = [8, 32], strides = [1, 1]} : vector<16x32xf32> to vector<8x32xf32>
    %c0_344 = arith.constant 0 : index
    %c0_345 = arith.constant 0 : index
    %835 = vector.load %arg32[%c0_344, %c0_345] : memref<1x32xf32, #tpu.memory_space<vmem>>, vector<1x32xf32>
    %c0_346 = arith.constant 0 : index
    %c0_347 = arith.constant 0 : index
    %836 = vector.load %arg33[%c0_346, %c0_347] : memref<1x32xf32, #tpu.memory_space<vmem>>, vector<1x32xf32>
    %cst_348 = arith.constant dense<0.000000e+00> : vector<8xf32>
    %837 = vector.multi_reduction <add>, %834, %cst_348 [1] : vector<8x32xf32> to vector<8xf32>
    %838 = vector.shape_cast %837 : vector<8xf32> to vector<8x1xf32>
    %cst_349 = arith.constant 3.200000e+01 : f32
    %839 = vector.broadcast %cst_349 : f32 to vector<8x1xf32>
    %840 = arith.divf %838, %839 : vector<8x1xf32>
    %841 = vector.broadcast %840 : vector<8x1xf32> to vector<8x32xf32>
    %842 = arith.subf %834, %841 : vector<8x32xf32>
    %843 = arith.mulf %842, %842 : vector<8x32xf32>
    %cst_350 = arith.constant dense<0.000000e+00> : vector<8xf32>
    %844 = vector.multi_reduction <add>, %843, %cst_350 [1] : vector<8x32xf32> to vector<8xf32>
    %845 = vector.shape_cast %844 : vector<8xf32> to vector<8x1xf32>
    %cst_351 = arith.constant 3.200000e+01 : f32
    %846 = vector.broadcast %cst_351 : f32 to vector<8x1xf32>
    %847 = arith.divf %845, %846 : vector<8x1xf32>
    %848 = vector.broadcast %840 : vector<8x1xf32> to vector<8x32xf32>
    %849 = arith.subf %834, %848 : vector<8x32xf32>
    %cst_352 = arith.constant 9.99999974E-6 : f32
    %850 = vector.broadcast %cst_352 : f32 to vector<8x1xf32>
    %851 = arith.addf %847, %850 : vector<8x1xf32>
    %852 = math.rsqrt %851 : vector<8x1xf32>
    %853 = vector.broadcast %852 : vector<8x1xf32> to vector<8x32xf32>
    %854 = arith.mulf %849, %853 : vector<8x32xf32>
    %855 = vector.broadcast %835 : vector<1x32xf32> to vector<8x32xf32>
    %856 = arith.mulf %854, %855 : vector<8x32xf32>
    %857 = vector.broadcast %836 : vector<1x32xf32> to vector<8x32xf32>
    %858 = arith.addf %856, %857 : vector<8x32xf32>
    %c0_353 = arith.constant 0 : index
    %c0_354 = arith.constant 0 : index
    %859 = vector.load %arg34[%c0_353, %c0_354] : memref<32x384xf32, #tpu.memory_space<vmem>>, vector<32x384xf32>
    %860 = arith.truncf %858 : vector<8x32xf32> to vector<8x32xbf16>
    %861 = arith.truncf %859 : vector<32x384xf32> to vector<32x384xbf16>
    %cst_355 = arith.constant dense<0.000000e+00> : vector<8x384xf32>
    %862 = tpu.matmul %860, %861, %cst_355 {dimension_numbers = #tpu.dot_dimension_numbers<[1], [0], [0], [1], [0, 0, 1, 1], [], []>} : vector<8x32xbf16>, vector<32x384xbf16>, vector<8x384xf32> -> vector<8x384xf32>
    %c0_356 = arith.constant 0 : index
    %c0_357 = arith.constant 0 : index
    %863 = vector.load %arg35[%c0_356, %c0_357] : memref<1x384xf32, #tpu.memory_space<vmem>>, vector<1x384xf32>
    %864 = vector.broadcast %863 : vector<1x384xf32> to vector<8x384xf32>
    %865 = arith.addf %862, %864 : vector<8x384xf32>
    %c0_358 = arith.constant 0 : index
    %c0_359 = arith.constant 0 : index
    %866 = vector.load %arg36[%c0_358, %c0_359] : memref<8x384xf32, #tpu.memory_space<vmem>>, vector<8x384xf32>
    tpu.vector_store %arg36[%c0_358, %c0_359], %865 {strides = array<i32>} : memref<8x384xf32, #tpu.memory_space<vmem>>, vector<8x384xf32>,
    return
  }
  func.func @transform_0(%arg0: i32) -> (i32, i32) {
    %c0_i32 = arith.constant 0 : i32
    %c0_i32_0 = arith.constant 0 : i32
    return %arg0, %c0_i32 : i32, i32
  }
  func.func @transform_1(%arg0: i32) -> (i32, i32) {
    %c0_i32 = arith.constant 0 : i32
    %c0_i32_0 = arith.constant 0 : i32
    %c0_i32_1 = arith.constant 0 : i32
    return %c0_i32, %c0_i32_0 : i32, i32
  }
  func.func @transform_2(%arg0: i32) -> (i32, i32) {
    %c0_i32 = arith.constant 0 : i32
    %c0_i32_0 = arith.constant 0 : i32
    %c0_i32_1 = arith.constant 0 : i32
    return %c0_i32, %c0_i32_0 : i32, i32
  }
  func.func @transform_3(%arg0: i32) -> (i32, i32) {
    %c0_i32 = arith.constant 0 : i32
    %c0_i32_0 = arith.constant 0 : i32
    %c0_i32_1 = arith.constant 0 : i32
    return %c0_i32, %c0_i32_0 : i32, i32
  }
  func.func @transform_4(%arg0: i32) -> (i32, i32) {
    %c0_i32 = arith.constant 0 : i32
    %c0_i32_0 = arith.constant 0 : i32
    %c0_i32_1 = arith.constant 0 : i32
    return %c0_i32, %c0_i32_0 : i32, i32
  }
  func.func @transform_5(%arg0: i32) -> (i32, i32) {
    %c0_i32 = arith.constant 0 : i32
    %c0_i32_0 = arith.constant 0 : i32
    %c0_i32_1 = arith.constant 0 : i32
    return %c0_i32, %c0_i32_0 : i32, i32
  }
  func.func @transform_6(%arg0: i32) -> (i32, i32) {
    %c0_i32 = arith.constant 0 : i32
    %c0_i32_0 = arith.constant 0 : i32
    %c0_i32_1 = arith.constant 0 : i32
    return %c0_i32, %c0_i32_0 : i32, i32
  }
  func.func @transform_7(%arg0: i32) -> (i32, i32, i32) {
    %c0_i32 = arith.constant 0 : i32
    %c0_i32_0 = arith.constant 0 : i32
    %c0_i32_1 = arith.constant 0 : i32
    %c0_i32_2 = arith.constant 0 : i32
    return %c0_i32, %c0_i32_0, %c0_i32_1 : i32, i32, i32
  }
  func.func @transform_8(%arg0: i32) -> (i32, i32, i32) {
    %c0_i32 = arith.constant 0 : i32
    %c0_i32_0 = arith.constant 0 : i32
    %c0_i32_1 = arith.constant 0 : i32
    %c0_i32_2 = arith.constant 0 : i32
    return %c0_i32, %c0_i32_0, %c0_i32_1 : i32, i32, i32
  }
  func.func @transform_9(%arg0: i32) -> (i32, i32, i32) {
    %c0_i32 = arith.constant 0 : i32
    %c0_i32_0 = arith.constant 0 : i32
    %c0_i32_1 = arith.constant 0 : i32
    %c0_i32_2 = arith.constant 0 : i32
    return %c0_i32, %c0_i32_0, %c0_i32_1 : i32, i32, i32
  }
  func.func @transform_10(%arg0: i32) -> (i32, i32, i32) {
    %c0_i32 = arith.constant 0 : i32
    %c0_i32_0 = arith.constant 0 : i32
    %c0_i32_1 = arith.constant 0 : i32
    %c0_i32_2 = arith.constant 0 : i32
    return %c0_i32, %c0_i32_0, %c0_i32_1 : i32, i32, i32
  }
  func.func @transform_11(%arg0: i32) -> (i32, i32, i32) {
    %c0_i32 = arith.constant 0 : i32
    %c0_i32_0 = arith.constant 0 : i32
    %c0_i32_1 = arith.constant 0 : i32
    %c0_i32_2 = arith.constant 0 : i32
    return %c0_i32, %c0_i32_0, %c0_i32_1 : i32, i32, i32
  }
  func.func @transform_12(%arg0: i32) -> (i32, i32, i32) {
    %c0_i32 = arith.constant 0 : i32
    %c0_i32_0 = arith.constant 0 : i32
    %c0_i32_1 = arith.constant 0 : i32
    %c0_i32_2 = arith.constant 0 : i32
    return %c0_i32, %c0_i32_0, %c0_i32_1 : i32, i32, i32
  }
  func.func @transform_13(%arg0: i32) -> (i32, i32, i32) {
    %c0_i32 = arith.constant 0 : i32
    %c0_i32_0 = arith.constant 0 : i32
    %c0_i32_1 = arith.constant 0 : i32
    %c0_i32_2 = arith.constant 0 : i32
    return %c0_i32, %c0_i32_0, %c0_i32_1 : i32, i32, i32
  }
  func.func @transform_14(%arg0: i32) -> (i32, i32, i32) {
    %c0_i32 = arith.constant 0 : i32
    %c0_i32_0 = arith.constant 0 : i32
    %c0_i32_1 = arith.constant 0 : i32
    %c0_i32_2 = arith.constant 0 : i32
    return %c0_i32, %c0_i32_0, %c0_i32_1 : i32, i32, i32
  }
  func.func @transform_15(%arg0: i32) -> (i32, i32, i32) {
    %c0_i32 = arith.constant 0 : i32
    %c0_i32_0 = arith.constant 0 : i32
    %c0_i32_1 = arith.constant 0 : i32
    %c0_i32_2 = arith.constant 0 : i32
    return %c0_i32, %c0_i32_0, %c0_i32_1 : i32, i32, i32
  }
  func.func @transform_16(%arg0: i32) -> (i32, i32, i32) {
    %c0_i32 = arith.constant 0 : i32
    %c0_i32_0 = arith.constant 0 : i32
    %c0_i32_1 = arith.constant 0 : i32
    %c0_i32_2 = arith.constant 0 : i32
    return %c0_i32, %c0_i32_0, %c0_i32_1 : i32, i32, i32
  }
  func.func @transform_17(%arg0: i32) -> (i32, i32, i32) {
    %c0_i32 = arith.constant 0 : i32
    %c0_i32_0 = arith.constant 0 : i32
    %c0_i32_1 = arith.constant 0 : i32
    %c0_i32_2 = arith.constant 0 : i32
    return %c0_i32, %c0_i32_0, %c0_i32_1 : i32, i32, i32
  }
  func.func @transform_18(%arg0: i32) -> (i32, i32, i32) {
    %c0_i32 = arith.constant 0 : i32
    %c0_i32_0 = arith.constant 0 : i32
    %c0_i32_1 = arith.constant 0 : i32
    %c0_i32_2 = arith.constant 0 : i32
    return %c0_i32, %c0_i32_0, %c0_i32_1 : i32, i32, i32
  }
  func.func @transform_19(%arg0: i32) -> (i32, i32) {
    %c0_i32 = arith.constant 0 : i32
    %c0_i32_0 = arith.constant 0 : i32
    %c0_i32_1 = arith.constant 0 : i32
    return %c0_i32, %c0_i32_0 : i32, i32
  }
  func.func @transform_20(%arg0: i32) -> (i32, i32) {
    %c0_i32 = arith.constant 0 : i32
    %c0_i32_0 = arith.constant 0 : i32
    %c0_i32_1 = arith.constant 0 : i32
    return %c0_i32, %c0_i32_0 : i32, i32
  }
  func.func @transform_21(%arg0: i32) -> (i32, i32) {
    %c0_i32 = arith.constant 0 : i32
    %c0_i32_0 = arith.constant 0 : i32
    %c0_i32_1 = arith.constant 0 : i32
    return %c0_i32, %c0_i32_0 : i32, i32
  }
  func.func @transform_22(%arg0: i32) -> (i32, i32) {
    %c0_i32 = arith.constant 0 : i32
    %c0_i32_0 = arith.constant 0 : i32
    %c0_i32_1 = arith.constant 0 : i32
    return %c0_i32, %c0_i32_0 : i32, i32
  }
  func.func @transform_23(%arg0: i32) -> (i32, i32) {
    %c0_i32 = arith.constant 0 : i32
    %c0_i32_0 = arith.constant 0 : i32
    %c0_i32_1 = arith.constant 0 : i32
    return %c0_i32, %c0_i32_0 : i32, i32
  }
  func.func @transform_24(%arg0: i32) -> (i32, i32) {
    %c0_i32 = arith.constant 0 : i32
    %c0_i32_0 = arith.constant 0 : i32
    %c0_i32_1 = arith.constant 0 : i32
    return %c0_i32, %c0_i32_0 : i32, i32
  }
  func.func @transform_25(%arg0: i32) -> (i32, i32) {
    %c0_i32 = arith.constant 0 : i32
    %c0_i32_0 = arith.constant 0 : i32
    %c0_i32_1 = arith.constant 0 : i32
    return %c0_i32, %c0_i32_0 : i32, i32
  }
  func.func @transform_26(%arg0: i32) -> (i32, i32) {
    %c0_i32 = arith.constant 0 : i32
    %c0_i32_0 = arith.constant 0 : i32
    %c0_i32_1 = arith.constant 0 : i32
    return %c0_i32, %c0_i32_0 : i32, i32
  }
  func.func @transform_27(%arg0: i32) -> (i32, i32) {
    %c0_i32 = arith.constant 0 : i32
    %c0_i32_0 = arith.constant 0 : i32
    %c0_i32_1 = arith.constant 0 : i32
    return %c0_i32, %c0_i32_0 : i32, i32
  }
  func.func @transform_28(%arg0: i32) -> (i32, i32) {
    %c0_i32 = arith.constant 0 : i32
    %c0_i32_0 = arith.constant 0 : i32
    %c0_i32_1 = arith.constant 0 : i32
    return %c0_i32, %c0_i32_0 : i32, i32
  }
  func.func @transform_29(%arg0: i32) -> (i32, i32) {
    %c0_i32 = arith.constant 0 : i32
    %c0_i32_0 = arith.constant 0 : i32
    %c0_i32_1 = arith.constant 0 : i32
    return %c0_i32, %c0_i32_0 : i32, i32
  }
  func.func @transform_30(%arg0: i32) -> (i32, i32) {
    %c0_i32 = arith.constant 0 : i32
    %c0_i32_0 = arith.constant 0 : i32
    %c0_i32_1 = arith.constant 0 : i32
    return %c0_i32, %c0_i32_0 : i32, i32
  }
  func.func @transform_31(%arg0: i32) -> (i32, i32) {
    %c0_i32 = arith.constant 0 : i32
    %c0_i32_0 = arith.constant 0 : i32
    %c0_i32_1 = arith.constant 0 : i32
    return %c0_i32, %c0_i32_0 : i32, i32
  }
  func.func @transform_32(%arg0: i32) -> (i32, i32) {
    %c0_i32 = arith.constant 0 : i32
    %c0_i32_0 = arith.constant 0 : i32
    %c0_i32_1 = arith.constant 0 : i32
    return %c0_i32, %c0_i32_0 : i32, i32
  }
  func.func @transform_33(%arg0: i32) -> (i32, i32) {
    %c0_i32 = arith.constant 0 : i32
    %c0_i32_0 = arith.constant 0 : i32
    %c0_i32_1 = arith.constant 0 : i32
    return %c0_i32, %c0_i32_0 : i32, i32
  }
  func.func @transform_34(%arg0: i32) -> (i32, i32) {
    %c0_i32 = arith.constant 0 : i32
    %c0_i32_0 = arith.constant 0 : i32
    %c0_i32_1 = arith.constant 0 : i32
    return %c0_i32, %c0_i32_0 : i32, i32
  }
  func.func @transform_35(%arg0: i32) -> (i32, i32) {
    %c0_i32 = arith.constant 0 : i32
    %c0_i32_0 = arith.constant 0 : i32
    return %arg0, %c0_i32 : i32, i32
  }
  func.func @transform_36(%arg0: i32) -> (i32, i32) {
    %c0_i32 = arith.constant 0 : i32
    %c0_i32_0 = arith.constant 0 : i32
    return %arg0, %c0_i32 : i32, i32
  }
  func.func @transform_37(%arg0: i32) -> (i32, i32) {
    %c0_i32 = arith.constant 0 : i32
    %c0_i32_0 = arith.constant 0 : i32
    return %arg0, %c0_i32 : i32, i32
  }
}

</mosaic_0001>

<llo_original>
// kernel: titok_forward.1
$region0: #{titok_forward.1}
  #allocation0 [shape = 'u32[]', space=smem, size = 0x4, offset = 0x4, fixed_abs, tag = 'smem constant byte address 0x4 - core index']
  #allocation1 [shape = 'u32[72,128]{1,0:T(1,128)}', space=vmem, size = 0x9000, scoped, tag = 'internal scratch']
  %s0 = inlined_call_operand.smem [shape: u32[38], index: -1, kind: input, shape index: {}]
  %s1 = sld [smem:[%s0]]
  %s2 = scalar_lea.smem %s0, 1
  %s3 = sld [smem:[%s2]]
  %s4 = scalar_lea.smem %s0, 2
  %s5 = sld [smem:[%s4]]
  %s6 = scalar_lea.smem %s0, 3
  %s7 = sld [smem:[%s6]]
  %s8 = scalar_lea.smem %s0, 4
  %s9 = sld [smem:[%s8]]
  %s10 = scalar_lea.smem %s0, 5
  %s11 = sld [smem:[%s10]]
  %s12 = scalar_lea.smem %s0, 6
  %s13 = sld [smem:[%s12]]
  %s14 = scalar_lea.smem %s0, 7
  %s15 = sld [smem:[%s14]]
  %s16 = scalar_lea.smem %s0, 8
  %s17 = sld [smem:[%s16]]
  %s18 = scalar_lea.smem %s0, 9
  %s19 = sld [smem:[%s18]]
  %s20 = scalar_lea.smem %s0, 10
  %s21 = sld [smem:[%s20]]
  %s22 = scalar_lea.smem %s0, 11
  %s23 = sld [smem:[%s22]]
  %s24 = scalar_lea.smem %s0, 12
  %s25 = sld [smem:[%s24]]
  %s26 = scalar_lea.smem %s0, 13
  %s27 = sld [smem:[%s26]]
  %s28 = scalar_lea.smem %s0, 14
  %s29 = sld [smem:[%s28]]
  %s30 = scalar_lea.smem %s0, 15
  %s31 = sld [smem:[%s30]]
  %s32 = scalar_lea.smem %s0, 16
  %s33 = sld [smem:[%s32]]
  %s34 = scalar_lea.smem %s0, 17
  %s35 = sld [smem:[%s34]]
  %s36 = scalar_lea.smem %s0, 18
  %s37 = sld [smem:[%s36]]
  %s38 = scalar_lea.smem %s0, 19
  %s39 = sld [smem:[%s38]]
  %s40 = scalar_lea.smem %s0, 20
  %s41 = sld [smem:[%s40]]
  %s42 = scalar_lea.smem %s0, 21
  %s43 = sld [smem:[%s42]]
  %s44 = scalar_lea.smem %s0, 22
  %s45 = sld [smem:[%s44]]
  %s46 = scalar_lea.smem %s0, 23
  %s47 = sld [smem:[%s46]]
  %s48 = scalar_lea.smem %s0, 24
  %s49 = sld [smem:[%s48]]
  %s50 = scalar_lea.smem %s0, 25
  %s51 = sld [smem:[%s50]]
  %s52 = scalar_lea.smem %s0, 26
  %s53 = sld [smem:[%s52]]
  %s54 = scalar_lea.smem %s0, 27
  %s55 = sld [smem:[%s54]]
  %s56 = scalar_lea.smem %s0, 28
  %s57 = sld [smem:[%s56]]
  %s58 = scalar_lea.smem %s0, 29
  %s59 = sld [smem:[%s58]]
  %s60 = scalar_lea.smem %s0, 30
  %s61 = sld [smem:[%s60]]
  %s62 = scalar_lea.smem %s0, 31
  %s63 = sld [smem:[%s62]]
  %s64 = scalar_lea.smem %s0, 32
  %s65 = sld [smem:[%s64]]
  %s66 = scalar_lea.smem %s0, 33
  %s67 = sld [smem:[%s66]]
  %s68 = scalar_lea.smem %s0, 34
  %s69 = sld [smem:[%s68]]
  %s70 = scalar_lea.smem %s0, 35
  %s71 = sld [smem:[%s70]]
  %s72 = scalar_lea.smem %s0, 36
  %s73 = sld [smem:[%s72]]
  %s74 = scalar_lea.smem %s0, 37
  %s75 = sld [smem:[%s74]]
  %76 = xla_tuple %s71, %s73, %s75
  %s77 = sld [smem:[#allocation0]]
  $region189: #{titok_forward.1} parent=0
    _
  %s79 = ssub.s32 1, %s77
  %s80 = scalar_select 0, %s79, %s77
  loop: start=0, step=1, limit=4
  $region2: #{titok_forward.1} parent=0 // loop_pre_header
    _
  $region3: #{titok_forward.1} parent=0 // loop_header
    %s82 = sphi 0, %s86
    %p83 = scmp.ge.s32.totalorder %s82, 4
    %s92 = sphi 0, %s94
    %s95 = sphi 0, %s92
    %s96 = sphi 0, %s95
    %s112 = sphi 0, %s96
    %s116 = sphi 0, %s116
    %s118 = sphi 0, %s116
    %s119 = sphi 0, %s118
    %s133 = sphi 0, %s119
    %s137 = sphi 0, %s137
    %s139 = sphi 0, %s137
    %s140 = sphi 0, %s139
    %s154 = sphi 0, %s140
    %s158 = sphi 0, %s158
    %s160 = sphi 0, %s158
    %s161 = sphi 0, %s160
    %s175 = sphi 0, %s161
    %s179 = sphi 0, %s179
    %s181 = sphi 0, %s179
    %s182 = sphi 0, %s181
    %s196 = sphi 0, %s182
    %s200 = sphi 0, %s200
    %s202 = sphi 0, %s200
    %s203 = sphi 0, %s202
    %s217 = sphi 0, %s203
    %s221 = sphi 0, %s221
    %s223 = sphi 0, %s221
    %s224 = sphi 0, %s223
    %s238 = sphi 0, %s224
    %s242 = sphi 0, %s242
    %s244 = sphi 0, %s242
    %s245 = sphi 0, %s244
    %s259 = sphi 0, %s245
    %s263 = sphi 0, %s263
    %s265 = sphi 0, %s263
    %s266 = sphi 0, %s265
    %s280 = sphi 0, %s266
    %s284 = sphi 0, %s284
    %s286 = sphi 0, %s284
    %s287 = sphi 0, %s286
    %s301 = sphi 0, %s287
    %s305 = sphi 0, %s305
    %s307 = sphi 0, %s305
    %s308 = sphi 0, %s307
    %s322 = sphi 0, %s308
    %s326 = sphi 0, %s326
    %s328 = sphi 0, %s326
    %s329 = sphi 0, %s328
    %s343 = sphi 0, %s329
    %s347 = sphi 0, %s347
    %s349 = sphi 0, %s347
    %s350 = sphi 0, %s349
    %s364 = sphi 0, %s350
    %s368 = sphi 0, %s368
    %s370 = sphi 0, %s368
    %s371 = sphi 0, %s370
    %s385 = sphi 0, %s371
    %s389 = sphi 0, %s389
    %s391 = sphi 0, %s389
    %s392 = sphi 0, %s391
    %s406 = sphi 0, %s392
    %s410 = sphi 0, %s410
    %s412 = sphi 0, %s410
    %s413 = sphi 0, %s412
    %s427 = sphi 0, %s413
    %s431 = sphi 0, %s431
    %s433 = sphi 0, %s431
    %s434 = sphi 0, %s433
    %s448 = sphi 0, %s434
    %s452 = sphi 0, %s452
    %s454 = sphi 0, %s452
    %s455 = sphi 0, %s454
    %s469 = sphi 0, %s455
    %s473 = sphi 0, %s473
    %s475 = sphi 0, %s473
    %s476 = sphi 0, %s475
    %s490 = sphi 0, %s476
    %s494 = sphi 0, %s494
    %s496 = sphi 0, %s494
    %s497 = sphi 0, %s496
    %s511 = sphi 0, %s497
    %s515 = sphi 0, %s515
    %s517 = sphi 0, %s515
    %s518 = sphi 0, %s517
    %s532 = sphi 0, %s518
    %s536 = sphi 0, %s536
    %s538 = sphi 0, %s536
    %s539 = sphi 0, %s538
    %s553 = sphi 0, %s539
    %s557 = sphi 0, %s557
    %s559 = sphi 0, %s557
    %s560 = sphi 0, %s559
    %s574 = sphi 0, %s560
    %s578 = sphi 0, %s578
    %s580 = sphi 0, %s578
    %s581 = sphi 0, %s580
    %s595 = sphi 0, %s581
    %s599 = sphi 0, %s599
    %s601 = sphi 0, %s599
    %s602 = sphi 0, %s601
    %s616 = sphi 0, %s602
    %s620 = sphi 0, %s620
    %s622 = sphi 0, %s620
    %s623 = sphi 0, %s622
    %s637 = sphi 0, %s623
    %s641 = sphi 0, %s641
    %s643 = sphi 0, %s641
    %s644 = sphi 0, %s643
    %s658 = sphi 0, %s644
    %s662 = sphi 0, %s662
    %s664 = sphi 0, %s662
    %s665 = sphi 0, %s664
    %s679 = sphi 0, %s665
    %s683 = sphi 0, %s683
    %s685 = sphi 0, %s683
    %s686 = sphi 0, %s685
    %s700 = sphi 0, %s686
    %s704 = sphi 0, %s704
    %s706 = sphi 0, %s704
    %s707 = sphi 0, %s706
    %s721 = sphi 0, %s707
    %s725 = sphi 0, %s725
    %s727 = sphi 0, %s725
    %s728 = sphi 0, %s727
    %s742 = sphi 0, %s728
    %s746 = sphi 0, %s746
    %s748 = sphi 0, %s746
    %s749 = sphi 0, %s748
    %s763 = sphi 0, %s749
    %s767 = sphi 0, %s767
    %s769 = sphi 0, %s767
    %s770 = sphi 0, %s769
    %s784 = sphi 0, %s770
    %s788 = sphi 0, %s788
    %s790 = sphi 0, %s788
    %s791 = sphi 0, %s790
    %s805 = sphi 0, %s791
    %s809 = sphi 0, %s809
    %s811 = sphi 0, %s809
    %s812 = sphi 0, %s811
    %s826 = sphi 0, %s812
    %s832 = sphi 0, %s834
    %s835 = sphi 0, %s832
    %s836 = sphi 0, %s835
    %s852 = sphi 0, %s836
    %s858 = sphi 0, %s860
    %s861 = sphi 0, %s858
    %s862 = sphi 0, %s861
    %s878 = sphi 0, %s862
    %s884 = sphi 0, %s886
    %s887 = sphi 0, %s884
    %s888 = sphi 0, %s887
    %s904 = sphi 0, %s888
  $region4: #{titok_forward.1} parent=0 // loop_header_branch
    %85 = sbr.rel (%p83) target = $region8
  $region5: #{titok_forward.1} parent=0 // loop_body
    %s87 = ssub.s32 %s82, 1
    %s88 = ssub.s32 %s82, 2
    %s89 = sadd.s32 %s82, 1
    %s90 = ssub.s32 %s82, %s89
    %p91 = scmp.eq.s32.totalorder %s90, 0
    %s93 = sadd.s32 %s92, 1
    %s94 = scalar_select %p91, %s92, %s93
    %p97 = pneg %p91
    %p98 = scmp.eq.s32.totalorder %s82, 1
    %p99 = por %p97, %p98
    %p100 = scmp.ne.s32.totalorder %s92, %s95
    %p101 = scmp.eq.s32.totalorder %s82, 0
    %p102 = por %p100, %p101
    %p103 = scmp.ne.s32.totalorder %s92, %s95
    %p104 = scmp.eq.s32.totalorder %s87, 1
    %p105 = por %p103, %p104
    %p106 = scmp.ne.s32.totalorder %s95, %s96
    %p107 = scmp.eq.s32.totalorder %s87, 0
    %p108 = por %p106, %p107
    %p109 = scmp.ne.s32.totalorder %s95, %s96
    %p110 = scmp.eq.s32.totalorder %s88, 1
    %p111 = por %p109, %p110
    %p113 = scmp.ne.s32.totalorder %s96, %s112
    %p114 = scmp.eq.s32.totalorder %s88, 0
    %p115 = por %p113, %p114
    %s117 = sadd.s32 %s116, 1
    %p120 = scmp.eq.s32.totalorder %s82, 1
    %p121 = scmp.ne.s32.totalorder %s116, %s118
    %p122 = scmp.eq.s32.totalorder %s82, 0
    %p123 = por %p121, %p122
    %p124 = scmp.ne.s32.totalorder %s116, %s118
    %p125 = scmp.eq.s32.totalorder %s87, 1
    %p126 = por %p124, %p125
    %p127 = scmp.ne.s32.totalorder %s118, %s119
    %p128 = scmp.eq.s32.totalorder %s87, 0
    %p129 = por %p127, %p128
    %p130 = scmp.ne.s32.totalorder %s118, %s119
    %p131 = scmp.eq.s32.totalorder %s88, 1
    %p132 = por %p130, %p131
    %p134 = scmp.ne.s32.totalorder %s119, %s133
    %p135 = scmp.eq.s32.totalorder %s88, 0
    %p136 = por %p134, %p135
    %s138 = sadd.s32 %s137, 1
    %p141 = scmp.eq.s32.totalorder %s82, 1
    %p142 = scmp.ne.s32.totalorder %s137, %s139
    %p143 = scmp.eq.s32.totalorder %s82, 0
    %p144 = por %p142, %p143
    %p145 = scmp.ne.s32.totalorder %s137, %s139
    %p146 = scmp.eq.s32.totalorder %s87, 1
    %p147 = por %p145, %p146
    %p148 = scmp.ne.s32.totalorder %s139, %s140
    %p149 = scmp.eq.s32.totalorder %s87, 0
    %p150 = por %p148, %p149
    %p151 = scmp.ne.s32.totalorder %s139, %s140
    %p152 = scmp.eq.s32.totalorder %s88, 1
    %p153 = por %p151, %p152
    %p155 = scmp.ne.s32.totalorder %s140, %s154
    %p156 = scmp.eq.s32.totalorder %s88, 0
    %p157 = por %p155, %p156
    %s159 = sadd.s32 %s158, 1
    %p162 = scmp.eq.s32.totalorder %s82, 1
    %p163 = scmp.ne.s32.totalorder %s158, %s160
    %p164 = scmp.eq.s32.totalorder %s82, 0
    %p165 = por %p163, %p164
    %p166 = scmp.ne.s32.totalorder %s158, %s160
    %p167 = scmp.eq.s32.totalorder %s87, 1
    %p168 = por %p166, %p167
    %p169 = scmp.ne.s32.totalorder %s160, %s161
    %p170 = scmp.eq.s32.totalorder %s87, 0
    %p171 = por %p169, %p170
    %p172 = scmp.ne.s32.totalorder %s160, %s161
    %p173 = scmp.eq.s32.totalorder %s88, 1
    %p174 = por %p172, %p173
    %p176 = scmp.ne.s32.totalorder %s161, %s175
    %p177 = scmp.eq.s32.totalorder %s88, 0
    %p178 = por %p176, %p177
    %s180 = sadd.s32 %s179, 1
    %p183 = scmp.eq.s32.totalorder %s82, 1
    %p184 = scmp.ne.s32.totalorder %s179, %s181
    %p185 = scmp.eq.s32.totalorder %s82, 0
    %p186 = por %p184, %p185
    %p187 = scmp.ne.s32.totalorder %s179, %s181
    %p188 = scmp.eq.s32.totalorder %s87, 1
    %p189 = por %p187, %p188
    %p190 = scmp.ne.s32.totalorder %s181, %s182
    %p191 = scmp.eq.s32.totalorder %s87, 0
    %p192 = por %p190, %p191
    %p193 = scmp.ne.s32.totalorder %s181, %s182
    %p194 = scmp.eq.s32.totalorder %s88, 1
    %p195 = por %p193, %p194
    %p197 = scmp.ne.s32.totalorder %s182, %s196
    %p198 = scmp.eq.s32.totalorder %s88, 0
    %p199 = por %p197, %p198
    %s201 = sadd.s32 %s200, 1
    %p204 = scmp.eq.s32.totalorder %s82, 1
    %p205 = scmp.ne.s32.totalorder %s200, %s202
    %p206 = scmp.eq.s32.totalorder %s82, 0
    %p207 = por %p205, %p206
    %p208 = scmp.ne.s32.totalorder %s200, %s202
    %p209 = scmp.eq.s32.totalorder %s87, 1
    %p210 = por %p208, %p209
    %p211 = scmp.ne.s32.totalorder %s202, %s203
    %p212 = scmp.eq.s32.totalorder %s87, 0
    %p213 = por %p211, %p212
    %p214 = scmp.ne.s32.totalorder %s202, %s203
    %p215 = scmp.eq.s32.totalorder %s88, 1
    %p216 = por %p214, %p215
    %p218 = scmp.ne.s32.totalorder %s203, %s217
    %p219 = scmp.eq.s32.totalorder %s88, 0
    %p220 = por %p218, %p219
    %s222 = sadd.s32 %s221, 1
    %p225 = scmp.eq.s32.totalorder %s82, 1
    %p226 = scmp.ne.s32.totalorder %s221, %s223
    %p227 = scmp.eq.s32.totalorder %s82, 0
    %p228 = por %p226, %p227
    %p229 = scmp.ne.s32.totalorder %s221, %s223
    %p230 = scmp.eq.s32.totalorder %s87, 1
    %p231 = por %p229, %p230
    %p232 = scmp.ne.s32.totalorder %s223, %s224
    %p233 = scmp.eq.s32.totalorder %s87, 0
    %p234 = por %p232, %p233
    %p235 = scmp.ne.s32.totalorder %s223, %s224
    %p236 = scmp.eq.s32.totalorder %s88, 1
    %p237 = por %p235, %p236
    %p239 = scmp.ne.s32.totalorder %s224, %s238
    %p240 = scmp.eq.s32.totalorder %s88, 0
    %p241 = por %p239, %p240
    %s243 = sadd.s32 %s242, 1
    %p246 = scmp.eq.s32.totalorder %s82, 1
    %p247 = scmp.ne.s32.totalorder %s242, %s244
    %p248 = scmp.eq.s32.totalorder %s82, 0
    %p249 = por %p247, %p248
    %p250 = scmp.ne.s32.totalorder %s242, %s244
    %p251 = scmp.eq.s32.totalorder %s87, 1
    %p252 = por %p250, %p251
    %p253 = scmp.ne.s32.totalorder %s244, %s245
    %p254 = scmp.eq.s32.totalorder %s87, 0
    %p255 = por %p253, %p254
    %p256 = scmp.ne.s32.totalorder %s244, %s245
    %p257 = scmp.eq.s32.totalorder %s88, 1
    %p258 = por %p256, %p257
    %p260 = scmp.ne.s32.totalorder %s245, %s259
    %p261 = scmp.eq.s32.totalorder %s88, 0
    %p262 = por %p260, %p261
    %s264 = sadd.s32 %s263, 1
    %p267 = scmp.eq.s32.totalorder %s82, 1
    %p268 = scmp.ne.s32.totalorder %s263, %s265
    %p269 = scmp.eq.s32.totalorder %s82, 0
    %p270 = por %p268, %p269
    %p271 = scmp.ne.s32.totalorder %s263, %s265
    %p272 = scmp.eq.s32.totalorder %s87, 1
    %p273 = por %p271, %p272
    %p274 = scmp.ne.s32.totalorder %s265, %s266
    %p275 = scmp.eq.s32.totalorder %s87, 0
    %p276 = por %p274, %p275
    %p277 = scmp.ne.s32.totalorder %s265, %s266
    %p278 = scmp.eq.s32.totalorder %s88, 1
    %p279 = por %p277, %p278
    %p281 = scmp.ne.s32.totalorder %s266, %s280
    %p282 = scmp.eq.s32.totalorder %s88, 0
    %p283 = por %p281, %p282
    %s285 = sadd.s32 %s284, 1
    %p288 = scmp.eq.s32.totalorder %s82, 1
    %p289 = scmp.ne.s32.totalorder %s284, %s286
    %p290 = scmp.eq.s32.totalorder %s82, 0
    %p291 = por %p289, %p290
    %p292 = scmp.ne.s32.totalorder %s284, %s286
    %p293 = scmp.eq.s32.totalorder %s87, 1
    %p294 = por %p292, %p293
    %p295 = scmp.ne.s32.totalorder %s286, %s287
    %p296 = scmp.eq.s32.totalorder %s87, 0
    %p297 = por %p295, %p296
    %p298 = scmp.ne.s32.totalorder %s286, %s287
    %p299 = scmp.eq.s32.totalorder %s88, 1
    %p300 = por %p298, %p299
    %p302 = scmp.ne.s32.totalorder %s287, %s301
    %p303 = scmp.eq.s32.totalorder %s88, 0
    %p304 = por %p302, %p303
    %s306 = sadd.s32 %s305, 1
    %p309 = scmp.eq.s32.totalorder %s82, 1
    %p310 = scmp.ne.s32.totalorder %s305, %s307
    %p311 = scmp.eq.s32.totalorder %s82, 0
    %p312 = por %p310, %p311
    %p313 = scmp.ne.s32.totalorder %s305, %s307
    %p314 = scmp.eq.s32.totalorder %s87, 1
    %p315 = por %p313, %p314
    %p316 = scmp.ne.s32.totalorder %s307, %s308
    %p317 = scmp.eq.s32.totalorder %s87, 0
    %p318 = por %p316, %p317
    %p319 = scmp.ne.s32.totalorder %s307, %s308
    %p320 = scmp.eq.s32.totalorder %s88, 1
    %p321 = por %p319, %p320
    %p323 = scmp.ne.s32.totalorder %s308, %s322
    %p324 = scmp.eq.s32.totalorder %s88, 0
    %p325 = por %p323, %p324
    %s327 = sadd.s32 %s326, 1
    %p330 = scmp.eq.s32.totalorder %s82, 1
    %p331 = scmp.ne.s32.totalorder %s326, %s328
    %p332 = scmp.eq.s32.totalorder %s82, 0
    %p333 = por %p331, %p332
    %p334 = scmp.ne.s32.totalorder %s326, %s328
    %p335 = scmp.eq.s32.totalorder %s87, 1
    %p336 = por %p334, %p335
    %p337 = scmp.ne.s32.totalorder %s328, %s329
    %p338 = scmp.eq.s32.totalorder %s87, 0
    %p339 = por %p337, %p338
    %p340 = scmp.ne.s32.totalorder %s328, %s329
    %p341 = scmp.eq.s32.totalorder %s88, 1
    %p342 = por %p340, %p341
    %p344 = scmp.ne.s32.totalorder %s329, %s343
    %p345 = scmp.eq.s32.totalorder %s88, 0
    %p346 = por %p344, %p345
    %s348 = sadd.s32 %s347, 1
    %p351 = scmp.eq.s32.totalorder %s82, 1
    %p352 = scmp.ne.s32.totalorder %s347, %s349
    %p353 = scmp.eq.s32.totalorder %s82, 0
    %p354 = por %p352, %p353
    %p355 = scmp.ne.s32.totalorder %s347, %s349
    %p356 = scmp.eq.s32.totalorder %s87, 1
    %p357 = por %p355, %p356
    %p358 = scmp.ne.s32.totalorder %s349, %s350
    %p359 = scmp.eq.s32.totalorder %s87, 0
    %p360 = por %p358, %p359
    %p361 = scmp.ne.s32.totalorder %s349, %s350
    %p362 = scmp.eq.s32.totalorder %s88, 1
    %p363 = por %p361, %p362
    %p365 = scmp.ne.s32.totalorder %s350, %s364
    %p366 = scmp.eq.s32.totalorder %s88, 0
    %p367 = por %p365, %p366
    %s369 = sadd.s32 %s368, 1
    %p372 = scmp.eq.s32.totalorder %s82, 1
    %p373 = scmp.ne.s32.totalorder %s368, %s370
    %p374 = scmp.eq.s32.totalorder %s82, 0
    %p375 = por %p373, %p374
    %p376 = scmp.ne.s32.totalorder %s368, %s370
    %p377 = scmp.eq.s32.totalorder %s87, 1
    %p378 = por %p376, %p377
    %p379 = scmp.ne.s32.totalorder %s370, %s371
    %p380 = scmp.eq.s32.totalorder %s87, 0
    %p381 = por %p379, %p380
    %p382 = scmp.ne.s32.totalorder %s370, %s371
    %p383 = scmp.eq.s32.totalorder %s88, 1
    %p384 = por %p382, %p383
    %p386 = scmp.ne.s32.totalorder %s371, %s385
    %p387 = scmp.eq.s32.totalorder %s88, 0
    %p388 = por %p386, %p387
    %s390 = sadd.s32 %s389, 1
    %p393 = scmp.eq.s32.totalorder %s82, 1
    %p394 = scmp.ne.s32.totalorder %s389, %s391
    %p395 = scmp.eq.s32.totalorder %s82, 0
    %p396 = por %p394, %p395
    %p397 = scmp.ne.s32.totalorder %s389, %s391
    %p398 = scmp.eq.s32.totalorder %s87, 1
    %p399 = por %p397, %p398
    %p400 = scmp.ne.s32.totalorder %s391, %s392
    %p401 = scmp.eq.s32.totalorder %s87, 0
    %p402 = por %p400, %p401
    %p403 = scmp.ne.s32.totalorder %s391, %s392
    %p404 = scmp.eq.s32.totalorder %s88, 1
    %p405 = por %p403, %p404
    %p407 = scmp.ne.s32.totalorder %s392, %s406
    %p408 = scmp.eq.s32.totalorder %s88, 0
    %p409 = por %p407, %p408
    %s411 = sadd.s32 %s410, 1
    %p414 = scmp.eq.s32.totalorder %s82, 1
    %p415 = scmp.ne.s32.totalorder %s410, %s412
    %p416 = scmp.eq.s32.totalorder %s82, 0
    %p417 = por %p415, %p416
    %p418 = scmp.ne.s32.totalorder %s410, %s412
    %p419 = scmp.eq.s32.totalorder %s87, 1
    %p420 = por %p418, %p419
    %p421 = scmp.ne.s32.totalorder %s412, %s413
    %p422 = scmp.eq.s32.totalorder %s87, 0
    %p423 = por %p421, %p422
    %p424 = scmp.ne.s32.totalorder %s412, %s413
    %p425 = scmp.eq.s32.totalorder %s88, 1
    %p426 = por %p424, %p425
    %p428 = scmp.ne.s32.totalorder %s413, %s427
    %p429 = scmp.eq.s32.totalorder %s88, 0
    %p430 = por %p428, %p429
    %s432 = sadd.s32 %s431, 1
    %p435 = scmp.eq.s32.totalorder %s82, 1
    %p436 = scmp.ne.s32.totalorder %s431, %s433
    %p437 = scmp.eq.s32.totalorder %s82, 0
    %p438 = por %p436, %p437
    %p439 = scmp.ne.s32.totalorder %s431, %s433
    %p440 = scmp.eq.s32.totalorder %s87, 1
    %p441 = por %p439, %p440
    %p442 = scmp.ne.s32.totalorder %s433, %s434
    %p443 = scmp.eq.s32.totalorder %s87, 0
    %p444 = por %p442, %p443
    %p445 = scmp.ne.s32.totalorder %s433, %s434
    %p446 = scmp.eq.s32.totalorder %s88, 1
    %p447 = por %p445, %p446
    %p449 = scmp.ne.s32.totalorder %s434, %s448
    %p450 = scmp.eq.s32.totalorder %s88, 0
    %p451 = por %p449, %p450
    %s453 = sadd.s32 %s452, 1
    %p456 = scmp.eq.s32.totalorder %s82, 1
    %p457 = scmp.ne.s32.totalorder %s452, %s454
    %p458 = scmp.eq.s32.totalorder %s82, 0
    %p459 = por %p457, %p458
    %p460 = scmp.ne.s32.totalorder %s452, %s454
    %p461 = scmp.eq.s32.totalorder %s87, 1
    %p462 = por %p460, %p461
    %p463 = scmp.ne.s32.totalorder %s454, %s455
    %p464 = scmp.eq.s32.totalorder %s87, 0
    %p465 = por %p463, %p464
    %p466 = scmp.ne.s32.totalorder %s454, %s455
    %p467 = scmp.eq.s32.totalorder %s88, 1
    %p468 = por %p466, %p467
    %p470 = scmp.ne.s32.totalorder %s455, %s469
    %p471 = scmp.eq.s32.totalorder %s88, 0
    %p472 = por %p470, %p471
    %s474 = sadd.s32 %s473, 1
    %p477 = scmp.eq.s32.totalorder %s82, 1
    %p478 = scmp.ne.s32.totalorder %s473, %s475
    %p479 = scmp.eq.s32.totalorder %s82, 0
    %p480 = por %p478, %p479
    %p481 = scmp.ne.s32.totalorder %s473, %s475
    %p482 = scmp.eq.s32.totalorder %s87, 1
    %p483 = por %p481, %p482
    %p484 = scmp.ne.s32.totalorder %s475, %s476
    %p485 = scmp.eq.s32.totalorder %s87, 0
    %p486 = por %p484, %p485
    %p487 = scmp.ne.s32.totalorder %s475, %s476
    %p488 = scmp.eq.s32.totalorder %s88, 1
    %p489 = por %p487, %p488
    %p491 = scmp.ne.s32.totalorder %s476, %s490
    %p492 = scmp.eq.s32.totalorder %s88, 0
    %p493 = por %p491, %p492
    %s495 = sadd.s32 %s494, 1
    %p498 = scmp.eq.s32.totalorder %s82, 1
    %p499 = scmp.ne.s32.totalorder %s494, %s496
    %p500 = scmp.eq.s32.totalorder %s82, 0
    %p501 = por %p499, %p500
    %p502 = scmp.ne.s32.totalorder %s494, %s496
    %p503 = scmp.eq.s32.totalorder %s87, 1
    %p504 = por %p502, %p503
    %p505 = scmp.ne.s32.totalorder %s496, %s497
    %p506 = scmp.eq.s32.totalorder %s87, 0
    %p507 = por %p505, %p506
    %p508 = scmp.ne.s32.totalorder %s496, %s497
    %p509 = scmp.eq.s32.totalorder %s88, 1
    %p510 = por %p508, %p509
    %p512 = scmp.ne.s32.totalorder %s497, %s511
    %p513 = scmp.eq.s32.totalorder %s88, 0
    %p514 = por %p512, %p513
    %s516 = sadd.s32 %s515, 1
    %p519 = scmp.eq.s32.totalorder %s82, 1
    %p520 = scmp.ne.s32.totalorder %s515, %s517
    %p521 = scmp.eq.s32.totalorder %s82, 0
    %p522 = por %p520, %p521
    %p523 = scmp.ne.s32.totalorder %s515, %s517
    %p524 = scmp.eq.s32.totalorder %s87, 1
    %p525 = por %p523, %p524
    %p526 = scmp.ne.s32.totalorder %s517, %s518
    %p527 = scmp.eq.s32.totalorder %s87, 0
    %p528 = por %p526, %p527
    %p529 = scmp.ne.s32.totalorder %s517, %s518
    %p530 = scmp.eq.s32.totalorder %s88, 1
    %p531 = por %p529, %p530
    %p533 = scmp.ne.s32.totalorder %s518, %s532
    %p534 = scmp.eq.s32.totalorder %s88, 0
    %p535 = por %p533, %p534
    %s537 = sadd.s32 %s536, 1
    %p540 = scmp.eq.s32.totalorder %s82, 1
    %p541 = scmp.ne.s32.totalorder %s536, %s538
    %p542 = scmp.eq.s32.totalorder %s82, 0
    %p543 = por %p541, %p542
    %p544 = scmp.ne.s32.totalorder %s536, %s538
    %p545 = scmp.eq.s32.totalorder %s87, 1
    %p546 = por %p544, %p545
    %p547 = scmp.ne.s32.totalorder %s538, %s539
    %p548 = scmp.eq.s32.totalorder %s87, 0
    %p549 = por %p547, %p548
    %p550 = scmp.ne.s32.totalorder %s538, %s539
    %p551 = scmp.eq.s32.totalorder %s88, 1
    %p552 = por %p550, %p551
    %p554 = scmp.ne.s32.totalorder %s539, %s553
    %p555 = scmp.eq.s32.totalorder %s88, 0
    %p556 = por %p554, %p555
    %s558 = sadd.s32 %s557, 1
    %p561 = scmp.eq.s32.totalorder %s82, 1
    %p562 = scmp.ne.s32.totalorder %s557, %s559
    %p563 = scmp.eq.s32.totalorder %s82, 0
    %p564 = por %p562, %p563
    %p565 = scmp.ne.s32.totalorder %s557, %s559
    %p566 = scmp.eq.s32.totalorder %s87, 1
    %p567 = por %p565, %p566
    %p568 = scmp.ne.s32.totalorder %s559, %s560
    %p569 = scmp.eq.s32.totalorder %s87, 0
    %p570 = por %p568, %p569
    %p571 = scmp.ne.s32.totalorder %s559, %s560
    %p572 = scmp.eq.s32.totalorder %s88, 1
    %p573 = por %p571, %p572
    %p575 = scmp.ne.s32.totalorder %s560, %s574
    %p576 = scmp.eq.s32.totalorder %s88, 0
    %p577 = por %p575, %p576
    %s579 = sadd.s32 %s578, 1
    %p582 = scmp.eq.s32.totalorder %s82, 1
    %p583 = scmp.ne.s32.totalorder %s578, %s580
    %p584 = scmp.eq.s32.totalorder %s82, 0
    %p585 = por %p583, %p584
    %p586 = scmp.ne.s32.totalorder %s578, %s580
    %p587 = scmp.eq.s32.totalorder %s87, 1
    %p588 = por %p586, %p587
    %p589 = scmp.ne.s32.totalorder %s580, %s581
    %p590 = scmp.eq.s32.totalorder %s87, 0
    %p591 = por %p589, %p590
    %p592 = scmp.ne.s32.totalorder %s580, %s581
    %p593 = scmp.eq.s32.totalorder %s88, 1
    %p594 = por %p592, %p593
    %p596 = scmp.ne.s32.totalorder %s581, %s595
    %p597 = scmp.eq.s32.totalorder %s88, 0
    %p598 = por %p596, %p597
    %s600 = sadd.s32 %s599, 1
    %p603 = scmp.eq.s32.totalorder %s82, 1
    %p604 = scmp.ne.s32.totalorder %s599, %s601
    %p605 = scmp.eq.s32.totalorder %s82, 0
    %p606 = por %p604, %p605
    %p607 = scmp.ne.s32.totalorder %s599, %s601
    %p608 = scmp.eq.s32.totalorder %s87, 1
    %p609 = por %p607, %p608
    %p610 = scmp.ne.s32.totalorder %s601, %s602
    %p611 = scmp.eq.s32.totalorder %s87, 0
    %p612 = por %p610, %p611
    %p613 = scmp.ne.s32.totalorder %s601, %s602
    %p614 = scmp.eq.s32.totalorder %s88, 1
    %p615 = por %p613, %p614
    %p617 = scmp.ne.s32.totalorder %s602, %s616
    %p618 = scmp.eq.s32.totalorder %s88, 0
    %p619 = por %p617, %p618
    %s621 = sadd.s32 %s620, 1
    %p624 = scmp.eq.s32.totalorder %s82, 1
    %p625 = scmp.ne.s32.totalorder %s620, %s622
    %p626 = scmp.eq.s32.totalorder %s82, 0
    %p627 = por %p625, %p626
    %p628 = scmp.ne.s32.totalorder %s620, %s622
    %p629 = scmp.eq.s32.totalorder %s87, 1
    %p630 = por %p628, %p629
    %p631 = scmp.ne.s32.totalorder %s622, %s623
    %p632 = scmp.eq.s32.totalorder %s87, 0
    %p633 = por %p631, %p632
    %p634 = scmp.ne.s32.totalorder %s622, %s623
    %p635 = scmp.eq.s32.totalorder %s88, 1
    %p636 = por %p634, %p635
    %p638 = scmp.ne.s32.totalorder %s623, %s637
    %p639 = scmp.eq.s32.totalorder %s88, 0
    %p640 = por %p638, %p639
    %s642 = sadd.s32 %s641, 1
    %p645 = scmp.eq.s32.totalorder %s82, 1
    %p646 = scmp.ne.s32.totalorder %s641, %s643
    %p647 = scmp.eq.s32.totalorder %s82, 0
    %p648 = por %p646, %p647
    %p649 = scmp.ne.s32.totalorder %s641, %s643
    %p650 = scmp.eq.s32.totalorder %s87, 1
    %p651 = por %p649, %p650
    %p652 = scmp.ne.s32.totalorder %s643, %s644
    %p653 = scmp.eq.s32.totalorder %s87, 0
    %p654 = por %p652, %p653
    %p655 = scmp.ne.s32.totalorder %s643, %s644
    %p656 = scmp.eq.s32.totalorder %s88, 1
    %p657 = por %p655, %p656
    %p659 = scmp.ne.s32.totalorder %s644, %s658
    %p660 = scmp.eq.s32.totalorder %s88, 0
    %p661 = por %p659, %p660
    %s663 = sadd.s32 %s662, 1
    %p666 = scmp.eq.s32.totalorder %s82, 1
    %p667 = scmp.ne.s32.totalorder %s662, %s664
    %p668 = scmp.eq.s32.totalorder %s82, 0
    %p669 = por %p667, %p668
    %p670 = scmp.ne.s32.totalorder %s662, %s664
    %p671 = scmp.eq.s32.totalorder %s87, 1
    %p672 = por %p670, %p671
    %p673 = scmp.ne.s32.totalorder %s664, %s665
    %p674 = scmp.eq.s32.totalorder %s87, 0
    %p675 = por %p673, %p674
    %p676 = scmp.ne.s32.totalorder %s664, %s665
    %p677 = scmp.eq.s32.totalorder %s88, 1
    %p678 = por %p676, %p677
    %p680 = scmp.ne.s32.totalorder %s665, %s679
    %p681 = scmp.eq.s32.totalorder %s88, 0
    %p682 = por %p680, %p681
    %s684 = sadd.s32 %s683, 1
    %p687 = scmp.eq.s32.totalorder %s82, 1
    %p688 = scmp.ne.s32.totalorder %s683, %s685
    %p689 = scmp.eq.s32.totalorder %s82, 0
    %p690 = por %p688, %p689
    %p691 = scmp.ne.s32.totalorder %s683, %s685
    %p692 = scmp.eq.s32.totalorder %s87, 1
    %p693 = por %p691, %p692
    %p694 = scmp.ne.s32.totalorder %s685, %s686
    %p695 = scmp.eq.s32.totalorder %s87, 0
    %p696 = por %p694, %p695
    %p697 = scmp.ne.s32.totalorder %s685, %s686
    %p698 = scmp.eq.s32.totalorder %s88, 1
    %p699 = por %p697, %p698
    %p701 = scmp.ne.s32.totalorder %s686, %s700
    %p702 = scmp.eq.s32.totalorder %s88, 0
    %p703 = por %p701, %p702
    %s705 = sadd.s32 %s704, 1
    %p708 = scmp.eq.s32.totalorder %s82, 1
    %p709 = scmp.ne.s32.totalorder %s704, %s706
    %p710 = scmp.eq.s32.totalorder %s82, 0
    %p711 = por %p709, %p710
    %p712 = scmp.ne.s32.totalorder %s704, %s706
    %p713 = scmp.eq.s32.totalorder %s87, 1
    %p714 = por %p712, %p713
    %p715 = scmp.ne.s32.totalorder %s706, %s707
    %p716 = scmp.eq.s32.totalorder %s87, 0
    %p717 = por %p715, %p716
    %p718 = scmp.ne.s32.totalorder %s706, %s707
    %p719 = scmp.eq.s32.totalorder %s88, 1
    %p720 = por %p718, %p719
    %p722 = scmp.ne.s32.totalorder %s707, %s721
    %p723 = scmp.eq.s32.totalorder %s88, 0
    %p724 = por %p722, %p723
    %s726 = sadd.s32 %s725, 1
    %p729 = scmp.eq.s32.totalorder %s82, 1
    %p730 = scmp.ne.s32.totalorder %s725, %s727
    %p731 = scmp.eq.s32.totalorder %s82, 0
    %p732 = por %p730, %p731
    %p733 = scmp.ne.s32.totalorder %s725, %s727
    %p734 = scmp.eq.s32.totalorder %s87, 1
    %p735 = por %p733, %p734
    %p736 = scmp.ne.s32.totalorder %s727, %s728
    %p737 = scmp.eq.s32.totalorder %s87, 0
    %p738 = por %p736, %p737
    %p739 = scmp.ne.s32.totalorder %s727, %s728
    %p740 = scmp.eq.s32.totalorder %s88, 1
    %p741 = por %p739, %p740
    %p743 = scmp.ne.s32.totalorder %s728, %s742
    %p744 = scmp.eq.s32.totalorder %s88, 0
    %p745 = por %p743, %p744
    %s747 = sadd.s32 %s746, 1
    %p750 = scmp.eq.s32.totalorder %s82, 1
    %p751 = scmp.ne.s32.totalorder %s746, %s748
    %p752 = scmp.eq.s32.totalorder %s82, 0
    %p753 = por %p751, %p752
    %p754 = scmp.ne.s32.totalorder %s746, %s748
    %p755 = scmp.eq.s32.totalorder %s87, 1
    %p756 = por %p754, %p755
    %p757 = scmp.ne.s32.totalorder %s748, %s749
    %p758 = scmp.eq.s32.totalorder %s87, 0
    %p759 = por %p757, %p758
    %p760 = scmp.ne.s32.totalorder %s748, %s749
    %p761 = scmp.eq.s32.totalorder %s88, 1
    %p762 = por %p760, %p761
    %p764 = scmp.ne.s32.totalorder %s749, %s763
    %p765 = scmp.eq.s32.totalorder %s88, 0
    %p766 = por %p764, %p765
    %s768 = sadd.s32 %s767, 1
    %p771 = scmp.eq.s32.totalorder %s82, 1
    %p772 = scmp.ne.s32.totalorder %s767, %s769
    %p773 = scmp.eq.s32.totalorder %s82, 0
    %p774 = por %p772, %p773
    %p775 = scmp.ne.s32.totalorder %s767, %s769
    %p776 = scmp.eq.s32.totalorder %s87, 1
    %p777 = por %p775, %p776
    %p778 = scmp.ne.s32.totalorder %s769, %s770
    %p779 = scmp.eq.s32.totalorder %s87, 0
    %p780 = por %p778, %p779
    %p781 = scmp.ne.s32.totalorder %s769, %s770
    %p782 = scmp.eq.s32.totalorder %s88, 1
    %p783 = por %p781, %p782
    %p785 = scmp.ne.s32.totalorder %s770, %s784
    %p786 = scmp.eq.s32.totalorder %s88, 0
    %p787 = por %p785, %p786
    %s789 = sadd.s32 %s788, 1
    %p792 = scmp.eq.s32.totalorder %s82, 1
    %p793 = scmp.ne.s32.totalorder %s788, %s790
    %p794 = scmp.eq.s32.totalorder %s82, 0
    %p795 = por %p793, %p794
    %p796 = scmp.ne.s32.totalorder %s788, %s790
    %p797 = scmp.eq.s32.totalorder %s87, 1
    %p798 = por %p796, %p797
    %p799 = scmp.ne.s32.totalorder %s790, %s791
    %p800 = scmp.eq.s32.totalorder %s87, 0
    %p801 = por %p799, %p800
    %p802 = scmp.ne.s32.totalorder %s790, %s791
    %p803 = scmp.eq.s32.totalorder %s88, 1
    %p804 = por %p802, %p803
    %p806 = scmp.ne.s32.totalorder %s791, %s805
    %p807 = scmp.eq.s32.totalorder %s88, 0
    %p808 = por %p806, %p807
    %s810 = sadd.s32 %s809, 1
    %p813 = scmp.eq.s32.totalorder %s82, 1
    %p814 = scmp.ne.s32.totalorder %s809, %s811
    %p815 = scmp.eq.s32.totalorder %s82, 0
    %p816 = por %p814, %p815
    %p817 = scmp.ne.s32.totalorder %s809, %s811
    %p818 = scmp.eq.s32.totalorder %s87, 1
    %p819 = por %p817, %p818
    %p820 = scmp.ne.s32.totalorder %s811, %s812
    %p821 = scmp.eq.s32.totalorder %s87, 0
    %p822 = por %p820, %p821
    %p823 = scmp.ne.s32.totalorder %s811, %s812
    %p824 = scmp.eq.s32.totalorder %s88, 1
    %p825 = por %p823, %p824
    %p827 = scmp.ne.s32.totalorder %s812, %s826
    %p828 = scmp.eq.s32.totalorder %s88, 0
    %p829 = por %p827, %p828
    %s830 = ssub.s32 %s82, %s89
    %p831 = scmp.eq.s32.totalorder %s830, 0
    %s833 = sadd.s32 %s832, 1
    %s834 = scalar_select %p831, %s832, %s833
    %p837 = pneg %p831
    %p838 = scmp.eq.s32.totalorder %s82, 1
    %p839 = por %p837, %p838
    %p840 = scmp.ne.s32.totalorder %s832, %s835
    %p841 = scmp.eq.s32.totalorder %s82, 0
    %p842 = por %p840, %p841
    %p843 = scmp.ne.s32.totalorder %s832, %s835
    %p844 = scmp.eq.s32.totalorder %s87, 1
    %p845 = por %p843, %p844
    %p846 = scmp.ne.s32.totalorder %s835, %s836
    %p847 = scmp.eq.s32.totalorder %s87, 0
    %p848 = por %p846, %p847
    %p849 = scmp.ne.s32.totalorder %s835, %s836
    %p850 = scmp.eq.s32.totalorder %s88, 1
    %p851 = por %p849, %p850
    %p853 = scmp.ne.s32.totalorder %s836, %s852
    %p854 = scmp.eq.s32.totalorder %s88, 0
    %p855 = por %p853, %p854
    %s856 = ssub.s32 %s82, %s89
    %p857 = scmp.eq.s32.totalorder %s856, 0
    %s859 = sadd.s32 %s858, 1
    %s860 = scalar_select %p857, %s858, %s859
    %p863 = pneg %p857
    %p864 = scmp.eq.s32.totalorder %s82, 1
    %p865 = por %p863, %p864
    %p866 = scmp.ne.s32.totalorder %s858, %s861
    %p867 = scmp.eq.s32.totalorder %s82, 0
    %p868 = por %p866, %p867
    %p869 = scmp.ne.s32.totalorder %s858, %s861
    %p870 = scmp.eq.s32.totalorder %s87, 1
    %p871 = por %p869, %p870
    %p872 = scmp.ne.s32.totalorder %s861, %s862
    %p873 = scmp.eq.s32.totalorder %s87, 0
    %p874 = por %p872, %p873
    %p875 = scmp.ne.s32.totalorder %s861, %s862
    %p876 = scmp.eq.s32.totalorder %s88, 1
    %p877 = por %p875, %p876
    %p879 = scmp.ne.s32.totalorder %s862, %s878
    %p880 = scmp.eq.s32.totalorder %s88, 0
    %p881 = por %p879, %p880
    %s882 = ssub.s32 %s82, %s89
    %p883 = scmp.eq.s32.totalorder %s882, 0
    %s885 = sadd.s32 %s884, 1
    %s886 = scalar_select %p883, %s884, %s885
    %p889 = pneg %p883
    %p890 = scmp.eq.s32.totalorder %s82, 1
    %p891 = por %p889, %p890
    %p892 = scmp.ne.s32.totalorder %s884, %s887
    %p893 = scmp.eq.s32.totalorder %s82, 0
    %p894 = por %p892, %p893
    %p895 = scmp.ne.s32.totalorder %s884, %s887
    %p896 = scmp.eq.s32.totalorder %s87, 1
    %p897 = por %p895, %p896
    %p898 = scmp.ne.s32.totalorder %s887, %s888
    %p899 = scmp.eq.s32.totalorder %s87, 0
    %p900 = por %p898, %p899
    %p901 = scmp.ne.s32.totalorder %s887, %s888
    %p902 = scmp.eq.s32.totalorder %s88, 1
    %p903 = por %p901, %p902
    %p905 = scmp.ne.s32.totalorder %s888, %s904
    %p906 = scmp.eq.s32.totalorder %s88, 0
    %p907 = por %p905, %p906
    %p908 = scmp.le.s32.totalorder 1, %s82
    %p909 = scmp.lt.s32.totalorder %s82, 3
    %p910 = pnand %p908, %p909
    %p911 = pneg %p910
    // Predicated region
    $region9: #{titok_forward.1} parent=5 // pred_check
      _
    $region10: #{titok_forward.1} parent=5 // pred_check_branch
      %913 = sbr.rel (%p910) target = $region12
    $region11: #{titok_forward.1} parent=5 // pred_region
      %s914 = ssub.s32 %s82, 1
      // Predicated region
      $region13: #{titok_forward.1} parent=11 // pred_check
        %p915 = pneg %p129
      $region14: #{titok_forward.1} parent=11 // pred_check_branch
        %917 = sbr.rel (%p915) target = $region16
      $region15: #{titok_forward.1} parent=11 // pred_region
        _
      $region16: #{titok_forward.1} parent=11 // pred_fallthru
        _
      // Predicated region
      $region17: #{titok_forward.1} parent=11 // pred_check
        %p918 = pneg %p150
      $region18: #{titok_forward.1} parent=11 // pred_check_branch
        %920 = sbr.rel (%p918) target = $region20
      $region19: #{titok_forward.1} parent=11 // pred_region
        _
      $region20: #{titok_forward.1} parent=11 // pred_fallthru
        _
      // Predicated region
      $region21: #{titok_forward.1} parent=11 // pred_check
        %p921 = pneg %p171
      $region22: #{titok_forward.1} parent=11 // pred_check_branch
        %923 = sbr.rel (%p921) target = $region24
      $region23: #{titok_forward.1} parent=11 // pred_region
        _
      $region24: #{titok_forward.1} parent=11 // pred_fallthru
        _
      // Predicated region
      $region25: #{titok_forward.1} parent=11 // pred_check
        %p924 = pneg %p192
      $region26: #{titok_forward.1} parent=11 // pred_check_branch
        %926 = sbr.rel (%p924) target = $region28
      $region27: #{titok_forward.1} parent=11 // pred_region
        _
      $region28: #{titok_forward.1} parent=11 // pred_fallthru
        _
      // Predicated region
      $region29: #{titok_forward.1} parent=11 // pred_check
        %p927 = pneg %p213
      $region30: #{titok_forward.1} parent=11 // pred_check_branch
        %929 = sbr.rel (%p927) target = $region32
      $region31: #{titok_forward.1} parent=11 // pred_region
        _
      $region32: #{titok_forward.1} parent=11 // pred_fallthru
        _
      // Predicated region
      $region33: #{titok_forward.1} parent=11 // pred_check
        %p930 = pneg %p234
      $region34: #{titok_forward.1} parent=11 // pred_check_branch
        %932 = sbr.rel (%p930) target = $region36
      $region35: #{titok_forward.1} parent=11 // pred_region
        _
      $region36: #{titok_forward.1} parent=11 // pred_fallthru
        _
      // Predicated region
      $region37: #{titok_forward.1} parent=11 // pred_check
        %p933 = pneg %p255
      $region38: #{titok_forward.1} parent=11 // pred_check_branch
        %935 = sbr.rel (%p933) target = $region40
      $region39: #{titok_forward.1} parent=11 // pred_region
        _
      $region40: #{titok_forward.1} parent=11 // pred_fallthru
        _
      // Predicated region
      $region41: #{titok_forward.1} parent=11 // pred_check
        %p936 = pneg %p276
      $region42: #{titok_forward.1} parent=11 // pred_check_branch
        %938 = sbr.rel (%p936) target = $region44
      $region43: #{titok_forward.1} parent=11 // pred_region
        _
      $region44: #{titok_forward.1} parent=11 // pred_fallthru
        _
      // Predicated region
      $region45: #{titok_forward.1} parent=11 // pred_check
        %p939 = pneg %p297
      $region46: #{titok_forward.1} parent=11 // pred_check_branch
        %941 = sbr.rel (%p939) target = $region48
      $region47: #{titok_forward.1} parent=11 // pred_region
        _
      $region48: #{titok_forward.1} parent=11 // pred_fallthru
        _
      // Predicated region
      $region49: #{titok_forward.1} parent=11 // pred_check
        %p942 = pneg %p318
      $region50: #{titok_forward.1} parent=11 // pred_check_branch
        %944 = sbr.rel (%p942) target = $region52
      $region51: #{titok_forward.1} parent=11 // pred_region
        _
      $region52: #{titok_forward.1} parent=11 // pred_fallthru
        _
      // Predicated region
      $region53: #{titok_forward.1} parent=11 // pred_check
        %p945 = pneg %p339
      $region54: #{titok_forward.1} parent=11 // pred_check_branch
        %947 = sbr.rel (%p945) target = $region56
      $region55: #{titok_forward.1} parent=11 // pred_region
        _
      $region56: #{titok_forward.1} parent=11 // pred_fallthru
        _
      // Predicated region
      $region57: #{titok_forward.1} parent=11 // pred_check
        %p948 = pneg %p360
      $region58: #{titok_forward.1} parent=11 // pred_check_branch
        %950 = sbr.rel (%p948) target = $region60
      $region59: #{titok_forward.1} parent=11 // pred_region
        _
      $region60: #{titok_forward.1} parent=11 // pred_fallthru
        _
      // Predicated region
      $region61: #{titok_forward.1} parent=11 // pred_check
        %p951 = pneg %p381
      $region62: #{titok_forward.1} parent=11 // pred_check_branch
        %953 = sbr.rel (%p951) target = $region64
      $region63: #{titok_forward.1} parent=11 // pred_region
        _
      $region64: #{titok_forward.1} parent=11 // pred_fallthru
        _
      // Predicated region
      $region65: #{titok_forward.1} parent=11 // pred_check
        %p954 = pneg %p402
      $region66: #{titok_forward.1} parent=11 // pred_check_branch
        %956 = sbr.rel (%p954) target = $region68
      $region67: #{titok_forward.1} parent=11 // pred_region
        _
      $region68: #{titok_forward.1} parent=11 // pred_fallthru
        _
      // Predicated region
      $region69: #{titok_forward.1} parent=11 // pred_check
        %p957 = pneg %p423
      $region70: #{titok_forward.1} parent=11 // pred_check_branch
        %959 = sbr.rel (%p957) target = $region72
      $region71: #{titok_forward.1} parent=11 // pred_region
        _
      $region72: #{titok_forward.1} parent=11 // pred_fallthru
        _
      // Predicated region
      $region73: #{titok_forward.1} parent=11 // pred_check
        %p960 = pneg %p444
      $region74: #{titok_forward.1} parent=11 // pred_check_branch
        %962 = sbr.rel (%p960) target = $region76
      $region75: #{titok_forward.1} parent=11 // pred_region
        _
      $region76: #{titok_forward.1} parent=11 // pred_fallthru
        _
      // Predicated region
      $region77: #{titok_forward.1} parent=11 // pred_check
        %p963 = pneg %p465
      $region78: #{titok_forward.1} parent=11 // pred_check_branch
        %965 = sbr.rel (%p963) target = $region80
      $region79: #{titok_forward.1} parent=11 // pred_region
        _
      $region80: #{titok_forward.1} parent=11 // pred_fallthru
        _
      // Predicated region
      $region81: #{titok_forward.1} parent=11 // pred_check
        %p966 = pneg %p486
      $region82: #{titok_forward.1} parent=11 // pred_check_branch
        %968 = sbr.rel (%p966) target = $region84
      $region83: #{titok_forward.1} parent=11 // pred_region
        _
      $region84: #{titok_forward.1} parent=11 // pred_fallthru
        _
      // Predicated region
      $region85: #{titok_forward.1} parent=11 // pred_check
        %p969 = pneg %p507
      $region86: #{titok_forward.1} parent=11 // pred_check_branch
        %971 = sbr.rel (%p969) target = $region88
      $region87: #{titok_forward.1} parent=11 // pred_region
        _
      $region88: #{titok_forward.1} parent=11 // pred_fallthru
        _
      // Predicated region
      $region89: #{titok_forward.1} parent=11 // pred_check
        %p972 = pneg %p528
      $region90: #{titok_forward.1} parent=11 // pred_check_branch
        %974 = sbr.rel (%p972) target = $region92
      $region91: #{titok_forward.1} parent=11 // pred_region
        _
      $region92: #{titok_forward.1} parent=11 // pred_fallthru
        _
      // Predicated region
      $region93: #{titok_forward.1} parent=11 // pred_check
        %p975 = pneg %p549
      $region94: #{titok_forward.1} parent=11 // pred_check_branch
        %977 = sbr.rel (%p975) target = $region96
      $region95: #{titok_forward.1} parent=11 // pred_region
        _
      $region96: #{titok_forward.1} parent=11 // pred_fallthru
        _
      // Predicated region
      $region97: #{titok_forward.1} parent=11 // pred_check
        %p978 = pneg %p570
      $region98: #{titok_forward.1} parent=11 // pred_check_branch
        %980 = sbr.rel (%p978) target = $region100
      $region99: #{titok_forward.1} parent=11 // pred_region
        _
      $region100: #{titok_forward.1} parent=11 // pred_fallthru
        _
      // Predicated region
      $region101: #{titok_forward.1} parent=11 // pred_check
        %p981 = pneg %p591
      $region102: #{titok_forward.1} parent=11 // pred_check_branch
        %983 = sbr.rel (%p981) target = $region104
      $region103: #{titok_forward.1} parent=11 // pred_region
        _
      $region104: #{titok_forward.1} parent=11 // pred_fallthru
        _
      // Predicated region
      $region105: #{titok_forward.1} parent=11 // pred_check
        %p984 = pneg %p612
      $region106: #{titok_forward.1} parent=11 // pred_check_branch
        %986 = sbr.rel (%p984) target = $region108
      $region107: #{titok_forward.1} parent=11 // pred_region
        _
      $region108: #{titok_forward.1} parent=11 // pred_fallthru
        _
      // Predicated region
      $region109: #{titok_forward.1} parent=11 // pred_check
        %p987 = pneg %p633
      $region110: #{titok_forward.1} parent=11 // pred_check_branch
        %989 = sbr.rel (%p987) target = $region112
      $region111: #{titok_forward.1} parent=11 // pred_region
        _
      $region112: #{titok_forward.1} parent=11 // pred_fallthru
        _
      // Predicated region
      $region113: #{titok_forward.1} parent=11 // pred_check
        %p990 = pneg %p654
      $region114: #{titok_forward.1} parent=11 // pred_check_branch
        %992 = sbr.rel (%p990) target = $region116
      $region115: #{titok_forward.1} parent=11 // pred_region
        _
      $region116: #{titok_forward.1} parent=11 // pred_fallthru
        _
      // Predicated region
      $region117: #{titok_forward.1} parent=11 // pred_check
        %p993 = pneg %p675
      $region118: #{titok_forward.1} parent=11 // pred_check_branch
        %995 = sbr.rel (%p993) target = $region120
      $region119: #{titok_forward.1} parent=11 // pred_region
        _
      $region120: #{titok_forward.1} parent=11 // pred_fallthru
        _
      // Predicated region
      $region121: #{titok_forward.1} parent=11 // pred_check
        %p996 = pneg %p696
      $region122: #{titok_forward.1} parent=11 // pred_check_branch
        %998 = sbr.rel (%p996) target = $region124
      $region123: #{titok_forward.1} parent=11 // pred_region
        _
      $region124: #{titok_forward.1} parent=11 // pred_fallthru
        _
      // Predicated region
      $region125: #{titok_forward.1} parent=11 // pred_check
        %p999 = pneg %p717
      $region126: #{titok_forward.1} parent=11 // pred_check_branch
        %1001 = sbr.rel (%p999) target = $region128
      $region127: #{titok_forward.1} parent=11 // pred_region
        _
      $region128: #{titok_forward.1} parent=11 // pred_fallthru
        _
      // Predicated region
      $region129: #{titok_forward.1} parent=11 // pred_check
        %p1002 = pneg %p738
      $region130: #{titok_forward.1} parent=11 // pred_check_branch
        %1004 = sbr.rel (%p1002) target = $region132
      $region131: #{titok_forward.1} parent=11 // pred_region
        _
      $region132: #{titok_forward.1} parent=11 // pred_fallthru
        _
      // Predicated region
      $region133: #{titok_forward.1} parent=11 // pred_check
        %p1005 = pneg %p759
      $region134: #{titok_forward.1} parent=11 // pred_check_branch
        %1007 = sbr.rel (%p1005) target = $region136
      $region135: #{titok_forward.1} parent=11 // pred_region
        _
      $region136: #{titok_forward.1} parent=11 // pred_fallthru
        _
      // Predicated region
      $region137: #{titok_forward.1} parent=11 // pred_check
        %p1008 = pneg %p780
      $region138: #{titok_forward.1} parent=11 // pred_check_branch
        %1010 = sbr.rel (%p1008) target = $region140
      $region139: #{titok_forward.1} parent=11 // pred_region
        _
      $region140: #{titok_forward.1} parent=11 // pred_fallthru
        _
      // Predicated region
      $region141: #{titok_forward.1} parent=11 // pred_check
        %p1011 = pneg %p801
      $region142: #{titok_forward.1} parent=11 // pred_check_branch
        %1013 = sbr.rel (%p1011) target = $region144
      $region143: #{titok_forward.1} parent=11 // pred_region
        _
      $region144: #{titok_forward.1} parent=11 // pred_fallthru
        _
      // Predicated region
      $region145: #{titok_forward.1} parent=11 // pred_check
        %p1014 = pneg %p822
      $region146: #{titok_forward.1} parent=11 // pred_check_branch
        %1016 = sbr.rel (%p1014) target = $region148
      $region147: #{titok_forward.1} parent=11 // pred_region
        _
      $region148: #{titok_forward.1} parent=11 // pred_fallthru
        _
    $region12: #{titok_forward.1} parent=5 // pred_fallthru
      _
    %p1017 = scmp.lt.s32.totalorder %s82, 2
    // Predicated region
    $region149: #{titok_forward.1} parent=5 // pred_check
      %p1018 = pneg %p1017
    $region150: #{titok_forward.1} parent=5 // pred_check_branch
      %1020 = sbr.rel (%p1018) target = $region152
    $region151: #{titok_forward.1} parent=5 // pred_region
      // Predicated region
      $region153: #{titok_forward.1} parent=151 // pred_check
        %p1021 = pneg %p102
      $region154: #{titok_forward.1} parent=151 // pred_check_branch
        %1023 = sbr.rel (%p1021) target = $region156
      $region155: #{titok_forward.1} parent=151 // pred_region
        %p1024 = scmp.lt.s32.totalorder %s82, 1
        %s1025 = scalar_select %p1024, %s82, 1
        %s1026 = smul.addr %s1025, 3
        %s1027 = smul.addr %s1026, 8
        %s1028 = scalar_lea.vmem %s1, %s1027
      $region156: #{titok_forward.1} parent=151 // pred_fallthru
        _
    $region152: #{titok_forward.1} parent=5 // pred_fallthru
      _
    %p1029 = scmp.le.s32.totalorder 1, %s82
    %p1030 = scmp.lt.s32.totalorder %s82, 3
    %p1031 = pnand %p1029, %p1030
    %p1032 = pneg %p1031
    // Predicated region
    $region157: #{titok_forward.1} parent=5 // pred_check
      _
    $region158: #{titok_forward.1} parent=5 // pred_check_branch
      %1034 = sbr.rel (%p1031) target = $region160
    $region159: #{titok_forward.1} parent=5 // pred_region
      %s1035 = ssub.s32 %s82, 1
      %p1036 = scmp.lt.s32.totalorder %s87, 1
      %s1037 = scalar_select %p1036, %s87, 1
      %s1038 = smul.addr %s1037, 3
      %s1039 = smul.addr %s1038, 8
      %s1040 = scalar_lea.vmem %s1, %s1039
      %p1041 = pneg %p108
      %p1042 = pneg %p105
      %p1043 = pneg %p129
      %p1044 = pneg %p126
      %p1045 = pneg %p150
      %p1046 = pneg %p147
      %p1047 = pneg %p171
      %p1048 = pneg %p168
      %p1049 = pneg %p192
      %p1050 = pneg %p189
      %p1051 = pneg %p213
      %p1052 = pneg %p210
      %p1053 = pneg %p234
      %p1054 = pneg %p231
      %p1055 = pneg %p255
      %p1056 = pneg %p252
      %p1057 = pneg %p276
      %p1058 = pneg %p273
      %p1059 = pneg %p297
      %p1060 = pneg %p294
      %p1061 = pneg %p318
      %p1062 = pneg %p315
      %p1063 = pneg %p339
      %p1064 = pneg %p336
      %p1065 = pneg %p360
      %p1066 = pneg %p357
      %p1067 = pneg %p381
      %p1068 = pneg %p378
      %p1069 = pneg %p402
      %p1070 = pneg %p399
      %p1071 = pneg %p423
      %p1072 = pneg %p420
      %p1073 = pneg %p444
      %p1074 = pneg %p441
      %p1075 = pneg %p465
      %p1076 = pneg %p462
      %p1077 = pneg %p486
      %p1078 = pneg %p483
      %p1079 = pneg %p507
      %p1080 = pneg %p504
      %p1081 = pneg %p528
      %p1082 = pneg %p525
      %p1083 = pneg %p549
      %p1084 = pneg %p546
      %p1085 = pneg %p570
      %p1086 = pneg %p567
      %p1087 = pneg %p591
      %p1088 = pneg %p588
      %p1089 = pneg %p612
      %p1090 = pneg %p609
      %p1091 = pneg %p633
      %p1092 = pneg %p630
      %p1093 = pneg %p654
      %p1094 = pneg %p651
      %p1095 = pneg %p675
      %p1096 = pneg %p672
      %p1097 = pneg %p696
      %p1098 = pneg %p693
      %p1099 = pneg %p717
      %p1100 = pneg %p714
      %p1101 = pneg %p738
      %p1102 = pneg %p735
      %p1103 = pneg %p759
      %p1104 = pneg %p756
      %p1105 = pneg %p780
      %p1106 = pneg %p777
      %p1107 = pneg %p801
      %p1108 = pneg %p798
      %p1109 = pneg %p822
      %p1110 = pneg %p819
      %p1111 = pneg %p848
      %p1112 = pneg %p845
      %p1113 = scmp.lt.s32.totalorder %s87, 1
      %s1114 = scalar_select %p1113, %s87, 1
      %s1115 = smul.addr %s1114, 3
      %s1116 = smul.addr %s1115, 8
      %s1117 = scalar_lea.vmem %s71, %s1116
      %p1118 = pneg %p874
      %p1119 = pneg %p871
      %p1120 = scmp.lt.s32.totalorder %s87, 1
      %s1121 = scalar_select %p1120, %s87, 1
      %s1122 = smul.addr %s1121, 8
      %s1123 = scalar_lea.vmem %s73, %s1122
      %p1124 = pneg %p900
      %p1125 = pneg %p897
      %p1126 = scmp.lt.s32.totalorder %s87, 1
      %s1127 = scalar_select %p1126, %s87, 1
      %s1128 = smul.addr %s1127, 8
      %s1129 = scalar_lea.vmem %s75, %s1128
      %p1130 = scmp.lt.s32.totalorder %s87, 1
      %s1131 = scalar_select %p1130, %s87, 1
      %s1132 = smul.addr %s1131, 3
      %s1133 = smul.addr %s1132, 8
      %s1134 = scalar_lea.vmem %s1, %s1133
      %p1135 = scmp.lt.s32.totalorder %s87, 1
      %s1136 = scalar_select %p1135, %s87, 1
      %s1137 = smul.addr %s1136, 3
      %s1138 = smul.addr %s1137, 8
      %s1139 = scalar_lea.vmem %s71, %s1138
      %p1140 = scmp.lt.s32.totalorder %s87, 1
      %s1141 = scalar_select %p1140, %s87, 1
      %s1142 = smul.addr %s1141, 8
      %s1143 = scalar_lea.vmem %s73, %s1142
      %p1144 = scmp.lt.s32.totalorder %s87, 1
      %s1145 = scalar_select %p1144, %s87, 1
      %s1146 = smul.addr %s1145, 8
      %s1147 = scalar_lea.vmem %s75, %s1146
      %v1149 = vld [vmem:[%s1134] sm:$0xff]
      %v1150 = vld [vmem:[%s1134 + $0x8] sm:$0xff]
      %v1151 = vld [vmem:[%s1134 + $0x10] sm:$0xff]
      %v1152 = vld [vmem:[%s3] sm:$0xff]
      %v1153 = vld [vmem:[%s3 + $0x8] sm:$0xff]
      %v1154 = vld [vmem:[%s3 + $0x10] sm:$0xff]
      %v1155 = vld [vmem:[%s3 + $0x18] sm:$0xff]
      %v1156 = vld [vmem:[%s3 + $0x20] sm:$0xff]
      %v1157 = vld [vmem:[%s3 + $0x28] sm:$0xff]
      %v1158 = vld [vmem:[%s3 + $0x30] sm:$0xff]
      %v1159 = vld [vmem:[%s3 + $0x38] sm:$0xff]
      %v1160 = vld [vmem:[%s3 + $0x40] sm:$0xff]
      %v1161 = vld [vmem:[%s3 + $0x48] sm:$0xff]
      %v1162 = vld [vmem:[%s3 + $0x50] sm:$0xff]
      %v1163 = vld [vmem:[%s3 + $0x58] sm:$0xff]
      %v1164 = vld [vmem:[%s3 + $0x60] sm:$0xff]
      %v1165 = vld [vmem:[%s3 + $0x68] sm:$0xff]
      %v1166 = vld [vmem:[%s3 + $0x70] sm:$0xff]
      %v1167 = vld [vmem:[%s3 + $0x78] sm:$0xff]
      %v1168 = vld [vmem:[%s3 + $0x80] sm:$0xff]
      %v1169 = vld [vmem:[%s3 + $0x88] sm:$0xff]
      %v1170 = vld [vmem:[%s3 + $0x90] sm:$0xff]
      %v1171 = vld [vmem:[%s3 + $0x98] sm:$0xff]
      %v1172 = vld [vmem:[%s3 + $0xa0] sm:$0xff]
      %v1173 = vld [vmem:[%s3 + $0xa8] sm:$0xff]
      %v1174 = vld [vmem:[%s3 + $0xb0] sm:$0xff]
      %v1175 = vld [vmem:[%s3 + $0xb8] sm:$0xff]
      %v1176 = vld [vmem:[%s3 + $0xc0] sm:$0xff]
      %v1177 = vld [vmem:[%s3 + $0xc8] sm:$0xff]
      %v1178 = vld [vmem:[%s3 + $0xd0] sm:$0xff]
      %v1179 = vld [vmem:[%s3 + $0xd8] sm:$0xff]
      %v1180 = vld [vmem:[%s3 + $0xe0] sm:$0xff]
      %v1181 = vld [vmem:[%s3 + $0xe8] sm:$0xff]
      %v1182 = vld [vmem:[%s3 + $0xf0] sm:$0xff]
      %v1183 = vld [vmem:[%s3 + $0xf8] sm:$0xff]
      %v1184 = vld [vmem:[%s3 + $0x100] sm:$0xff]
      %v1185 = vld [vmem:[%s3 + $0x108] sm:$0xff]
      %v1186 = vld [vmem:[%s3 + $0x110] sm:$0xff]
      %v1187 = vld [vmem:[%s3 + $0x118] sm:$0xff]
      %v1188 = vld [vmem:[%s3 + $0x120] sm:$0xff]
      %v1189 = vld [vmem:[%s3 + $0x128] sm:$0xff]
      %v1190 = vld [vmem:[%s3 + $0x130] sm:$0xff]
      %v1191 = vld [vmem:[%s3 + $0x138] sm:$0xff]
      %v1192 = vld [vmem:[%s3 + $0x140] sm:$0xff]
      %v1193 = vld [vmem:[%s3 + $0x148] sm:$0xff]
      %v1194 = vld [vmem:[%s3 + $0x150] sm:$0xff]
      %v1195 = vld [vmem:[%s3 + $0x158] sm:$0xff]
      %v1196 = vld [vmem:[%s3 + $0x160] sm:$0xff]
      %v1197 = vld [vmem:[%s3 + $0x168] sm:$0xff]
      %v1198 = vld [vmem:[%s3 + $0x170] sm:$0xff]
      %v1199 = vld [vmem:[%s3 + $0x178] sm:$0xff]
      %v1200 = vpack.c.bf16 %v1149, %v1149
      %v1201 = vpack.c.bf16 %v1150, %v1150
      %v1202 = vpack.c.bf16 %v1151, %v1151
      %v1203 = vpack.c.bf16 %v1153, %v1152
      %v1204 = vpack.c.bf16 %v1155, %v1154
      %v1205 = vpack.c.bf16 %v1157, %v1156
      %v1206 = vpack.c.bf16 %v1159, %v1158
      %v1207 = vpack.c.bf16 %v1161, %v1160
      %v1208 = vpack.c.bf16 %v1163, %v1162
      %v1209 = vpack.c.bf16 %v1165, %v1164
      %v1210 = vpack.c.bf16 %v1167, %v1166
      %v1211 = vpack.c.bf16 %v1169, %v1168
      %v1212 = vpack.c.bf16 %v1171, %v1170
      %v1213 = vpack.c.bf16 %v1173, %v1172
      %v1214 = vpack.c.bf16 %v1175, %v1174
      %v1215 = vpack.c.bf16 %v1177, %v1176
      %v1216 = vpack.c.bf16 %v1179, %v1178
      %v1217 = vpack.c.bf16 %v1181, %v1180
      %v1218 = vpack.c.bf16 %v1183, %v1182
      %v1219 = vpack.c.bf16 %v1185, %v1184
      %v1220 = vpack.c.bf16 %v1187, %v1186
      %v1221 = vpack.c.bf16 %v1189, %v1188
      %v1222 = vpack.c.bf16 %v1191, %v1190
      %v1223 = vpack.c.bf16 %v1193, %v1192
      %v1224 = vpack.c.bf16 %v1195, %v1194
      %v1225 = vpack.c.bf16 %v1197, %v1196
      %v1226 = vpack.c.bf16 %v1199, %v1198
      %v1227 = vld [vmem:[%s5] sm:$0x1]
      %v1229 = vperm.slane %v1227, 0
      %1231 = vmatpush.bf16.msra.mxu0 %v1210
      %1232 = vmatpush.bf16.msra.mxu0 %v1209
      %1233 = vmatpush.bf16.msra.mxu0 %v1208
      %1234 = vmatpush.bf16.msra.mxu0 %v1207
      %1235 = vmatpush.bf16.msra.mxu0 %v1206
      %1236 = vmatpush.bf16.msra.mxu0 %v1205
      %1237 = vmatpush.bf16.msra.mxu0 %v1204
      %1238 = vmatpush.bf16.msra.mxu0 %v1203
      %1239 = vmatmul.bf16.gmra.mxu0 %v1200
      %v1240 = vpop.f32.mrf.mxu0
      %v1241 = vadd.f32 %v1229, %v1240
      %v1242 = vpop.f32.mrf.mxu0
      %1243 = vdwg.mxu0
      %1244 = vmatpush.bf16.msra.mxu0 %v1218
      %1245 = vmatpush.bf16.msra.mxu0 %v1217
      %1246 = vmatpush.bf16.msra.mxu0 %v1216
      %1247 = vmatpush.bf16.msra.mxu0 %v1215
      %1248 = vmatpush.bf16.msra.mxu0 %v1214
      %1249 = vmatpush.bf16.msra.mxu0 %v1213
      %1250 = vmatpush.bf16.msra.mxu0 %v1212
      %1251 = vmatpush.bf16.msra.mxu0 %v1211
      %1252 = vmatmul.bf16.gmra.mxu0 %v1201
      %v1253 = vpop.f32.mrf.mxu0
      %v1254 = vadd.f32 %v1241, %v1253
      %v1255 = vpop.f32.mrf.mxu0
      %1256 = vdwg.mxu0
      %1257 = vmatpush.bf16.msra.mxu0 %v1226
      %1258 = vmatpush.bf16.msra.mxu0 %v1225
      %1259 = vmatpush.bf16.msra.mxu0 %v1224
      %1260 = vmatpush.bf16.msra.mxu0 %v1223
      %1261 = vmatpush.bf16.msra.mxu0 %v1222
      %1262 = vmatpush.bf16.msra.mxu0 %v1221
      %1263 = vmatpush.bf16.msra.mxu0 %v1220
      %1264 = vmatpush.bf16.msra.mxu0 %v1219
      %1265 = vmatmul.bf16.gmra.mxu0 %v1202
      %v1266 = vpop.f32.mrf.mxu0
      %v1267 = vadd.f32 %v1254, %v1266
      %v1268 = vpop.f32.mrf.mxu0
      %1269 = vdwg.mxu0
      %v1270 = vld [vmem:[%s7] sm:$0xff]
      %v1271 = vld [vmem:[%s9] sm:$0xff]
      %v1272 = vld [vmem:[%s9 + $0x8] sm:$0xff]
      %v1273 = vadd.f32 %v1267, %v1271
      %v1274 = vadd.f32 %v1270, %v1272
      %v1275 = vld [vmem:[%s15] sm:$0x1]
      %v1276 = vld [vmem:[%s17] sm:$0x1]
      %vm1277 = vcmask 261120
      %v1278 = vsel %vm1277, %v1273, 0.0
      %1279 = vadd.xlane.f32.xlu0 %v1278
      %v1280 = vpop.xlane.xlu0 %1279
      %v1281 = vsel %vm1277, %v1274, 0.0
      %1282 = vadd.xlane.f32.xlu0 %v1281
      %v1283 = vpop.xlane.xlu0 %1282
      %v1284 = vrcp.pop 32.0
      %v1285 = vmul.f32 32.0, %v1284
      %v1286 = vsub.f32 1.0, %v1285
      %v1287 = vmul.f32 %v1284, %v1286
      %v1288 = vadd.f32 %v1284, %v1287
      %vm1289 = vweird.f32 %v1284
      %v1290 = vsel %vm1289, %v1284, %v1288
      %v1291 = vmul.f32 %v1280, %v1290
      %v1292 = vmul.f32 %v1283, %v1290
      %v1293 = vsub.f32 %v1273, %v1291
      %v1294 = vsub.f32 %v1274, %v1292
      %v1295 = vmul.f32 %v1293, %v1293
      %v1296 = vmul.f32 %v1294, %v1294
      %v1297 = vsel %vm1277, %v1295, 0.0
      %1298 = vadd.xlane.f32.xlu0 %v1297
      %v1299 = vpop.xlane.xlu0 %1298
      %v1300 = vsel %vm1277, %v1296, 0.0
      %1301 = vadd.xlane.f32.xlu0 %v1300
      %v1302 = vpop.xlane.xlu0 %1301
      %v1303 = vmul.f32 %v1299, %v1290
      %v1304 = vmul.f32 %v1302, %v1290
      %v1305 = vadd.f32 %v1303, 1e-05
      %v1306 = vadd.f32 %v1304, 1e-05
      %v1307 = vrsqrt.pop %v1305
      %v1308 = vmul.f32 %v1307, %v1305
      %v1309 = vmul.f32 %v1308, %v1307
      %v1310 = vmul.f32 0.5, %v1309
      %v1311 = vsub.f32 1.5, %v1310
      %v1312 = vmul.f32 %v1307, %v1311
      %vm1313 = vweird.f32 %v1305
      %vm1314 = vweird.f32 %v1307
      %vm1315 = vmor %vm1313, %vm1314
      %v1316 = vsel %vm1315, %v1307, %v1312
      %v1317 = vrsqrt.pop %v1306
      %v1318 = vmul.f32 %v1317, %v1306
      %v1319 = vmul.f32 %v1318, %v1317
      %v1320 = vmul.f32 0.5, %v1319
      %v1321 = vsub.f32 1.5, %v1320
      %v1322 = vmul.f32 %v1317, %v1321
      %vm1323 = vweird.f32 %v1306
      %vm1324 = vweird.f32 %v1317
      %vm1325 = vmor %vm1323, %vm1324
      %v1326 = vsel %vm1325, %v1317, %v1322
      %v1327 = vmul.f32 %v1293, %v1316
      %v1328 = vmul.f32 %v1294, %v1326
      %v1330 = vperm.slane %v1275, 0
      %v1332 = vmul.f32 %v1327, %v1330
      %v1333 = vmul.f32 %v1328, %v1330
      %v1335 = vperm.slane %v1276, 0
      %v1337 = vadd.f32 %v1332, %v1335
      %v1338 = vadd.f32 %v1333, %v1335
      %v1339 = vld [vmem:[%s19] sm:$0xff]
      %v1340 = vld [vmem:[%s19 + $0x8] sm:$0xff]
      %v1341 = vld [vmem:[%s19 + $0x10] sm:$0xff]
      %v1342 = vld [vmem:[%s19 + $0x18] sm:$0xff]
      %v1343 = vpack.c.bf16 %v1338, %v1337
      %v1344 = vpack.c.bf16 %v1340, %v1339
      %v1345 = vpack.c.bf16 %v1342, %v1341
      %v1346 = vld [vmem:[%s21] sm:$0x1]
      %v1348 = vperm.slane %v1346, 0
      %v1351 = vsel %vm1277, %v1343, 0
      %1353 = vmatpush.bf16.msra.mxu0 0
      %1354 = vmatpush.bf16.msra.mxu0 0
      %1355 = vmatpush.bf16.msra.mxu0 0
      %1356 = vmatpush.bf16.msra.mxu0 0
      %1357 = vmatpush.bf16.msra.mxu0 0
      %1358 = vmatpush.bf16.msra.mxu0 0
      %1359 = vmatpush.bf16.msra.mxu0 %v1345
      %1360 = vmatpush.bf16.msra.mxu0 %v1344
      %1361 = vmatmul.bf16.gmra.mxu0 %v1351
      %v1362 = vpop.f32.mrf.mxu0
      %v1363 = vadd.f32 %v1348, %v1362
      %v1364 = vpop.f32.mrf.mxu0
      %v1365 = vadd.f32 %v1348, %v1364
      %1366 = vdwg.mxu0
      %v1367 = vpack.c.bf16 %v1365, %v1363
      %1369 = vrot.lane.b32.xlu0 %v1367, 96
      %v1370 = vpop.permute.xlu0 %1369
      %vm1371 = vcmask 64512
      %v1373 = vsel %vm1371, %v1367, 0
      %v1376 = vsel %vm1371, %v1370, 0
      %1378 = vmatpush.bf16.xpose.msra.mxu0 0
      %1379 = vmatpush.bf16.xpose.msra.mxu0 0
      %1380 = vmatpush.bf16.xpose.msra.mxu0 0
      %1381 = vmatpush.bf16.xpose.msra.mxu0 0
      %1382 = vmatpush.bf16.xpose.msra.mxu0 0
      %1383 = vmatpush.bf16.xpose.msra.mxu0 0
      %1384 = vmatpush.bf16.xpose.msra.mxu0 0
      %1385 = vmatpush.bf16.xpose.msra.mxu0 %v1376
      %1386 = vmatmul.bf16.gmra.mxu0 %v1373
      %v1387 = vpop.f32.mrf.mxu0
      %v1388 = vadd.f32 0.0, %v1387
      %v1389 = vpop.f32.mrf.mxu0
      %v1390 = vadd.f32 0.0, %v1389
      %1391 = vdwg.mxu0
      %v1392 = vmul.f32 %v1388, 0.35355338
      %v1393 = vmul.f32 %v1390, 0.35355338
      %vm1394 = vcmask 130048
      %v1395 = vsel %vm1394, %v1392, -inf
      %1396 = vmax.xlane.f32.xlu0 %v1395
      %v1397 = vpop.xlane.xlu0 %1396
      %v1398 = vsel %vm1394, %v1393, -inf
      %1399 = vmax.xlane.f32.xlu0 %v1398
      %v1400 = vpop.xlane.xlu0 %1399
      %v1401 = vsub.f32 %v1392, %v1397
      %v1402 = vsub.f32 %v1393, %v1400
      %v1403 = vmul.f32 %v1401, 1.442695
      %v1404 = vpow.pop %v1403
      %v1405 = vmul.f32 %v1402, 1.442695
      %v1406 = vpow.pop %v1405
      %v1407 = vsel %vm1394, %v1404, 0.0
      %1408 = vadd.xlane.f32.xlu0 %v1407
      %v1409 = vpop.xlane.xlu0 %1408
      %v1410 = vsel %vm1394, %v1406, 0.0
      %1411 = vadd.xlane.f32.xlu0 %v1410
      %v1412 = vpop.xlane.xlu0 %1411
      %v1413 = vrcp.pop %v1409
      %v1414 = vrcp.pop %v1412
      %v1415 = vmul.f32 %v1404, %v1413
      %v1416 = vmul.f32 %v1406, %v1414
      %v1417 = vpack.c.bf16 %v1416, %v1415
      %1418 = vrot.lane.b32.xlu0 %v1367, 64
      %v1419 = vpop.permute.xlu0 %1418
      %v1422 = vsel %vm1394, %v1417, 0
      %1424 = vmatpush.bf16.msra.mxu0 0
      %1425 = vmatpush.bf16.msra.mxu0 0
      %1426 = vmatpush.bf16.msra.mxu0 0
      %1427 = vmatpush.bf16.msra.mxu0 0
      %1428 = vmatpush.bf16.msra.mxu0 0
      %1429 = vmatpush.bf16.msra.mxu0 0
      %1430 = vmatpush.bf16.msra.mxu0 0
      %1431 = vmatpush.bf16.msra.mxu0 %v1419
      %1432 = vmatmul.bf16.gmra.mxu0 %v1422
      %v1433 = vpop.f32.mrf.mxu0
      %v1434 = vadd.f32 0.0, %v1433
      %v1435 = vpop.f32.mrf.mxu0
      %v1436 = vadd.f32 0.0, %v1435
      %1437 = vdwg.mxu0
      %1438 = vrot.lane.b32.xlu0 %v1367, 120
      %v1439 = vpop.permute.xlu0 %1438
      %1440 = vrot.lane.b32.xlu0 %v1367, 88
      %v1441 = vpop.permute.xlu0 %1440
      %v1443 = vsel %vm1371, %v1439, 0
      %v1446 = vsel %vm1371, %v1441, 0
      %1448 = vmatpush.bf16.xpose.msra.mxu0 0
      %1449 = vmatpush.bf16.xpose.msra.mxu0 0
      %1450 = vmatpush.bf16.xpose.msra.mxu0 0
      %1451 = vmatpush.bf16.xpose.msra.mxu0 0
      %1452 = vmatpush.bf16.xpose.msra.mxu0 0
      %1453 = vmatpush.bf16.xpose.msra.mxu0 0
      %1454 = vmatpush.bf16.xpose.msra.mxu0 0
      %1455 = vmatpush.bf16.xpose.msra.mxu0 %v1446
      %1456 = vmatmul.bf16.gmra.mxu0 %v1443
      %v1457 = vpop.f32.mrf.mxu0
      %v1458 = vadd.f32 0.0, %v1457
      %v1459 = vpop.f32.mrf.mxu0
      %v1460 = vadd.f32 0.0, %v1459
      %1461 = vdwg.mxu0
      %v1462 = vmul.f32 %v1458, 0.35355338
      %v1463 = vmul.f32 %v1460, 0.35355338
      %v1464 = vsel %vm1394, %v1462, -inf
      %1465 = vmax.xlane.f32.xlu0 %v1464
      %v1466 = vpop.xlane.xlu0 %1465
      %v1467 = vsel %vm1394, %v1463, -inf
      %1468 = vmax.xlane.f32.xlu0 %v1467
      %v1469 = vpop.xlane.xlu0 %1468
      %v1470 = vsub.f32 %v1462, %v1466
      %v1471 = vsub.f32 %v1463, %v1469
      %v1472 = vmul.f32 %v1470, 1.442695
      %v1473 = vpow.pop %v1472
      %v1474 = vmul.f32 %v1471, 1.442695
      %v1475 = vpow.pop %v1474
      %v1476 = vsel %vm1394, %v1473, 0.0
      %1477 = vadd.xlane.f32.xlu0 %v1476
      %v1478 = vpop.xlane.xlu0 %1477
      %v1479 = vsel %vm1394, %v1475, 0.0
      %1480 = vadd.xlane.f32.xlu0 %v1479
      %v1481 = vpop.xlane.xlu0 %1480
      %v1482 = vrcp.pop %v1478
      %v1483 = vrcp.pop %v1481
      %v1484 = vmul.f32 %v1473, %v1482
      %v1485 = vmul.f32 %v1475, %v1483
      %v1486 = vpack.c.bf16 %v1485, %v1484
      %1487 = vrot.lane.b32.xlu0 %v1367, 56
      %v1488 = vpop.permute.xlu0 %1487
      %v1491 = vsel %vm1394, %v1486, 0
      %1493 = vmatpush.bf16.msra.mxu0 0
      %1494 = vmatpush.bf16.msra.mxu0 0
      %1495 = vmatpush.bf16.msra.mxu0 0
      %1496 = vmatpush.bf16.msra.mxu0 0
      %1497 = vmatpush.bf16.msra.mxu0 0
      %1498 = vmatpush.bf16.msra.mxu0 0
      %1499 = vmatpush.bf16.msra.mxu0 0
      %1500 = vmatpush.bf16.msra.mxu0 %v1488
      %1501 = vmatmul.bf16.gmra.mxu0 %v1491
      %v1502 = vpop.f32.mrf.mxu0
      %v1503 = vadd.f32 0.0, %v1502
      %v1504 = vpop.f32.mrf.mxu0
      %v1505 = vadd.f32 0.0, %v1504
      %1506 = vdwg.mxu0
      %1507 = vrot.lane.b32.xlu0 %v1367, 112
      %v1508 = vpop.permute.xlu0 %1507
      %1509 = vrot.lane.b32.xlu0 %v1367, 80
      %v1510 = vpop.permute.xlu0 %1509
      %v1512 = vsel %vm1371, %v1508, 0
      %v1515 = vsel %vm1371, %v1510, 0
      %1517 = vmatpush.bf16.xpose.msra.mxu0 0
      %1518 = vmatpush.bf16.xpose.msra.mxu0 0
      %1519 = vmatpush.bf16.xpose.msra.mxu0 0
      %1520 = vmatpush.bf16.xpose.msra.mxu0 0
      %1521 = vmatpush.bf16.xpose.msra.mxu0 0
      %1522 = vmatpush.bf16.xpose.msra.mxu0 0
      %1523 = vmatpush.bf16.xpose.msra.mxu0 0
      %1524 = vmatpush.bf16.xpose.msra.mxu0 %v1515
      %1525 = vmatmul.bf16.gmra.mxu0 %v1512
      %v1526 = vpop.f32.mrf.mxu0
      %v1527 = vadd.f32 0.0, %v1526
      %v1528 = vpop.f32.mrf.mxu0
      %v1529 = vadd.f32 0.0, %v1528
      %1530 = vdwg.mxu0
      %v1531 = vmul.f32 %v1527, 0.35355338
      %v1532 = vmul.f32 %v1529, 0.35355338
      %v1533 = vsel %vm1394, %v1531, -inf
      %1534 = vmax.xlane.f32.xlu0 %v1533
      %v1535 = vpop.xlane.xlu0 %1534
      %v1536 = vsel %vm1394, %v1532, -inf
      %1537 = vmax.xlane.f32.xlu0 %v1536
      %v1538 = vpop.xlane.xlu0 %1537
      %v1539 = vsub.f32 %v1531, %v1535
      %v1540 = vsub.f32 %v1532, %v1538
      %v1541 = vmul.f32 %v1539, 1.442695
      %v1542 = vpow.pop %v1541
      %v1543 = vmul.f32 %v1540, 1.442695
      %v1544 = vpow.pop %v1543
      %v1545 = vsel %vm1394, %v1542, 0.0
      %1546 = vadd.xlane.f32.xlu0 %v1545
      %v1547 = vpop.xlane.xlu0 %1546
      %v1548 = vsel %vm1394, %v1544, 0.0
      %1549 = vadd.xlane.f32.xlu0 %v1548
      %v1550 = vpop.xlane.xlu0 %1549
      %v1551 = vrcp.pop %v1547
      %v1552 = vrcp.pop %v1550
      %v1553 = vmul.f32 %v1542, %v1551
      %v1554 = vmul.f32 %v1544, %v1552
      %v1555 = vpack.c.bf16 %v1554, %v1553
      %1556 = vrot.lane.b32.xlu0 %v1367, 48
      %v1557 = vpop.permute.xlu0 %1556
      %v1560 = vsel %vm1394, %v1555, 0
      %1562 = vmatpush.bf16.msra.mxu0 0
      %1563 = vmatpush.bf16.msra.mxu0 0
      %1564 = vmatpush.bf16.msra.mxu0 0
      %1565 = vmatpush.bf16.msra.mxu0 0
      %1566 = vmatpush.bf16.msra.mxu0 0
      %1567 = vmatpush.bf16.msra.mxu0 0
      %1568 = vmatpush.bf16.msra.mxu0 0
      %1569 = vmatpush.bf16.msra.mxu0 %v1557
      %1570 = vmatmul.bf16.gmra.mxu0 %v1560
      %v1571 = vpop.f32.mrf.mxu0
      %v1572 = vadd.f32 0.0, %v1571
      %v1573 = vpop.f32.mrf.mxu0
      %v1574 = vadd.f32 0.0, %v1573
      %1575 = vdwg.mxu0
      %1576 = vrot.lane.b32.xlu0 %v1367, 104
      %v1577 = vpop.permute.xlu0 %1576
      %1578 = vrot.lane.b32.xlu0 %v1367, 72
      %v1579 = vpop.permute.xlu0 %1578
      %v1581 = vsel %vm1371, %v1577, 0
      %v1584 = vsel %vm1371, %v1579, 0
      %1586 = vmatpush.bf16.xpose.msra.mxu0 0
      %1587 = vmatpush.bf16.xpose.msra.mxu0 0
      %1588 = vmatpush.bf16.xpose.msra.mxu0 0
      %1589 = vmatpush.bf16.xpose.msra.mxu0 0
      %1590 = vmatpush.bf16.xpose.msra.mxu0 0
      %1591 = vmatpush.bf16.xpose.msra.mxu0 0
      %1592 = vmatpush.bf16.xpose.msra.mxu0 0
      %1593 = vmatpush.bf16.xpose.msra.mxu0 %v1584
      %1594 = vmatmul.bf16.gmra.mxu0 %v1581
      %v1595 = vpop.f32.mrf.mxu0
      %v1596 = vadd.f32 0.0, %v1595
      %v1597 = vpop.f32.mrf.mxu0
      %v1598 = vadd.f32 0.0, %v1597
      %1599 = vdwg.mxu0
      %v1600 = vmul.f32 %v1596, 0.35355338
      %v1601 = vmul.f32 %v1598, 0.35355338
      %v1602 = vsel %vm1394, %v1600, -inf
      %1603 = vmax.xlane.f32.xlu0 %v1602
      %v1604 = vpop.xlane.xlu0 %1603
      %v1605 = vsel %vm1394, %v1601, -inf
      %1606 = vmax.xlane.f32.xlu0 %v1605
      %v1607 = vpop.xlane.xlu0 %1606
      %v1608 = vsub.f32 %v1600, %v1604
      %v1609 = vsub.f32 %v1601, %v1607
      %v1610 = vmul.f32 %v1608, 1.442695
      %v1611 = vpow.pop %v1610
      %v1612 = vmul.f32 %v1609, 1.442695
      %v1613 = vpow.pop %v1612
      %v1614 = vsel %vm1394, %v1611, 0.0
      %1615 = vadd.xlane.f32.xlu0 %v1614
      %v1616 = vpop.xlane.xlu0 %1615
      %v1617 = vsel %vm1394, %v1613, 0.0
      %1618 = vadd.xlane.f32.xlu0 %v1617
      %v1619 = vpop.xlane.xlu0 %1618
      %v1620 = vrcp.pop %v1616
      %v1621 = vrcp.pop %v1619
      %v1622 = vmul.f32 %v1611, %v1620
      %v1623 = vmul.f32 %v1613, %v1621
      %v1624 = vpack.c.bf16 %v1623, %v1622
      %1625 = vrot.lane.b32.xlu0 %v1367, 40
      %v1626 = vpop.permute.xlu0 %1625
      %v1629 = vsel %vm1394, %v1624, 0
      %1631 = vmatpush.bf16.msra.mxu0 0
      %1632 = vmatpush.bf16.msra.mxu0 0
      %1633 = vmatpush.bf16.msra.mxu0 0
      %1634 = vmatpush.bf16.msra.mxu0 0
      %1635 = vmatpush.bf16.msra.mxu0 0
      %1636 = vmatpush.bf16.msra.mxu0 0
      %1637 = vmatpush.bf16.msra.mxu0 0
      %1638 = vmatpush.bf16.msra.mxu0 %v1626
      %1639 = vmatmul.bf16.gmra.mxu0 %v1629
      %v1640 = vpop.f32.mrf.mxu0
      %v1641 = vadd.f32 0.0, %v1640
      %v1642 = vpop.f32.mrf.mxu0
      %v1643 = vadd.f32 0.0, %v1642
      %1644 = vdwg.mxu0
      %1647 = vrot.lane.b32.xlu0 %v1503, 8
      %v1648 = vpop.permute.xlu0 %1647
      %1649 = vrot.lane.b32.xlu0 %v1505, 8
      %v1650 = vpop.permute.xlu0 %1649
      %1655 = vrot.lane.b32.xlu0 %v1572, 16
      %v1656 = vpop.permute.xlu0 %1655
      %1657 = vrot.lane.b32.xlu0 %v1574, 16
      %v1658 = vpop.permute.xlu0 %1657
      %1663 = vrot.lane.b32.xlu0 %v1641, 24
      %v1664 = vpop.permute.xlu0 %1663
      %1665 = vrot.lane.b32.xlu0 %v1643, 24
      %v1666 = vpop.permute.xlu0 %1665
      %v1669 = vsel %vm1371, %v1434, %v1648
      %v1670 = vsel %vm1371, %v1436, %v1650
      %v1671 = vsel %vm1394, %v1669, %v1656
      %v1672 = vsel %vm1394, %v1670, %v1658
      %vm1673 = vcmask 195584
      %v1674 = vsel %vm1673, %v1671, %v1664
      %v1675 = vsel %vm1673, %v1672, %v1666
      %v1676 = vld [vmem:[%s23] sm:$0xff]
      %v1677 = vld [vmem:[%s23 + $0x8] sm:$0xff]
      %v1678 = vld [vmem:[%s23 + $0x10] sm:$0xff]
      %v1679 = vld [vmem:[%s23 + $0x18] sm:$0xff]
      %v1680 = vpack.c.bf16 %v1675, %v1674
      %v1681 = vpack.c.bf16 %v1677, %v1676
      %v1682 = vpack.c.bf16 %v1679, %v1678
      %v1684 = vsel %vm1277, %v1680, 0
      %1686 = vmatpush.bf16.msra.mxu0 0
      %1687 = vmatpush.bf16.msra.mxu0 0
      %1688 = vmatpush.bf16.msra.mxu0 0
      %1689 = vmatpush.bf16.msra.mxu0 0
      %1690 = vmatpush.bf16.msra.mxu0 0
      %1691 = vmatpush.bf16.msra.mxu0 0
      %1692 = vmatpush.bf16.msra.mxu0 %v1682
      %1693 = vmatpush.bf16.msra.mxu0 %v1681
      %1694 = vmatmul.bf16.gmra.mxu0 %v1684
      %v1695 = vpop.f32.mrf.mxu0
      %v1696 = vadd.f32 0.0, %v1695
      %v1697 = vpop.f32.mrf.mxu0
      %v1698 = vadd.f32 0.0, %v1697
      %1699 = vdwg.mxu0
      %v1700 = vadd.f32 %v1273, %v1696
      %v1701 = vadd.f32 %v1274, %v1698
      %v1702 = vld [vmem:[%s25] sm:$0x1]
      %v1704 = vperm.slane %v1702, 0
      %v1706 = vadd.f32 %v1700, %v1704
      %v1707 = vadd.f32 %v1701, %v1704
      %v1708 = vld [vmem:[%s27] sm:$0x1]
      %v1709 = vld [vmem:[%s29] sm:$0x1]
      %v1710 = vsel %vm1277, %v1706, 0.0
      %1711 = vadd.xlane.f32.xlu0 %v1710
      %v1712 = vpop.xlane.xlu0 %1711
      %v1713 = vsel %vm1277, %v1707, 0.0
      %1714 = vadd.xlane.f32.xlu0 %v1713
      %v1715 = vpop.xlane.xlu0 %1714
      %v1716 = vmul.f32 %v1712, %v1290
      %v1717 = vmul.f32 %v1715, %v1290
      %v1718 = vsub.f32 %v1706, %v1716
      %v1719 = vsub.f32 %v1707, %v1717
      %v1720 = vmul.f32 %v1718, %v1718
      %v1721 = vmul.f32 %v1719, %v1719
      %v1722 = vsel %vm1277, %v1720, 0.0
      %1723 = vadd.xlane.f32.xlu0 %v1722
      %v1724 = vpop.xlane.xlu0 %1723
      %v1725 = vsel %vm1277, %v1721, 0.0
      %1726 = vadd.xlane.f32.xlu0 %v1725
      %v1727 = vpop.xlane.xlu0 %1726
      %v1728 = vmul.f32 %v1724, %v1290
      %v1729 = vmul.f32 %v1727, %v1290
      %v1730 = vadd.f32 %v1728, 1e-05
      %v1731 = vadd.f32 %v1729, 1e-05
      %v1732 = vrsqrt.pop %v1730
      %v1733 = vmul.f32 %v1732, %v1730
      %v1734 = vmul.f32 %v1733, %v1732
      %v1735 = vmul.f32 0.5, %v1734
      %v1736 = vsub.f32 1.5, %v1735
      %v1737 = vmul.f32 %v1732, %v1736
      %vm1738 = vweird.f32 %v1730
      %vm1739 = vweird.f32 %v1732
      %vm1740 = vmor %vm1738, %vm1739
      %v1741 = vsel %vm1740, %v1732, %v1737
      %v1742 = vrsqrt.pop %v1731
      %v1743 = vmul.f32 %v1742, %v1731
      %v1744 = vmul.f32 %v1743, %v1742
      %v1745 = vmul.f32 0.5, %v1744
      %v1746 = vsub.f32 1.5, %v1745
      %v1747 = vmul.f32 %v1742, %v1746
      %vm1748 = vweird.f32 %v1731
      %vm1749 = vweird.f32 %v1742
      %vm1750 = vmor %vm1748, %vm1749
      %v1751 = vsel %vm1750, %v1742, %v1747
      %v1752 = vmul.f32 %v1718, %v1741
      %v1753 = vmul.f32 %v1719, %v1751
      %v1755 = vperm.slane %v1708, 0
      %v1757 = vmul.f32 %v1752, %v1755
      %v1758 = vmul.f32 %v1753, %v1755
      %v1760 = vperm.slane %v1709, 0
      %v1762 = vadd.f32 %v1757, %v1760
      %v1763 = vadd.f32 %v1758, %v1760
      %v1764 = vld [vmem:[%s31] sm:$0xff]
      %v1765 = vld [vmem:[%s31 + $0x8] sm:$0xff]
      %v1766 = vld [vmem:[%s31 + $0x10] sm:$0xff]
      %v1767 = vld [vmem:[%s31 + $0x18] sm:$0xff]
      %v1768 = vpack.c.bf16 %v1763, %v1762
      %v1769 = vpack.c.bf16 %v1765, %v1764
      %v1770 = vpack.c.bf16 %v1767, %v1766
      %v1771 = vld [vmem:[%s33] sm:$0x1]
      %v1773 = vperm.slane %v1771, 0
      %v1776 = vsel %vm1277, %v1768, 0
      %1778 = vmatpush.bf16.msra.mxu0 0
      %1779 = vmatpush.bf16.msra.mxu0 0
      %1780 = vmatpush.bf16.msra.mxu0 0
      %1781 = vmatpush.bf16.msra.mxu0 0
      %1782 = vmatpush.bf16.msra.mxu0 0
      %1783 = vmatpush.bf16.msra.mxu0 0
      %1784 = vmatpush.bf16.msra.mxu0 %v1770
      %1785 = vmatpush.bf16.msra.mxu0 %v1769
      %1786 = vmatmul.bf16.gmra.mxu0 %v1776
      %v1787 = vpop.f32.mrf.mxu0
      %v1788 = vadd.f32 %v1773, %v1787
      %v1789 = vpop.f32.mrf.mxu0
      %v1790 = vadd.f32 %v1773, %v1789
      %1791 = vdwg.mxu0
      %v1792 = vmul.f32 %v1788, 0.5
      %v1793 = vmul.f32 %v1790, 0.5
      %v1794 = vmul.f32 %v1788, 0.044715
      %v1795 = vmul.f32 %v1790, 0.044715
      %v1796 = vmul.f32 %v1794, %v1788
      %v1797 = vmul.f32 %v1795, %v1790
      %v1798 = vmul.f32 %v1796, %v1788
      %v1799 = vmul.f32 %v1797, %v1790
      %v1800 = vadd.f32 %v1788, %v1798
      %v1801 = vadd.f32 %v1790, %v1799
      %v1802 = vmul.f32 %v1800, 0.7978846
      %v1803 = vmul.f32 %v1801, 0.7978846
      %v1804 = vtanh.pop %v1802
      %v1805 = vtanh.pop %v1803
      %v1806 = vadd.f32 %v1804, 1.0
      %v1807 = vadd.f32 %v1805, 1.0
      %v1808 = vmul.f32 %v1792, %v1806
      %v1809 = vmul.f32 %v1793, %v1807
      %v1810 = vld [vmem:[%s35] sm:$0xff]
      %v1811 = vld [vmem:[%s35 + $0x8] sm:$0xff]
      %v1812 = vld [vmem:[%s35 + $0x10] sm:$0xff]
      %v1813 = vld [vmem:[%s35 + $0x18] sm:$0xff]
      %v1814 = vld [vmem:[%s35 + $0x20] sm:$0xff]
      %v1815 = vld [vmem:[%s35 + $0x28] sm:$0xff]
      %v1816 = vld [vmem:[%s35 + $0x30] sm:$0xff]
      %v1817 = vld [vmem:[%s35 + $0x38] sm:$0xff]
      %v1818 = vld [vmem:[%s35 + $0x40] sm:$0xff]
      %v1819 = vld [vmem:[%s35 + $0x48] sm:$0xff]
      %v1820 = vld [vmem:[%s35 + $0x50] sm:$0xff]
      %v1821 = vld [vmem:[%s35 + $0x58] sm:$0xff]
      %v1822 = vld [vmem:[%s35 + $0x60] sm:$0xff]
      %v1823 = vld [vmem:[%s35 + $0x68] sm:$0xff]
      %v1824 = vld [vmem:[%s35 + $0x70] sm:$0xff]
      %v1825 = vld [vmem:[%s35 + $0x78] sm:$0xff]
      %v1826 = vpack.c.bf16 %v1809, %v1808
      %v1827 = vpack.c.bf16 %v1811, %v1810
      %v1828 = vpack.c.bf16 %v1813, %v1812
      %v1829 = vpack.c.bf16 %v1815, %v1814
      %v1830 = vpack.c.bf16 %v1817, %v1816
      %v1831 = vpack.c.bf16 %v1819, %v1818
      %v1832 = vpack.c.bf16 %v1821, %v1820
      %v1833 = vpack.c.bf16 %v1823, %v1822
      %v1834 = vpack.c.bf16 %v1825, %v1824
      %1835 = vmatpush.bf16.msra.mxu0 %v1834
      %1836 = vmatpush.bf16.msra.mxu0 %v1833
      %1837 = vmatpush.bf16.msra.mxu0 %v1832
      %1838 = vmatpush.bf16.msra.mxu0 %v1831
      %1839 = vmatpush.bf16.msra.mxu0 %v1830
      %1840 = vmatpush.bf16.msra.mxu0 %v1829
      %1841 = vmatpush.bf16.msra.mxu0 %v1828
      %1842 = vmatpush.bf16.msra.mxu0 %v1827
      %1843 = vmatmul.bf16.gmra.mxu0 %v1826
      %v1844 = vpop.f32.mrf.mxu0
      %v1845 = vadd.f32 0.0, %v1844
      %v1846 = vpop.f32.mrf.mxu0
      %v1847 = vadd.f32 0.0, %v1846
      %1848 = vdwg.mxu0
      %v1849 = vadd.f32 %v1706, %v1845
      %v1850 = vadd.f32 %v1707, %v1847
      %v1851 = vld [vmem:[%s37] sm:$0x1]
      %v1853 = vperm.slane %v1851, 0
      %v1855 = vadd.f32 %v1849, %v1853
      %v1856 = vadd.f32 %v1850, %v1853
      %s1857 = scalar_lea.vmem %s15, 1
      %v1858 = vld [vmem:[%s1857] sm:$0x1]
      %s1859 = scalar_lea.vmem %s17, 1
      %v1860 = vld [vmem:[%s1859] sm:$0x1]
      %v1861 = vsel %vm1277, %v1855, 0.0
      %1862 = vadd.xlane.f32.xlu0 %v1861
      %v1863 = vpop.xlane.xlu0 %1862
      %v1864 = vsel %vm1277, %v1856, 0.0
      %1865 = vadd.xlane.f32.xlu0 %v1864
      %v1866 = vpop.xlane.xlu0 %1865
      %v1867 = vmul.f32 %v1863, %v1290
      %v1868 = vmul.f32 %v1866, %v1290
      %v1869 = vsub.f32 %v1855, %v1867
      %v1870 = vsub.f32 %v1856, %v1868
      %v1871 = vmul.f32 %v1869, %v1869
      %v1872 = vmul.f32 %v1870, %v1870
      %v1873 = vsel %vm1277, %v1871, 0.0
      %1874 = vadd.xlane.f32.xlu0 %v1873
      %v1875 = vpop.xlane.xlu0 %1874
      %v1876 = vsel %vm1277, %v1872, 0.0
      %1877 = vadd.xlane.f32.xlu0 %v1876
      %v1878 = vpop.xlane.xlu0 %1877
      %v1879 = vmul.f32 %v1875, %v1290
      %v1880 = vmul.f32 %v1878, %v1290
      %v1881 = vadd.f32 %v1879, 1e-05
      %v1882 = vadd.f32 %v1880, 1e-05
      %v1883 = vrsqrt.pop %v1881
      %v1884 = vmul.f32 %v1883, %v1881
      %v1885 = vmul.f32 %v1884, %v1883
      %v1886 = vmul.f32 0.5, %v1885
      %v1887 = vsub.f32 1.5, %v1886
      %v1888 = vmul.f32 %v1883, %v1887
      %vm1889 = vweird.f32 %v1881
      %vm1890 = vweird.f32 %v1883
      %vm1891 = vmor %vm1889, %vm1890
      %v1892 = vsel %vm1891, %v1883, %v1888
      %v1893 = vrsqrt.pop %v1882
      %v1894 = vmul.f32 %v1893, %v1882
      %v1895 = vmul.f32 %v1894, %v1893
      %v1896 = vmul.f32 0.5, %v1895
      %v1897 = vsub.f32 1.5, %v1896
      %v1898 = vmul.f32 %v1893, %v1897
      %vm1899 = vweird.f32 %v1882
      %vm1900 = vweird.f32 %v1893
      %vm1901 = vmor %vm1899, %vm1900
      %v1902 = vsel %vm1901, %v1893, %v1898
      %v1903 = vmul.f32 %v1869, %v1892
      %v1904 = vmul.f32 %v1870, %v1902
      %v1906 = vperm.slane %v1858, 0
      %v1908 = vmul.f32 %v1903, %v1906
      %v1909 = vmul.f32 %v1904, %v1906
      %v1911 = vperm.slane %v1860, 0
      %v1913 = vadd.f32 %v1908, %v1911
      %v1914 = vadd.f32 %v1909, %v1911
      %s1915 = scalar_lea.vmem %s19, 32
      %v1916 = vld [vmem:[%s1915] sm:$0xff]
      %v1917 = vld [vmem:[%s1915 + $0x8] sm:$0xff]
      %v1918 = vld [vmem:[%s1915 + $0x10] sm:$0xff]
      %v1919 = vld [vmem:[%s1915 + $0x18] sm:$0xff]
      %v1920 = vpack.c.bf16 %v1914, %v1913
      %v1921 = vpack.c.bf16 %v1917, %v1916
      %v1922 = vpack.c.bf16 %v1919, %v1918
      %s1923 = scalar_lea.vmem %s21, 1
      %v1924 = vld [vmem:[%s1923] sm:$0x1]
      %v1926 = vperm.slane %v1924, 0
      %v1929 = vsel %vm1277, %v1920, 0
      %1931 = vmatpush.bf16.msra.mxu0 0
      %1932 = vmatpush.bf16.msra.mxu0 0
      %1933 = vmatpush.bf16.msra.mxu0 0
      %1934 = vmatpush.bf16.msra.mxu0 0
      %1935 = vmatpush.bf16.msra.mxu0 0
      %1936 = vmatpush.bf16.msra.mxu0 0
      %1937 = vmatpush.bf16.msra.mxu0 %v1922
      %1938 = vmatpush.bf16.msra.mxu0 %v1921
      %1939 = vmatmul.bf16.gmra.mxu0 %v1929
      %v1940 = vpop.f32.mrf.mxu0
      %v1941 = vadd.f32 %v1926, %v1940
      %v1942 = vpop.f32.mrf.mxu0
      %v1943 = vadd.f32 %v1926, %v1942
      %1944 = vdwg.mxu0
      %v1945 = vpack.c.bf16 %v1943, %v1941
      %1947 = vrot.lane.b32.xlu0 %v1945, 96
      %v1948 = vpop.permute.xlu0 %1947
      %v1950 = vsel %vm1371, %v1945, 0
      %v1953 = vsel %vm1371, %v1948, 0
      %1955 = vmatpush.bf16.xpose.msra.mxu0 0
      %1956 = vmatpush.bf16.xpose.msra.mxu0 0
      %1957 = vmatpush.bf16.xpose.msra.mxu0 0
      %1958 = vmatpush.bf16.xpose.msra.mxu0 0
      %1959 = vmatpush.bf16.xpose.msra.mxu0 0
      %1960 = vmatpush.bf16.xpose.msra.mxu0 0
      %1961 = vmatpush.bf16.xpose.msra.mxu0 0
      %1962 = vmatpush.bf16.xpose.msra.mxu0 %v1953
      %1963 = vmatmul.bf16.gmra.mxu0 %v1950
      %v1964 = vpop.f32.mrf.mxu0
      %v1965 = vadd.f32 0.0, %v1964
      %v1966 = vpop.f32.mrf.mxu0
      %v1967 = vadd.f32 0.0, %v1966
      %1968 = vdwg.mxu0
      %v1969 = vmul.f32 %v1965, 0.35355338
      %v1970 = vmul.f32 %v1967, 0.35355338
      %v1971 = vsel %vm1394, %v1969, -inf
      %1972 = vmax.xlane.f32.xlu0 %v1971
      %v1973 = vpop.xlane.xlu0 %1972
      %v1974 = vsel %vm1394, %v1970, -inf
      %1975 = vmax.xlane.f32.xlu0 %v1974
      %v1976 = vpop.xlane.xlu0 %1975
      %v1977 = vsub.f32 %v1969, %v1973
      %v1978 = vsub.f32 %v1970, %v1976
      %v1979 = vmul.f32 %v1977, 1.442695
      %v1980 = vpow.pop %v1979
      %v1981 = vmul.f32 %v1978, 1.442695
      %v1982 = vpow.pop %v1981
      %v1983 = vsel %vm1394, %v1980, 0.0
      %1984 = vadd.xlane.f32.xlu0 %v1983
      %v1985 = vpop.xlane.xlu0 %1984
      %v1986 = vsel %vm1394, %v1982, 0.0
      %1987 = vadd.xlane.f32.xlu0 %v1986
      %v1988 = vpop.xlane.xlu0 %1987
      %v1989 = vrcp.pop %v1985
      %v1990 = vrcp.pop %v1988
      %v1991 = vmul.f32 %v1980, %v1989
      %v1992 = vmul.f32 %v1982, %v1990
      %v1993 = vpack.c.bf16 %v1992, %v1991
      %1994 = vrot.lane.b32.xlu0 %v1945, 64
      %v1995 = vpop.permute.xlu0 %1994
      %v1998 = vsel %vm1394, %v1993, 0
      %2000 = vmatpush.bf16.msra.mxu0 0
      %2001 = vmatpush.bf16.msra.mxu0 0
      %2002 = vmatpush.bf16.msra.mxu0 0
      %2003 = vmatpush.bf16.msra.mxu0 0
      %2004 = vmatpush.bf16.msra.mxu0 0
      %2005 = vmatpush.bf16.msra.mxu0 0
      %2006 = vmatpush.bf16.msra.mxu0 0
      %2007 = vmatpush.bf16.msra.mxu0 %v1995
      %2008 = vmatmul.bf16.gmra.mxu0 %v1998
      %v2009 = vpop.f32.mrf.mxu0
      %v2010 = vadd.f32 0.0, %v2009
      %v2011 = vpop.f32.mrf.mxu0
      %v2012 = vadd.f32 0.0, %v2011
      %2013 = vdwg.mxu0
      %2014 = vrot.lane.b32.xlu0 %v1945, 120
      %v2015 = vpop.permute.xlu0 %2014
      %2016 = vrot.lane.b32.xlu0 %v1945, 88
      %v2017 = vpop.permute.xlu0 %2016
      %v2019 = vsel %vm1371, %v2015, 0
      %v2022 = vsel %vm1371, %v2017, 0
      %2024 = vmatpush.bf16.xpose.msra.mxu0 0
      %2025 = vmatpush.bf16.xpose.msra.mxu0 0
      %2026 = vmatpush.bf16.xpose.msra.mxu0 0
      %2027 = vmatpush.bf16.xpose.msra.mxu0 0
      %2028 = vmatpush.bf16.xpose.msra.mxu0 0
      %2029 = vmatpush.bf16.xpose.msra.mxu0 0
      %2030 = vmatpush.bf16.xpose.msra.mxu0 0
      %2031 = vmatpush.bf16.xpose.msra.mxu0 %v2022
      %2032 = vmatmul.bf16.gmra.mxu0 %v2019
      %v2033 = vpop.f32.mrf.mxu0
      %v2034 = vadd.f32 0.0, %v2033
      %v2035 = vpop.f32.mrf.mxu0
      %v2036 = vadd.f32 0.0, %v2035
      %2037 = vdwg.mxu0
      %v2038 = vmul.f32 %v2034, 0.35355338
      %v2039 = vmul.f32 %v2036, 0.35355338
      %v2040 = vsel %vm1394, %v2038, -inf
      %2041 = vmax.xlane.f32.xlu0 %v2040
      %v2042 = vpop.xlane.xlu0 %2041
      %v2043 = vsel %vm1394, %v2039, -inf
      %2044 = vmax.xlane.f32.xlu0 %v2043
      %v2045 = vpop.xlane.xlu0 %2044
      %v2046 = vsub.f32 %v2038, %v2042
      %v2047 = vsub.f32 %v2039, %v2045
      %v2048 = vmul.f32 %v2046, 1.442695
      %v2049 = vpow.pop %v2048
      %v2050 = vmul.f32 %v2047, 1.442695
      %v2051 = vpow.pop %v2050
      %v2052 = vsel %vm1394, %v2049, 0.0
      %2053 = vadd.xlane.f32.xlu0 %v2052
      %v2054 = vpop.xlane.xlu0 %2053
      %v2055 = vsel %vm1394, %v2051, 0.0
      %2056 = vadd.xlane.f32.xlu0 %v2055
      %v2057 = vpop.xlane.xlu0 %2056
      %v2058 = vrcp.pop %v2054
      %v2059 = vrcp.pop %v2057
      %v2060 = vmul.f32 %v2049, %v2058
      %v2061 = vmul.f32 %v2051, %v2059
      %v2062 = vpack.c.bf16 %v2061, %v2060
      %2063 = vrot.lane.b32.xlu0 %v1945, 56
      %v2064 = vpop.permute.xlu0 %2063
      %v2067 = vsel %vm1394, %v2062, 0
      %2069 = vmatpush.bf16.msra.mxu0 0
      %2070 = vmatpush.bf16.msra.mxu0 0
      %2071 = vmatpush.bf16.msra.mxu0 0
      %2072 = vmatpush.bf16.msra.mxu0 0
      %2073 = vmatpush.bf16.msra.mxu0 0
      %2074 = vmatpush.bf16.msra.mxu0 0
      %2075 = vmatpush.bf16.msra.mxu0 0
      %2076 = vmatpush.bf16.msra.mxu0 %v2064
      %2077 = vmatmul.bf16.gmra.mxu0 %v2067
      %v2078 = vpop.f32.mrf.mxu0
      %v2079 = vadd.f32 0.0, %v2078
      %v2080 = vpop.f32.mrf.mxu0
      %v2081 = vadd.f32 0.0, %v2080
      %2082 = vdwg.mxu0
      %2083 = vrot.lane.b32.xlu0 %v1945, 112
      %v2084 = vpop.permute.xlu0 %2083
      %2085 = vrot.lane.b32.xlu0 %v1945, 80
      %v2086 = vpop.permute.xlu0 %2085
      %v2088 = vsel %vm1371, %v2084, 0
      %v2091 = vsel %vm1371, %v2086, 0
      %2093 = vmatpush.bf16.xpose.msra.mxu0 0
      %2094 = vmatpush.bf16.xpose.msra.mxu0 0
      %2095 = vmatpush.bf16.xpose.msra.mxu0 0
      %2096 = vmatpush.bf16.xpose.msra.mxu0 0
      %2097 = vmatpush.bf16.xpose.msra.mxu0 0
      %2098 = vmatpush.bf16.xpose.msra.mxu0 0
      %2099 = vmatpush.bf16.xpose.msra.mxu0 0
      %2100 = vmatpush.bf16.xpose.msra.mxu0 %v2091
      %2101 = vmatmul.bf16.gmra.mxu0 %v2088
      %v2102 = vpop.f32.mrf.mxu0
      %v2103 = vadd.f32 0.0, %v2102
      %v2104 = vpop.f32.mrf.mxu0
      %v2105 = vadd.f32 0.0, %v2104
      %2106 = vdwg.mxu0
      %v2107 = vmul.f32 %v2103, 0.35355338
      %v2108 = vmul.f32 %v2105, 0.35355338
      %v2109 = vsel %vm1394, %v2107, -inf
      %2110 = vmax.xlane.f32.xlu0 %v2109
      %v2111 = vpop.xlane.xlu0 %2110
      %v2112 = vsel %vm1394, %v2108, -inf
      %2113 = vmax.xlane.f32.xlu0 %v2112
      %v2114 = vpop.xlane.xlu0 %2113
      %v2115 = vsub.f32 %v2107, %v2111
      %v2116 = vsub.f32 %v2108, %v2114
      %v2117 = vmul.f32 %v2115, 1.442695
      %v2118 = vpow.pop %v2117
      %v2119 = vmul.f32 %v2116, 1.442695
      %v2120 = vpow.pop %v2119
      %v2121 = vsel %vm1394, %v2118, 0.0
      %2122 = vadd.xlane.f32.xlu0 %v2121
      %v2123 = vpop.xlane.xlu0 %2122
      %v2124 = vsel %vm1394, %v2120, 0.0
      %2125 = vadd.xlane.f32.xlu0 %v2124
      %v2126 = vpop.xlane.xlu0 %2125
      %v2127 = vrcp.pop %v2123
      %v2128 = vrcp.pop %v2126
      %v2129 = vmul.f32 %v2118, %v2127
      %v2130 = vmul.f32 %v2120, %v2128
      %v2131 = vpack.c.bf16 %v2130, %v2129
      %2132 = vrot.lane.b32.xlu0 %v1945, 48
      %v2133 = vpop.permute.xlu0 %2132
      %v2136 = vsel %vm1394, %v2131, 0
      %2138 = vmatpush.bf16.msra.mxu0 0
      %2139 = vmatpush.bf16.msra.mxu0 0
      %2140 = vmatpush.bf16.msra.mxu0 0
      %2141 = vmatpush.bf16.msra.mxu0 0
      %2142 = vmatpush.bf16.msra.mxu0 0
      %2143 = vmatpush.bf16.msra.mxu0 0
      %2144 = vmatpush.bf16.msra.mxu0 0
      %2145 = vmatpush.bf16.msra.mxu0 %v2133
      %2146 = vmatmul.bf16.gmra.mxu0 %v2136
      %v2147 = vpop.f32.mrf.mxu0
      %v2148 = vadd.f32 0.0, %v2147
      %v2149 = vpop.f32.mrf.mxu0
      %v2150 = vadd.f32 0.0, %v2149
      %2151 = vdwg.mxu0
      %2152 = vrot.lane.b32.xlu0 %v1945, 104
      %v2153 = vpop.permute.xlu0 %2152
      %2154 = vrot.lane.b32.xlu0 %v1945, 72
      %v2155 = vpop.permute.xlu0 %2154
      %v2157 = vsel %vm1371, %v2153, 0
      %v2160 = vsel %vm1371, %v2155, 0
      %2162 = vmatpush.bf16.xpose.msra.mxu0 0
      %2163 = vmatpush.bf16.xpose.msra.mxu0 0
      %2164 = vmatpush.bf16.xpose.msra.mxu0 0
      %2165 = vmatpush.bf16.xpose.msra.mxu0 0
      %2166 = vmatpush.bf16.xpose.msra.mxu0 0
      %2167 = vmatpush.bf16.xpose.msra.mxu0 0
      %2168 = vmatpush.bf16.xpose.msra.mxu0 0
      %2169 = vmatpush.bf16.xpose.msra.mxu0 %v2160
      %2170 = vmatmul.bf16.gmra.mxu0 %v2157
      %v2171 = vpop.f32.mrf.mxu0
      %v2172 = vadd.f32 0.0, %v2171
      %v2173 = vpop.f32.mrf.mxu0
      %v2174 = vadd.f32 0.0, %v2173
      %2175 = vdwg.mxu0
      %v2176 = vmul.f32 %v2172, 0.35355338
      %v2177 = vmul.f32 %v2174, 0.35355338
      %v2178 = vsel %vm1394, %v2176, -inf
      %2179 = vmax.xlane.f32.xlu0 %v2178
      %v2180 = vpop.xlane.xlu0 %2179
      %v2181 = vsel %vm1394, %v2177, -inf
      %2182 = vmax.xlane.f32.xlu0 %v2181
      %v2183 = vpop.xlane.xlu0 %2182
      %v2184 = vsub.f32 %v2176, %v2180
      %v2185 = vsub.f32 %v2177, %v2183
      %v2186 = vmul.f32 %v2184, 1.442695
      %v2187 = vpow.pop %v2186
      %v2188 = vmul.f32 %v2185, 1.442695
      %v2189 = vpow.pop %v2188
      %v2190 = vsel %vm1394, %v2187, 0.0
      %2191 = vadd.xlane.f32.xlu0 %v2190
      %v2192 = vpop.xlane.xlu0 %2191
      %v2193 = vsel %vm1394, %v2189, 0.0
      %2194 = vadd.xlane.f32.xlu0 %v2193
      %v2195 = vpop.xlane.xlu0 %2194
      %v2196 = vrcp.pop %v2192
      %v2197 = vrcp.pop %v2195
      %v2198 = vmul.f32 %v2187, %v2196
      %v2199 = vmul.f32 %v2189, %v2197
      %v2200 = vpack.c.bf16 %v2199, %v2198
      %2201 = vrot.lane.b32.xlu0 %v1945, 40
      %v2202 = vpop.permute.xlu0 %2201
      %v2205 = vsel %vm1394, %v2200, 0
      %2207 = vmatpush.bf16.msra.mxu0 0
      %2208 = vmatpush.bf16.msra.mxu0 0
      %2209 = vmatpush.bf16.msra.mxu0 0
      %2210 = vmatpush.bf16.msra.mxu0 0
      %2211 = vmatpush.bf16.msra.mxu0 0
      %2212 = vmatpush.bf16.msra.mxu0 0
      %2213 = vmatpush.bf16.msra.mxu0 0
      %2214 = vmatpush.bf16.msra.mxu0 %v2202
      %2215 = vmatmul.bf16.gmra.mxu0 %v2205
      %v2216 = vpop.f32.mrf.mxu0
      %v2217 = vadd.f32 0.0, %v2216
      %v2218 = vpop.f32.mrf.mxu0
      %v2219 = vadd.f32 0.0, %v2218
      %2220 = vdwg.mxu0
      %2223 = vrot.lane.b32.xlu0 %v2079, 8
      %v2224 = vpop.permute.xlu0 %2223
      %2225 = vrot.lane.b32.xlu0 %v2081, 8
      %v2226 = vpop.permute.xlu0 %2225
      %2231 = vrot.lane.b32.xlu0 %v2148, 16
      %v2232 = vpop.permute.xlu0 %2231
      %2233 = vrot.lane.b32.xlu0 %v2150, 16
      %v2234 = vpop.permute.xlu0 %2233
      %2239 = vrot.lane.b32.xlu0 %v2217, 24
      %v2240 = vpop.permute.xlu0 %2239
      %2241 = vrot.lane.b32.xlu0 %v2219, 24
      %v2242 = vpop.permute.xlu0 %2241
      %v2245 = vsel %vm1371, %v2010, %v2224
      %v2246 = vsel %vm1371, %v2012, %v2226
      %v2247 = vsel %vm1394, %v2245, %v2232
      %v2248 = vsel %vm1394, %v2246, %v2234
      %v2249 = vsel %vm1673, %v2247, %v2240
      %v2250 = vsel %vm1673, %v2248, %v2242
      %s2251 = scalar_lea.vmem %s23, 32
      %v2252 = vld [vmem:[%s2251] sm:$0xff]
      %v2253 = vld [vmem:[%s2251 + $0x8] sm:$0xff]
      %v2254 = vld [vmem:[%s2251 + $0x10] sm:$0xff]
      %v2255 = vld [vmem:[%s2251 + $0x18] sm:$0xff]
      %v2256 = vpack.c.bf16 %v2250, %v2249
      %v2257 = vpack.c.bf16 %v2253, %v2252
      %v2258 = vpack.c.bf16 %v2255, %v2254
      %v2260 = vsel %vm1277, %v2256, 0
      %2262 = vmatpush.bf16.msra.mxu0 0
      %2263 = vmatpush.bf16.msra.mxu0 0
      %2264 = vmatpush.bf16.msra.mxu0 0
      %2265 = vmatpush.bf16.msra.mxu0 0
      %2266 = vmatpush.bf16.msra.mxu0 0
      %2267 = vmatpush.bf16.msra.mxu0 0
      %2268 = vmatpush.bf16.msra.mxu0 %v2258
      %2269 = vmatpush.bf16.msra.mxu0 %v2257
      %2270 = vmatmul.bf16.gmra.mxu0 %v2260
      %v2271 = vpop.f32.mrf.mxu0
      %v2272 = vadd.f32 0.0, %v2271
      %v2273 = vpop.f32.mrf.mxu0
      %v2274 = vadd.f32 0.0, %v2273
      %2275 = vdwg.mxu0
      %v2276 = vadd.f32 %v1855, %v2272
      %v2277 = vadd.f32 %v1856, %v2274
      %s2278 = scalar_lea.vmem %s25, 1
      %v2279 = vld [vmem:[%s2278] sm:$0x1]
      %v2281 = vperm.slane %v2279, 0
      %v2283 = vadd.f32 %v2276, %v2281
      %v2284 = vadd.f32 %v2277, %v2281
      %s2285 = scalar_lea.vmem %s27, 1
      %v2286 = vld [vmem:[%s2285] sm:$0x1]
      %s2287 = scalar_lea.vmem %s29, 1
      %v2288 = vld [vmem:[%s2287] sm:$0x1]
      %v2289 = vsel %vm1277, %v2283, 0.0
      %2290 = vadd.xlane.f32.xlu0 %v2289
      %v2291 = vpop.xlane.xlu0 %2290
      %v2292 = vsel %vm1277, %v2284, 0.0
      %2293 = vadd.xlane.f32.xlu0 %v2292
      %v2294 = vpop.xlane.xlu0 %2293
      %v2295 = vmul.f32 %v2291, %v1290
      %v2296 = vmul.f32 %v2294, %v1290
      %v2297 = vsub.f32 %v2283, %v2295
      %v2298 = vsub.f32 %v2284, %v2296
      %v2299 = vmul.f32 %v2297, %v2297
      %v2300 = vmul.f32 %v2298, %v2298
      %v2301 = vsel %vm1277, %v2299, 0.0
      %2302 = vadd.xlane.f32.xlu0 %v2301
      %v2303 = vpop.xlane.xlu0 %2302
      %v2304 = vsel %vm1277, %v2300, 0.0
      %2305 = vadd.xlane.f32.xlu0 %v2304
      %v2306 = vpop.xlane.xlu0 %2305
      %v2307 = vmul.f32 %v2303, %v1290
      %v2308 = vmul.f32 %v2306, %v1290
      %v2309 = vadd.f32 %v2307, 1e-05
      %v2310 = vadd.f32 %v2308, 1e-05
      %v2311 = vrsqrt.pop %v2309
      %v2312 = vmul.f32 %v2311, %v2309
      %v2313 = vmul.f32 %v2312, %v2311
      %v2314 = vmul.f32 0.5, %v2313
      %v2315 = vsub.f32 1.5, %v2314
      %v2316 = vmul.f32 %v2311, %v2315
      %vm2317 = vweird.f32 %v2309
      %vm2318 = vweird.f32 %v2311
      %vm2319 = vmor %vm2317, %vm2318
      %v2320 = vsel %vm2319, %v2311, %v2316
      %v2321 = vrsqrt.pop %v2310
      %v2322 = vmul.f32 %v2321, %v2310
      %v2323 = vmul.f32 %v2322, %v2321
      %v2324 = vmul.f32 0.5, %v2323
      %v2325 = vsub.f32 1.5, %v2324
      %v2326 = vmul.f32 %v2321, %v2325
      %vm2327 = vweird.f32 %v2310
      %vm2328 = vweird.f32 %v2321
      %vm2329 = vmor %vm2327, %vm2328
      %v2330 = vsel %vm2329, %v2321, %v2326
      %v2331 = vmul.f32 %v2297, %v2320
      %v2332 = vmul.f32 %v2298, %v2330
      %v2334 = vperm.slane %v2286, 0
      %v2336 = vmul.f32 %v2331, %v2334
      %v2337 = vmul.f32 %v2332, %v2334
      %v2339 = vperm.slane %v2288, 0
      %v2341 = vadd.f32 %v2336, %v2339
      %v2342 = vadd.f32 %v2337, %v2339
      %s2343 = scalar_lea.vmem %s31, 32
      %v2344 = vld [vmem:[%s2343] sm:$0xff]
      %v2345 = vld [vmem:[%s2343 + $0x8] sm:$0xff]
      %v2346 = vld [vmem:[%s2343 + $0x10] sm:$0xff]
      %v2347 = vld [vmem:[%s2343 + $0x18] sm:$0xff]
      %v2348 = vpack.c.bf16 %v2342, %v2341
      %v2349 = vpack.c.bf16 %v2345, %v2344
      %v2350 = vpack.c.bf16 %v2347, %v2346
      %s2351 = scalar_lea.vmem %s33, 1
      %v2352 = vld [vmem:[%s2351] sm:$0x1]
      %v2354 = vperm.slane %v2352, 0
      %v2357 = vsel %vm1277, %v2348, 0
      %2359 = vmatpush.bf16.msra.mxu0 0
      %2360 = vmatpush.bf16.msra.mxu0 0
      %2361 = vmatpush.bf16.msra.mxu0 0
      %2362 = vmatpush.bf16.msra.mxu0 0
      %2363 = vmatpush.bf16.msra.mxu0 0
      %2364 = vmatpush.bf16.msra.mxu0 0
      %2365 = vmatpush.bf16.msra.mxu0 %v2350
      %2366 = vmatpush.bf16.msra.mxu0 %v2349
      %2367 = vmatmul.bf16.gmra.mxu0 %v2357
      %v2368 = vpop.f32.mrf.mxu0
      %v2369 = vadd.f32 %v2354, %v2368
      %v2370 = vpop.f32.mrf.mxu0
      %v2371 = vadd.f32 %v2354, %v2370
      %2372 = vdwg.mxu0
      %v2373 = vmul.f32 %v2369, 0.5
      %v2374 = vmul.f32 %v2371, 0.5
      %v2375 = vmul.f32 %v2369, 0.044715
      %v2376 = vmul.f32 %v2371, 0.044715
      %v2377 = vmul.f32 %v2375, %v2369
      %v2378 = vmul.f32 %v2376, %v2371
      %v2379 = vmul.f32 %v2377, %v2369
      %v2380 = vmul.f32 %v2378, %v2371
      %v2381 = vadd.f32 %v2369, %v2379
      %v2382 = vadd.f32 %v2371, %v2380
      %v2383 = vmul.f32 %v2381, 0.7978846
      %v2384 = vmul.f32 %v2382, 0.7978846
      %v2385 = vtanh.pop %v2383
      %v2386 = vtanh.pop %v2384
      %v2387 = vadd.f32 %v2385, 1.0
      %v2388 = vadd.f32 %v2386, 1.0
      %v2389 = vmul.f32 %v2373, %v2387
      %v2390 = vmul.f32 %v2374, %v2388
      %s2391 = scalar_lea.vmem %s35, 128
      %v2392 = vld [vmem:[%s2391] sm:$0xff]
      %v2393 = vld [vmem:[%s2391 + $0x8] sm:$0xff]
      %v2394 = vld [vmem:[%s2391 + $0x10] sm:$0xff]
      %v2395 = vld [vmem:[%s2391 + $0x18] sm:$0xff]
      %v2396 = vld [vmem:[%s2391 + $0x20] sm:$0xff]
      %v2397 = vld [vmem:[%s2391 + $0x28] sm:$0xff]
      %v2398 = vld [vmem:[%s2391 + $0x30] sm:$0xff]
      %v2399 = vld [vmem:[%s2391 + $0x38] sm:$0xff]
      %v2400 = vld [vmem:[%s2391 + $0x40] sm:$0xff]
      %v2401 = vld [vmem:[%s2391 + $0x48] sm:$0xff]
      %v2402 = vld [vmem:[%s2391 + $0x50] sm:$0xff]
      %v2403 = vld [vmem:[%s2391 + $0x58] sm:$0xff]
      %v2404 = vld [vmem:[%s2391 + $0x60] sm:$0xff]
      %v2405 = vld [vmem:[%s2391 + $0x68] sm:$0xff]
      %v2406 = vld [vmem:[%s2391 + $0x70] sm:$0xff]
      %v2407 = vld [vmem:[%s2391 + $0x78] sm:$0xff]
      %v2408 = vpack.c.bf16 %v2390, %v2389
      %v2409 = vpack.c.bf16 %v2393, %v2392
      %v2410 = vpack.c.bf16 %v2395, %v2394
      %v2411 = vpack.c.bf16 %v2397, %v2396
      %v2412 = vpack.c.bf16 %v2399, %v2398
      %v2413 = vpack.c.bf16 %v2401, %v2400
      %v2414 = vpack.c.bf16 %v2403, %v2402
      %v2415 = vpack.c.bf16 %v2405, %v2404
      %v2416 = vpack.c.bf16 %v2407, %v2406
      %2417 = vmatpush.bf16.msra.mxu0 %v2416
      %2418 = vmatpush.bf16.msra.mxu0 %v2415
      %2419 = vmatpush.bf16.msra.mxu0 %v2414
      %2420 = vmatpush.bf16.msra.mxu0 %v2413
      %2421 = vmatpush.bf16.msra.mxu0 %v2412
      %2422 = vmatpush.bf16.msra.mxu0 %v2411
      %2423 = vmatpush.bf16.msra.mxu0 %v2410
      %2424 = vmatpush.bf16.msra.mxu0 %v2409
      %2425 = vmatmul.bf16.gmra.mxu0 %v2408
      %v2426 = vpop.f32.mrf.mxu0
      %v2427 = vpop.f32.mrf.mxu0
      %v2428 = vadd.f32 0.0, %v2427
      %2429 = vdwg.mxu0
      %v2430 = vadd.f32 %v2284, %v2428
      %s2431 = scalar_lea.vmem %s37, 1
      %v2432 = vld [vmem:[%s2431] sm:$0x1]
      %v2434 = vperm.slane %v2432, 0
      %v2436 = vadd.f32 %v2430, %v2434
      %v2437 = vld [vmem:[%s39] sm:$0x1]
      %v2438 = vld [vmem:[%s41] sm:$0x1]
      %v2439 = vsel %vm1277, %v2436, 0.0
      %2440 = vadd.xlane.f32.xlu0 %v2439
      %v2441 = vpop.xlane.xlu0 %2440
      %v2442 = vmul.f32 %v2441, %v1290
      %v2443 = vsub.f32 %v2436, %v2442
      %v2444 = vmul.f32 %v2443, %v2443
      %v2445 = vsel %vm1277, %v2444, 0.0
      %2446 = vadd.xlane.f32.xlu0 %v2445
      %v2447 = vpop.xlane.xlu0 %2446
      %v2448 = vmul.f32 %v2447, %v1290
      %v2449 = vadd.f32 %v2448, 1e-05
      %v2450 = vrsqrt.pop %v2449
      %v2451 = vmul.f32 %v2450, %v2449
      %v2452 = vmul.f32 %v2451, %v2450
      %v2453 = vmul.f32 0.5, %v2452
      %v2454 = vsub.f32 1.5, %v2453
      %v2455 = vmul.f32 %v2450, %v2454
      %vm2456 = vweird.f32 %v2449
      %vm2457 = vweird.f32 %v2450
      %vm2458 = vmor %vm2456, %vm2457
      %v2459 = vsel %vm2458, %v2450, %v2455
      %v2460 = vmul.f32 %v2443, %v2459
      %v2462 = vperm.slane %v2437, 0
      %v2464 = vmul.f32 %v2460, %v2462
      %v2466 = vperm.slane %v2438, 0
      %v2468 = vadd.f32 %v2464, %v2466
      %v2469 = vld [vmem:[%s43] sm:$0xff]
      %v2470 = vld [vmem:[%s43 + $0x8] sm:$0xff]
      %v2471 = vld [vmem:[%s43 + $0x10] sm:$0xff]
      %v2472 = vld [vmem:[%s43 + $0x18] sm:$0xff]
      %v2473 = vld [vmem:[%s45] sm:$0x1]
      %v2475 = vperm.slane %v2473, 0
      %v2478 = vsel %vm1277, %v2468, 0
      %2480 = vmatpush.msra.mxu0 0.0
      %2481 = vmatpush.msra.mxu0 0.0
      %2482 = vmatpush.msra.mxu0 0.0
      %2483 = vmatpush.msra.mxu0 0.0
      %2484 = vmatpush.msra.mxu0 0.0
      %2485 = vmatpush.msra.mxu0 0.0
      %2486 = vmatpush.msra.mxu0 0.0
      %2487 = vmatpush.msra.mxu0 0.0
      %2488 = vmatpush.msra.mxu0 0.0
      %2489 = vmatpush.msra.mxu0 0.0
      %2490 = vmatpush.msra.mxu0 0.0
      %2491 = vmatpush.msra.mxu0 0.0
      %2492 = vmatpush.msra.mxu0 %v2472
      %2493 = vmatpush.msra.mxu0 %v2471
      %2494 = vmatpush.msra.mxu0 %v2470
      %2495 = vmatpush.msra.mxu0 %v2469
      %2496 = vmatmul.f32.gmra.mxu0 %v2478
      %v2497 = vpop.f32.mrf.mxu0
      %v2498 = vadd.f32 %v2475, %v2497
      %2499 = vdwg.mxu0
      %v2500 = vld [vmem:[%s51] sm:$0x1]
      %v2502 = vperm.slane %v2500, 0
      %v2504 = vadd.f32 %v2498, %v2502
      %v2505 = vtanh.pop %v2504
      %v2506 = vld [vmem:[%s47] sm:$0x1]
      %v2508 = vperm.slane %v2506, 0
      %v2510 = vmul.f32 %v2505, %v2508
      %v2511 = vld [vmem:[%s49] sm:$0x1]
      %v2513 = vperm.slane %v2511, 0
      %v2515 = vsub.f32 %v2510, %v2513
      %v2516 = vround.ne.pseudo %v2515
      %v2517 = vld [vmem:[%s55] sm:$0x1]
      %v2519 = vperm.slane %v2517, 0
      %v2521 = vmul.f32 %v2516, %v2519
      %vm2522 = vcmask 31744
      %2523 = vst.msk [vmem:[%s1143] sm:$0xff] %vm2522, %v2521
      %v2524 = vld [vmem:[%s53] sm:$0x1]
      %v2526 = vperm.slane %v2524, 0
      %v2528 = vmul.f32 %v2521, %v2526
      %v2529 = vadd.f32 %v2528, %v2526
      %v2530 = vld [vmem:[%s57] sm:$0x1]
      %v2532 = vperm.slane %v2530, 0
      %v2534 = vmul.f32 %v2529, %v2532
      %v2535 = vsel %vm2522, %v2534, 0.0
      %2536 = vadd.xlane.f32.xlu0 %v2535
      %v2537 = vpop.xlane.xlu0 %2536
      %v2538 = vcvt.f32.s32.ties.to.even %v2537
      %vm2539 = vcmask 7168
      %2540 = vst.msk [vmem:[%s1147] sm:$0xff] %vm2539, %v2538
      %v2541 = vld [vmem:[%s59] sm:$0xf]
      %v2542 = vld [vmem:[%s61] sm:$0x1]
      %v2544 = vperm.slane %v2542, 0
      %v2547 = vsel %vm2522, %v2521, 0
      %vm2549 = vcmask 1043456
      %v2551 = vsel %vm2549, %v2541, 0
      %2553 = vmatpush.msra.mxu0 0.0
      %2554 = vmatpush.msra.mxu0 0.0
      %2555 = vmatpush.msra.mxu0 0.0
      %2556 = vmatpush.msra.mxu0 0.0
      %2557 = vmatpush.msra.mxu0 0.0
      %2558 = vmatpush.msra.mxu0 0.0
      %2559 = vmatpush.msra.mxu0 0.0
      %2560 = vmatpush.msra.mxu0 0.0
      %2561 = vmatpush.msra.mxu0 0.0
      %2562 = vmatpush.msra.mxu0 0.0
      %2563 = vmatpush.msra.mxu0 0.0
      %2564 = vmatpush.msra.mxu0 0.0
      %2565 = vmatpush.msra.mxu0 0.0
      %2566 = vmatpush.msra.mxu0 0.0
      %2567 = vmatpush.msra.mxu0 0.0
      %2568 = vmatpush.msra.mxu0 %v2551
      %2569 = vmatmul.f32.gmra.mxu0 %v2547
      %v2570 = vpop.f32.mrf.mxu0
      %v2571 = vadd.f32 %v2544, %v2570
      %2572 = vdwg.mxu0
      %v2573 = vld [vmem:[%s13] sm:$0x1]
      %v2575 = vperm.slane %v2573, 0
      %v2577 = vld [vmem:[%s11] sm:$0xff]
      %v2578 = vld [vmem:[%s11 + $0x8] sm:$0xff]
      %v2579 = vadd.f32 %v2575, %v2577
      %v2580 = vadd.f32 %v2571, %v2578
      %s2581 = scalar_lea.vmem %s15, 2
      %v2582 = vld [vmem:[%s2581] sm:$0x1]
      %s2583 = scalar_lea.vmem %s17, 2
      %v2584 = vld [vmem:[%s2583] sm:$0x1]
      %v2585 = vsel %vm1277, %v2579, 0.0
      %2586 = vadd.xlane.f32.xlu0 %v2585
      %v2587 = vpop.xlane.xlu0 %2586
      %v2588 = vsel %vm1277, %v2580, 0.0
      %2589 = vadd.xlane.f32.xlu0 %v2588
      %v2590 = vpop.xlane.xlu0 %2589
      %v2591 = vmul.f32 %v2587, %v1290
      %v2592 = vmul.f32 %v2590, %v1290
      %v2593 = vsub.f32 %v2579, %v2591
      %v2594 = vsub.f32 %v2580, %v2592
      %v2595 = vmul.f32 %v2593, %v2593
      %v2596 = vmul.f32 %v2594, %v2594
      %v2597 = vsel %vm1277, %v2595, 0.0
      %2598 = vadd.xlane.f32.xlu0 %v2597
      %v2599 = vpop.xlane.xlu0 %2598
      %v2600 = vsel %vm1277, %v2596, 0.0
      %2601 = vadd.xlane.f32.xlu0 %v2600
      %v2602 = vpop.xlane.xlu0 %2601
      %v2603 = vmul.f32 %v2599, %v1290
      %v2604 = vmul.f32 %v2602, %v1290
      %v2605 = vadd.f32 %v2603, 1e-05
      %v2606 = vadd.f32 %v2604, 1e-05
      %v2607 = vrsqrt.pop %v2605
      %v2608 = vmul.f32 %v2607, %v2605
      %v2609 = vmul.f32 %v2608, %v2607
      %v2610 = vmul.f32 0.5, %v2609
      %v2611 = vsub.f32 1.5, %v2610
      %v2612 = vmul.f32 %v2607, %v2611
      %vm2613 = vweird.f32 %v2605
      %vm2614 = vweird.f32 %v2607
      %vm2615 = vmor %vm2613, %vm2614
      %v2616 = vsel %vm2615, %v2607, %v2612
      %v2617 = vrsqrt.pop %v2606
      %v2618 = vmul.f32 %v2617, %v2606
      %v2619 = vmul.f32 %v2618, %v2617
      %v2620 = vmul.f32 0.5, %v2619
      %v2621 = vsub.f32 1.5, %v2620
      %v2622 = vmul.f32 %v2617, %v2621
      %vm2623 = vweird.f32 %v2606
      %vm2624 = vweird.f32 %v2617
      %vm2625 = vmor %vm2623, %vm2624
      %v2626 = vsel %vm2625, %v2617, %v2622
      %v2627 = vmul.f32 %v2593, %v2616
      %v2628 = vmul.f32 %v2594, %v2626
      %v2630 = vperm.slane %v2582, 0
      %v2632 = vmul.f32 %v2627, %v2630
      %v2633 = vmul.f32 %v2628, %v2630
      %v2635 = vperm.slane %v2584, 0
      %v2637 = vadd.f32 %v2632, %v2635
      %v2638 = vadd.f32 %v2633, %v2635
      %s2639 = scalar_lea.vmem %s19, 64
      %v2640 = vld [vmem:[%s2639] sm:$0xff]
      %v2641 = vld [vmem:[%s2639 + $0x8] sm:$0xff]
      %v2642 = vld [vmem:[%s2639 + $0x10] sm:$0xff]
      %v2643 = vld [vmem:[%s2639 + $0x18] sm:$0xff]
      %v2644 = vpack.c.bf16 %v2638, %v2637
      %v2645 = vpack.c.bf16 %v2641, %v2640
      %v2646 = vpack.c.bf16 %v2643, %v2642
      %s2647 = scalar_lea.vmem %s21, 2
      %v2648 = vld [vmem:[%s2647] sm:$0x1]
      %v2650 = vperm.slane %v2648, 0
      %v2653 = vsel %vm1277, %v2644, 0
      %2655 = vmatpush.bf16.msra.mxu0 0
      %2656 = vmatpush.bf16.msra.mxu0 0
      %2657 = vmatpush.bf16.msra.mxu0 0
      %2658 = vmatpush.bf16.msra.mxu0 0
      %2659 = vmatpush.bf16.msra.mxu0 0
      %2660 = vmatpush.bf16.msra.mxu0 0
      %2661 = vmatpush.bf16.msra.mxu0 %v2646
      %2662 = vmatpush.bf16.msra.mxu0 %v2645
      %2663 = vmatmul.bf16.gmra.mxu0 %v2653
      %v2664 = vpop.f32.mrf.mxu0
      %v2665 = vadd.f32 %v2650, %v2664
      %v2666 = vpop.f32.mrf.mxu0
      %v2667 = vadd.f32 %v2650, %v2666
      %2668 = vdwg.mxu0
      %v2669 = vpack.c.bf16 %v2667, %v2665
      %2671 = vrot.lane.b32.xlu0 %v2669, 96
      %v2672 = vpop.permute.xlu0 %2671
      %v2674 = vsel %vm1371, %v2669, 0
      %v2677 = vsel %vm1371, %v2672, 0
      %2679 = vmatpush.bf16.xpose.msra.mxu0 0
      %2680 = vmatpush.bf16.xpose.msra.mxu0 0
      %2681 = vmatpush.bf16.xpose.msra.mxu0 0
      %2682 = vmatpush.bf16.xpose.msra.mxu0 0
      %2683 = vmatpush.bf16.xpose.msra.mxu0 0
      %2684 = vmatpush.bf16.xpose.msra.mxu0 0
      %2685 = vmatpush.bf16.xpose.msra.mxu0 0
      %2686 = vmatpush.bf16.xpose.msra.mxu0 %v2677
      %2687 = vmatmul.bf16.gmra.mxu0 %v2674
      %v2688 = vpop.f32.mrf.mxu0
      %v2689 = vadd.f32 0.0, %v2688
      %v2690 = vpop.f32.mrf.mxu0
      %v2691 = vadd.f32 0.0, %v2690
      %2692 = vdwg.mxu0
      %v2693 = vmul.f32 %v2689, 0.35355338
      %v2694 = vmul.f32 %v2691, 0.35355338
      %v2695 = vsel %vm1394, %v2693, -inf
      %2696 = vmax.xlane.f32.xlu0 %v2695
      %v2697 = vpop.xlane.xlu0 %2696
      %v2698 = vsel %vm1394, %v2694, -inf
      %2699 = vmax.xlane.f32.xlu0 %v2698
      %v2700 = vpop.xlane.xlu0 %2699
      %v2701 = vsub.f32 %v2693, %v2697
      %v2702 = vsub.f32 %v2694, %v2700
      %v2703 = vmul.f32 %v2701, 1.442695
      %v2704 = vpow.pop %v2703
      %v2705 = vmul.f32 %v2702, 1.442695
      %v2706 = vpow.pop %v2705
      %v2707 = vsel %vm1394, %v2704, 0.0
      %2708 = vadd.xlane.f32.xlu0 %v2707
      %v2709 = vpop.xlane.xlu0 %2708
      %v2710 = vsel %vm1394, %v2706, 0.0
      %2711 = vadd.xlane.f32.xlu0 %v2710
      %v2712 = vpop.xlane.xlu0 %2711
      %v2713 = vrcp.pop %v2709
      %v2714 = vrcp.pop %v2712
      %v2715 = vmul.f32 %v2704, %v2713
      %v2716 = vmul.f32 %v2706, %v2714
      %v2717 = vpack.c.bf16 %v2716, %v2715
      %2718 = vrot.lane.b32.xlu0 %v2669, 64
      %v2719 = vpop.permute.xlu0 %2718
      %v2722 = vsel %vm1394, %v2717, 0
      %2724 = vmatpush.bf16.msra.mxu0 0
      %2725 = vmatpush.bf16.msra.mxu0 0
      %2726 = vmatpush.bf16.msra.mxu0 0
      %2727 = vmatpush.bf16.msra.mxu0 0
      %2728 = vmatpush.bf16.msra.mxu0 0
      %2729 = vmatpush.bf16.msra.mxu0 0
      %2730 = vmatpush.bf16.msra.mxu0 0
      %2731 = vmatpush.bf16.msra.mxu0 %v2719
      %2732 = vmatmul.bf16.gmra.mxu0 %v2722
      %v2733 = vpop.f32.mrf.mxu0
      %v2734 = vadd.f32 0.0, %v2733
      %v2735 = vpop.f32.mrf.mxu0
      %v2736 = vadd.f32 0.0, %v2735
      %2737 = vdwg.mxu0
      %2738 = vrot.lane.b32.xlu0 %v2669, 120
      %v2739 = vpop.permute.xlu0 %2738
      %2740 = vrot.lane.b32.xlu0 %v2669, 88
      %v2741 = vpop.permute.xlu0 %2740
      %v2743 = vsel %vm1371, %v2739, 0
      %v2746 = vsel %vm1371, %v2741, 0
      %2748 = vmatpush.bf16.xpose.msra.mxu0 0
      %2749 = vmatpush.bf16.xpose.msra.mxu0 0
      %2750 = vmatpush.bf16.xpose.msra.mxu0 0
      %2751 = vmatpush.bf16.xpose.msra.mxu0 0
      %2752 = vmatpush.bf16.xpose.msra.mxu0 0
      %2753 = vmatpush.bf16.xpose.msra.mxu0 0
      %2754 = vmatpush.bf16.xpose.msra.mxu0 0
      %2755 = vmatpush.bf16.xpose.msra.mxu0 %v2746
      %2756 = vmatmul.bf16.gmra.mxu0 %v2743
      %v2757 = vpop.f32.mrf.mxu0
      %v2758 = vadd.f32 0.0, %v2757
      %v2759 = vpop.f32.mrf.mxu0
      %v2760 = vadd.f32 0.0, %v2759
      %2761 = vdwg.mxu0
      %v2762 = vmul.f32 %v2758, 0.35355338
      %v2763 = vmul.f32 %v2760, 0.35355338
      %v2764 = vsel %vm1394, %v2762, -inf
      %2765 = vmax.xlane.f32.xlu0 %v2764
      %v2766 = vpop.xlane.xlu0 %2765
      %v2767 = vsel %vm1394, %v2763, -inf
      %2768 = vmax.xlane.f32.xlu0 %v2767
      %v2769 = vpop.xlane.xlu0 %2768
      %v2770 = vsub.f32 %v2762, %v2766
      %v2771 = vsub.f32 %v2763, %v2769
      %v2772 = vmul.f32 %v2770, 1.442695
      %v2773 = vpow.pop %v2772
      %v2774 = vmul.f32 %v2771, 1.442695
      %v2775 = vpow.pop %v2774
      %v2776 = vsel %vm1394, %v2773, 0.0
      %2777 = vadd.xlane.f32.xlu0 %v2776
      %v2778 = vpop.xlane.xlu0 %2777
      %v2779 = vsel %vm1394, %v2775, 0.0
      %2780 = vadd.xlane.f32.xlu0 %v2779
      %v2781 = vpop.xlane.xlu0 %2780
      %v2782 = vrcp.pop %v2778
      %v2783 = vrcp.pop %v2781
      %v2784 = vmul.f32 %v2773, %v2782
      %v2785 = vmul.f32 %v2775, %v2783
      %v2786 = vpack.c.bf16 %v2785, %v2784
      %2787 = vrot.lane.b32.xlu0 %v2669, 56
      %v2788 = vpop.permute.xlu0 %2787
      %v2791 = vsel %vm1394, %v2786, 0
      %2793 = vmatpush.bf16.msra.mxu0 0
      %2794 = vmatpush.bf16.msra.mxu0 0
      %2795 = vmatpush.bf16.msra.mxu0 0
      %2796 = vmatpush.bf16.msra.mxu0 0
      %2797 = vmatpush.bf16.msra.mxu0 0
      %2798 = vmatpush.bf16.msra.mxu0 0
      %2799 = vmatpush.bf16.msra.mxu0 0
      %2800 = vmatpush.bf16.msra.mxu0 %v2788
      %2801 = vmatmul.bf16.gmra.mxu0 %v2791
      %v2802 = vpop.f32.mrf.mxu0
      %v2803 = vadd.f32 0.0, %v2802
      %v2804 = vpop.f32.mrf.mxu0
      %v2805 = vadd.f32 0.0, %v2804
      %2806 = vdwg.mxu0
      %2807 = vrot.lane.b32.xlu0 %v2669, 112
      %v2808 = vpop.permute.xlu0 %2807
      %2809 = vrot.lane.b32.xlu0 %v2669, 80
      %v2810 = vpop.permute.xlu0 %2809
      %v2812 = vsel %vm1371, %v2808, 0
      %v2815 = vsel %vm1371, %v2810, 0
      %2817 = vmatpush.bf16.xpose.msra.mxu0 0
      %2818 = vmatpush.bf16.xpose.msra.mxu0 0
      %2819 = vmatpush.bf16.xpose.msra.mxu0 0
      %2820 = vmatpush.bf16.xpose.msra.mxu0 0
      %2821 = vmatpush.bf16.xpose.msra.mxu0 0
      %2822 = vmatpush.bf16.xpose.msra.mxu0 0
      %2823 = vmatpush.bf16.xpose.msra.mxu0 0
      %2824 = vmatpush.bf16.xpose.msra.mxu0 %v2815
      %2825 = vmatmul.bf16.gmra.mxu0 %v2812
      %v2826 = vpop.f32.mrf.mxu0
      %v2827 = vadd.f32 0.0, %v2826
      %v2828 = vpop.f32.mrf.mxu0
      %v2829 = vadd.f32 0.0, %v2828
      %2830 = vdwg.mxu0
      %v2831 = vmul.f32 %v2827, 0.35355338
      %v2832 = vmul.f32 %v2829, 0.35355338
      %v2833 = vsel %vm1394, %v2831, -inf
      %2834 = vmax.xlane.f32.xlu0 %v2833
      %v2835 = vpop.xlane.xlu0 %2834
      %v2836 = vsel %vm1394, %v2832, -inf
      %2837 = vmax.xlane.f32.xlu0 %v2836
      %v2838 = vpop.xlane.xlu0 %2837
      %v2839 = vsub.f32 %v2831, %v2835
      %v2840 = vsub.f32 %v2832, %v2838
      %v2841 = vmul.f32 %v2839, 1.442695
      %v2842 = vpow.pop %v2841
      %v2843 = vmul.f32 %v2840, 1.442695
      %v2844 = vpow.pop %v2843
      %v2845 = vsel %vm1394, %v2842, 0.0
      %2846 = vadd.xlane.f32.xlu0 %v2845
      %v2847 = vpop.xlane.xlu0 %2846
      %v2848 = vsel %vm1394, %v2844, 0.0
      %2849 = vadd.xlane.f32.xlu0 %v2848
      %v2850 = vpop.xlane.xlu0 %2849
      %v2851 = vrcp.pop %v2847
      %v2852 = vrcp.pop %v2850
      %v2853 = vmul.f32 %v2842, %v2851
      %v2854 = vmul.f32 %v2844, %v2852
      %v2855 = vpack.c.bf16 %v2854, %v2853
      %2856 = vrot.lane.b32.xlu0 %v2669, 48
      %v2857 = vpop.permute.xlu0 %2856
      %v2860 = vsel %vm1394, %v2855, 0
      %2862 = vmatpush.bf16.msra.mxu0 0
      %2863 = vmatpush.bf16.msra.mxu0 0
      %2864 = vmatpush.bf16.msra.mxu0 0
      %2865 = vmatpush.bf16.msra.mxu0 0
      %2866 = vmatpush.bf16.msra.mxu0 0
      %2867 = vmatpush.bf16.msra.mxu0 0
      %2868 = vmatpush.bf16.msra.mxu0 0
      %2869 = vmatpush.bf16.msra.mxu0 %v2857
      %2870 = vmatmul.bf16.gmra.mxu0 %v2860
      %v2871 = vpop.f32.mrf.mxu0
      %v2872 = vadd.f32 0.0, %v2871
      %v2873 = vpop.f32.mrf.mxu0
      %v2874 = vadd.f32 0.0, %v2873
      %2875 = vdwg.mxu0
      %2876 = vrot.lane.b32.xlu0 %v2669, 104
      %v2877 = vpop.permute.xlu0 %2876
      %2878 = vrot.lane.b32.xlu0 %v2669, 72
      %v2879 = vpop.permute.xlu0 %2878
      %v2881 = vsel %vm1371, %v2877, 0
      %v2884 = vsel %vm1371, %v2879, 0
      %2886 = vmatpush.bf16.xpose.msra.mxu0 0
      %2887 = vmatpush.bf16.xpose.msra.mxu0 0
      %2888 = vmatpush.bf16.xpose.msra.mxu0 0
      %2889 = vmatpush.bf16.xpose.msra.mxu0 0
      %2890 = vmatpush.bf16.xpose.msra.mxu0 0
      %2891 = vmatpush.bf16.xpose.msra.mxu0 0
      %2892 = vmatpush.bf16.xpose.msra.mxu0 0
      %2893 = vmatpush.bf16.xpose.msra.mxu0 %v2884
      %2894 = vmatmul.bf16.gmra.mxu0 %v2881
      %v2895 = vpop.f32.mrf.mxu0
      %v2896 = vadd.f32 0.0, %v2895
      %v2897 = vpop.f32.mrf.mxu0
      %v2898 = vadd.f32 0.0, %v2897
      %2899 = vdwg.mxu0
      %v2900 = vmul.f32 %v2896, 0.35355338
      %v2901 = vmul.f32 %v2898, 0.35355338
      %v2902 = vsel %vm1394, %v2900, -inf
      %2903 = vmax.xlane.f32.xlu0 %v2902
      %v2904 = vpop.xlane.xlu0 %2903
      %v2905 = vsel %vm1394, %v2901, -inf
      %2906 = vmax.xlane.f32.xlu0 %v2905
      %v2907 = vpop.xlane.xlu0 %2906
      %v2908 = vsub.f32 %v2900, %v2904
      %v2909 = vsub.f32 %v2901, %v2907
      %v2910 = vmul.f32 %v2908, 1.442695
      %v2911 = vpow.pop %v2910
      %v2912 = vmul.f32 %v2909, 1.442695
      %v2913 = vpow.pop %v2912
      %v2914 = vsel %vm1394, %v2911, 0.0
      %2915 = vadd.xlane.f32.xlu0 %v2914
      %v2916 = vpop.xlane.xlu0 %2915
      %v2917 = vsel %vm1394, %v2913, 0.0
      %2918 = vadd.xlane.f32.xlu0 %v2917
      %v2919 = vpop.xlane.xlu0 %2918
      %v2920 = vrcp.pop %v2916
      %v2921 = vrcp.pop %v2919
      %v2922 = vmul.f32 %v2911, %v2920
      %v2923 = vmul.f32 %v2913, %v2921
      %v2924 = vpack.c.bf16 %v2923, %v2922
      %2925 = vrot.lane.b32.xlu0 %v2669, 40
      %v2926 = vpop.permute.xlu0 %2925
      %v2929 = vsel %vm1394, %v2924, 0
      %2931 = vmatpush.bf16.msra.mxu0 0
      %2932 = vmatpush.bf16.msra.mxu0 0
      %2933 = vmatpush.bf16.msra.mxu0 0
      %2934 = vmatpush.bf16.msra.mxu0 0
      %2935 = vmatpush.bf16.msra.mxu0 0
      %2936 = vmatpush.bf16.msra.mxu0 0
      %2937 = vmatpush.bf16.msra.mxu0 0
      %2938 = vmatpush.bf16.msra.mxu0 %v2926
      %2939 = vmatmul.bf16.gmra.mxu0 %v2929
      %v2940 = vpop.f32.mrf.mxu0
      %v2941 = vadd.f32 0.0, %v2940
      %v2942 = vpop.f32.mrf.mxu0
      %v2943 = vadd.f32 0.0, %v2942
      %2944 = vdwg.mxu0
      %2947 = vrot.lane.b32.xlu0 %v2803, 8
      %v2948 = vpop.permute.xlu0 %2947
      %2949 = vrot.lane.b32.xlu0 %v2805, 8
      %v2950 = vpop.permute.xlu0 %2949
      %2955 = vrot.lane.b32.xlu0 %v2872, 16
      %v2956 = vpop.permute.xlu0 %2955
      %2957 = vrot.lane.b32.xlu0 %v2874, 16
      %v2958 = vpop.permute.xlu0 %2957
      %2963 = vrot.lane.b32.xlu0 %v2941, 24
      %v2964 = vpop.permute.xlu0 %2963
      %2965 = vrot.lane.b32.xlu0 %v2943, 24
      %v2966 = vpop.permute.xlu0 %2965
      %v2969 = vsel %vm1371, %v2734, %v2948
      %v2970 = vsel %vm1371, %v2736, %v2950
      %v2971 = vsel %vm1394, %v2969, %v2956
      %v2972 = vsel %vm1394, %v2970, %v2958
      %v2973 = vsel %vm1673, %v2971, %v2964
      %v2974 = vsel %vm1673, %v2972, %v2966
      %s2975 = scalar_lea.vmem %s23, 64
      %v2976 = vld [vmem:[%s2975] sm:$0xff]
      %v2977 = vld [vmem:[%s2975 + $0x8] sm:$0xff]
      %v2978 = vld [vmem:[%s2975 + $0x10] sm:$0xff]
      %v2979 = vld [vmem:[%s2975 + $0x18] sm:$0xff]
      %v2980 = vpack.c.bf16 %v2974, %v2973
      %v2981 = vpack.c.bf16 %v2977, %v2976
      %v2982 = vpack.c.bf16 %v2979, %v2978
      %v2984 = vsel %vm1277, %v2980, 0
      %2986 = vmatpush.bf16.msra.mxu0 0
      %2987 = vmatpush.bf16.msra.mxu0 0
      %2988 = vmatpush.bf16.msra.mxu0 0
      %2989 = vmatpush.bf16.msra.mxu0 0
      %2990 = vmatpush.bf16.msra.mxu0 0
      %2991 = vmatpush.bf16.msra.mxu0 0
      %2992 = vmatpush.bf16.msra.mxu0 %v2982
      %2993 = vmatpush.bf16.msra.mxu0 %v2981
      %2994 = vmatmul.bf16.gmra.mxu0 %v2984
      %v2995 = vpop.f32.mrf.mxu0
      %v2996 = vadd.f32 0.0, %v2995
      %v2997 = vpop.f32.mrf.mxu0
      %v2998 = vadd.f32 0.0, %v2997
      %2999 = vdwg.mxu0
      %v3000 = vadd.f32 %v2579, %v2996
      %v3001 = vadd.f32 %v2580, %v2998
      %s3002 = scalar_lea.vmem %s25, 2
      %v3003 = vld [vmem:[%s3002] sm:$0x1]
      %v3005 = vperm.slane %v3003, 0
      %v3007 = vadd.f32 %v3000, %v3005
      %v3008 = vadd.f32 %v3001, %v3005
      %s3009 = scalar_lea.vmem %s27, 2
      %v3010 = vld [vmem:[%s3009] sm:$0x1]
      %s3011 = scalar_lea.vmem %s29, 2
      %v3012 = vld [vmem:[%s3011] sm:$0x1]
      %v3013 = vsel %vm1277, %v3007, 0.0
      %3014 = vadd.xlane.f32.xlu0 %v3013
      %v3015 = vpop.xlane.xlu0 %3014
      %v3016 = vsel %vm1277, %v3008, 0.0
      %3017 = vadd.xlane.f32.xlu0 %v3016
      %v3018 = vpop.xlane.xlu0 %3017
      %v3019 = vmul.f32 %v3015, %v1290
      %v3020 = vmul.f32 %v3018, %v1290
      %v3021 = vsub.f32 %v3007, %v3019
      %v3022 = vsub.f32 %v3008, %v3020
      %v3023 = vmul.f32 %v3021, %v3021
      %v3024 = vmul.f32 %v3022, %v3022
      %v3025 = vsel %vm1277, %v3023, 0.0
      %3026 = vadd.xlane.f32.xlu0 %v3025
      %v3027 = vpop.xlane.xlu0 %3026
      %v3028 = vsel %vm1277, %v3024, 0.0
      %3029 = vadd.xlane.f32.xlu0 %v3028
      %v3030 = vpop.xlane.xlu0 %3029
      %v3031 = vmul.f32 %v3027, %v1290
      %v3032 = vmul.f32 %v3030, %v1290
      %v3033 = vadd.f32 %v3031, 1e-05
      %v3034 = vadd.f32 %v3032, 1e-05
      %v3035 = vrsqrt.pop %v3033
      %v3036 = vmul.f32 %v3035, %v3033
      %v3037 = vmul.f32 %v3036, %v3035
      %v3038 = vmul.f32 0.5, %v3037
      %v3039 = vsub.f32 1.5, %v3038
      %v3040 = vmul.f32 %v3035, %v3039
      %vm3041 = vweird.f32 %v3033
      %vm3042 = vweird.f32 %v3035
      %vm3043 = vmor %vm3041, %vm3042
      %v3044 = vsel %vm3043, %v3035, %v3040
      %v3045 = vrsqrt.pop %v3034
      %v3046 = vmul.f32 %v3045, %v3034
      %v3047 = vmul.f32 %v3046, %v3045
      %v3048 = vmul.f32 0.5, %v3047
      %v3049 = vsub.f32 1.5, %v3048
      %v3050 = vmul.f32 %v3045, %v3049
      %vm3051 = vweird.f32 %v3034
      %vm3052 = vweird.f32 %v3045
      %vm3053 = vmor %vm3051, %vm3052
      %v3054 = vsel %vm3053, %v3045, %v3050
      %v3055 = vmul.f32 %v3021, %v3044
      %v3056 = vmul.f32 %v3022, %v3054
      %v3058 = vperm.slane %v3010, 0
      %v3060 = vmul.f32 %v3055, %v3058
      %v3061 = vmul.f32 %v3056, %v3058
      %v3063 = vperm.slane %v3012, 0
      %v3065 = vadd.f32 %v3060, %v3063
      %v3066 = vadd.f32 %v3061, %v3063
      %s3067 = scalar_lea.vmem %s31, 64
      %v3068 = vld [vmem:[%s3067] sm:$0xff]
      %v3069 = vld [vmem:[%s3067 + $0x8] sm:$0xff]
      %v3070 = vld [vmem:[%s3067 + $0x10] sm:$0xff]
      %v3071 = vld [vmem:[%s3067 + $0x18] sm:$0xff]
      %v3072 = vpack.c.bf16 %v3066, %v3065
      %v3073 = vpack.c.bf16 %v3069, %v3068
      %v3074 = vpack.c.bf16 %v3071, %v3070
      %s3075 = scalar_lea.vmem %s33, 2
      %v3076 = vld [vmem:[%s3075] sm:$0x1]
      %v3078 = vperm.slane %v3076, 0
      %v3081 = vsel %vm1277, %v3072, 0
      %3083 = vmatpush.bf16.msra.mxu0 0
      %3084 = vmatpush.bf16.msra.mxu0 0
      %3085 = vmatpush.bf16.msra.mxu0 0
      %3086 = vmatpush.bf16.msra.mxu0 0
      %3087 = vmatpush.bf16.msra.mxu0 0
      %3088 = vmatpush.bf16.msra.mxu0 0
      %3089 = vmatpush.bf16.msra.mxu0 %v3074
      %3090 = vmatpush.bf16.msra.mxu0 %v3073
      %3091 = vmatmul.bf16.gmra.mxu0 %v3081
      %v3092 = vpop.f32.mrf.mxu0
      %v3093 = vadd.f32 %v3078, %v3092
      %v3094 = vpop.f32.mrf.mxu0
      %v3095 = vadd.f32 %v3078, %v3094
      %3096 = vdwg.mxu0
      %v3097 = vmul.f32 %v3093, 0.5
      %v3098 = vmul.f32 %v3095, 0.5
      %v3099 = vmul.f32 %v3093, 0.044715
      %v3100 = vmul.f32 %v3095, 0.044715
      %v3101 = vmul.f32 %v3099, %v3093
      %v3102 = vmul.f32 %v3100, %v3095
      %v3103 = vmul.f32 %v3101, %v3093
      %v3104 = vmul.f32 %v3102, %v3095
      %v3105 = vadd.f32 %v3093, %v3103
      %v3106 = vadd.f32 %v3095, %v3104
      %v3107 = vmul.f32 %v3105, 0.7978846
      %v3108 = vmul.f32 %v3106, 0.7978846
      %v3109 = vtanh.pop %v3107
      %v3110 = vtanh.pop %v3108
      %v3111 = vadd.f32 %v3109, 1.0
      %v3112 = vadd.f32 %v3110, 1.0
      %v3113 = vmul.f32 %v3097, %v3111
      %v3114 = vmul.f32 %v3098, %v3112
      %s3115 = scalar_lea.vmem %s35, 256
      %v3116 = vld [vmem:[%s3115] sm:$0xff]
      %v3117 = vld [vmem:[%s3115 + $0x8] sm:$0xff]
      %v3118 = vld [vmem:[%s3115 + $0x10] sm:$0xff]
      %v3119 = vld [vmem:[%s3115 + $0x18] sm:$0xff]
      %v3120 = vld [vmem:[%s3115 + $0x20] sm:$0xff]
      %v3121 = vld [vmem:[%s3115 + $0x28] sm:$0xff]
      %v3122 = vld [vmem:[%s3115 + $0x30] sm:$0xff]
      %v3123 = vld [vmem:[%s3115 + $0x38] sm:$0xff]
      %v3124 = vld [vmem:[%s3115 + $0x40] sm:$0xff]
      %v3125 = vld [vmem:[%s3115 + $0x48] sm:$0xff]
      %v3126 = vld [vmem:[%s3115 + $0x50] sm:$0xff]
      %v3127 = vld [vmem:[%s3115 + $0x58] sm:$0xff]
      %v3128 = vld [vmem:[%s3115 + $0x60] sm:$0xff]
      %v3129 = vld [vmem:[%s3115 + $0x68] sm:$0xff]
      %v3130 = vld [vmem:[%s3115 + $0x70] sm:$0xff]
      %v3131 = vld [vmem:[%s3115 + $0x78] sm:$0xff]
      %v3132 = vpack.c.bf16 %v3114, %v3113
      %v3133 = vpack.c.bf16 %v3117, %v3116
      %v3134 = vpack.c.bf16 %v3119, %v3118
      %v3135 = vpack.c.bf16 %v3121, %v3120
      %v3136 = vpack.c.bf16 %v3123, %v3122
      %v3137 = vpack.c.bf16 %v3125, %v3124
      %v3138 = vpack.c.bf16 %v3127, %v3126
      %v3139 = vpack.c.bf16 %v3129, %v3128
      %v3140 = vpack.c.bf16 %v3131, %v3130
      %3141 = vmatpush.bf16.msra.mxu0 %v3140
      %3142 = vmatpush.bf16.msra.mxu0 %v3139
      %3143 = vmatpush.bf16.msra.mxu0 %v3138
      %3144 = vmatpush.bf16.msra.mxu0 %v3137
      %3145 = vmatpush.bf16.msra.mxu0 %v3136
      %3146 = vmatpush.bf16.msra.mxu0 %v3135
      %3147 = vmatpush.bf16.msra.mxu0 %v3134
      %3148 = vmatpush.bf16.msra.mxu0 %v3133
      %3149 = vmatmul.bf16.gmra.mxu0 %v3132
      %v3150 = vpop.f32.mrf.mxu0
      %v3151 = vadd.f32 0.0, %v3150
      %v3152 = vpop.f32.mrf.mxu0
      %v3153 = vadd.f32 0.0, %v3152
      %3154 = vdwg.mxu0
      %v3155 = vadd.f32 %v3007, %v3151
      %v3156 = vadd.f32 %v3008, %v3153
      %s3157 = scalar_lea.vmem %s37, 2
      %v3158 = vld [vmem:[%s3157] sm:$0x1]
      %v3160 = vperm.slane %v3158, 0
      %v3162 = vadd.f32 %v3155, %v3160
      %v3163 = vadd.f32 %v3156, %v3160
      %s3164 = scalar_lea.vmem %s15, 3
      %v3165 = vld [vmem:[%s3164] sm:$0x1]
      %s3166 = scalar_lea.vmem %s17, 3
      %v3167 = vld [vmem:[%s3166] sm:$0x1]
      %v3168 = vsel %vm1277, %v3162, 0.0
      %3169 = vadd.xlane.f32.xlu0 %v3168
      %v3170 = vpop.xlane.xlu0 %3169
      %v3171 = vsel %vm1277, %v3163, 0.0
      %3172 = vadd.xlane.f32.xlu0 %v3171
      %v3173 = vpop.xlane.xlu0 %3172
      %v3174 = vmul.f32 %v3170, %v1290
      %v3175 = vmul.f32 %v3173, %v1290
      %v3176 = vsub.f32 %v3162, %v3174
      %v3177 = vsub.f32 %v3163, %v3175
      %v3178 = vmul.f32 %v3176, %v3176
      %v3179 = vmul.f32 %v3177, %v3177
      %v3180 = vsel %vm1277, %v3178, 0.0
      %3181 = vadd.xlane.f32.xlu0 %v3180
      %v3182 = vpop.xlane.xlu0 %3181
      %v3183 = vsel %vm1277, %v3179, 0.0
      %3184 = vadd.xlane.f32.xlu0 %v3183
      %v3185 = vpop.xlane.xlu0 %3184
      %v3186 = vmul.f32 %v3182, %v1290
      %v3187 = vmul.f32 %v3185, %v1290
      %v3188 = vadd.f32 %v3186, 1e-05
      %v3189 = vadd.f32 %v3187, 1e-05
      %v3190 = vrsqrt.pop %v3188
      %v3191 = vmul.f32 %v3190, %v3188
      %v3192 = vmul.f32 %v3191, %v3190
      %v3193 = vmul.f32 0.5, %v3192
      %v3194 = vsub.f32 1.5, %v3193
      %v3195 = vmul.f32 %v3190, %v3194
      %vm3196 = vweird.f32 %v3188
      %vm3197 = vweird.f32 %v3190
      %vm3198 = vmor %vm3196, %vm3197
      %v3199 = vsel %vm3198, %v3190, %v3195
      %v3200 = vrsqrt.pop %v3189
      %v3201 = vmul.f32 %v3200, %v3189
      %v3202 = vmul.f32 %v3201, %v3200
      %v3203 = vmul.f32 0.5, %v3202
      %v3204 = vsub.f32 1.5, %v3203
      %v3205 = vmul.f32 %v3200, %v3204
      %vm3206 = vweird.f32 %v3189
      %vm3207 = vweird.f32 %v3200
      %vm3208 = vmor %vm3206, %vm3207
      %v3209 = vsel %vm3208, %v3200, %v3205
      %v3210 = vmul.f32 %v3176, %v3199
      %v3211 = vmul.f32 %v3177, %v3209
      %v3213 = vperm.slane %v3165, 0
      %v3215 = vmul.f32 %v3210, %v3213
      %v3216 = vmul.f32 %v3211, %v3213
      %v3218 = vperm.slane %v3167, 0
      %v3220 = vadd.f32 %v3215, %v3218
      %v3221 = vadd.f32 %v3216, %v3218
      %s3222 = scalar_lea.vmem %s19, 96
      %v3223 = vld [vmem:[%s3222] sm:$0xff]
      %v3224 = vld [vmem:[%s3222 + $0x8] sm:$0xff]
      %v3225 = vld [vmem:[%s3222 + $0x10] sm:$0xff]
      %v3226 = vld [vmem:[%s3222 + $0x18] sm:$0xff]
      %v3227 = vpack.c.bf16 %v3221, %v3220
      %v3228 = vpack.c.bf16 %v3224, %v3223
      %v3229 = vpack.c.bf16 %v3226, %v3225
      %s3230 = scalar_lea.vmem %s21, 3
      %v3231 = vld [vmem:[%s3230] sm:$0x1]
      %v3233 = vperm.slane %v3231, 0
      %v3236 = vsel %vm1277, %v3227, 0
      %3238 = vmatpush.bf16.msra.mxu0 0
      %3239 = vmatpush.bf16.msra.mxu0 0
      %3240 = vmatpush.bf16.msra.mxu0 0
      %3241 = vmatpush.bf16.msra.mxu0 0
      %3242 = vmatpush.bf16.msra.mxu0 0
      %3243 = vmatpush.bf16.msra.mxu0 0
      %3244 = vmatpush.bf16.msra.mxu0 %v3229
      %3245 = vmatpush.bf16.msra.mxu0 %v3228
      %3246 = vmatmul.bf16.gmra.mxu0 %v3236
      %v3247 = vpop.f32.mrf.mxu0
      %v3248 = vadd.f32 %v3233, %v3247
      %v3249 = vpop.f32.mrf.mxu0
      %v3250 = vadd.f32 %v3233, %v3249
      %3251 = vdwg.mxu0
      %v3252 = vpack.c.bf16 %v3250, %v3248
      %3254 = vrot.lane.b32.xlu0 %v3252, 96
      %v3255 = vpop.permute.xlu0 %3254
      %v3257 = vsel %vm1371, %v3252, 0
      %v3260 = vsel %vm1371, %v3255, 0
      %3262 = vmatpush.bf16.xpose.msra.mxu0 0
      %3263 = vmatpush.bf16.xpose.msra.mxu0 0
      %3264 = vmatpush.bf16.xpose.msra.mxu0 0
      %3265 = vmatpush.bf16.xpose.msra.mxu0 0
      %3266 = vmatpush.bf16.xpose.msra.mxu0 0
      %3267 = vmatpush.bf16.xpose.msra.mxu0 0
      %3268 = vmatpush.bf16.xpose.msra.mxu0 0
      %3269 = vmatpush.bf16.xpose.msra.mxu0 %v3260
      %3270 = vmatmul.bf16.gmra.mxu0 %v3257
      %v3271 = vpop.f32.mrf.mxu0
      %v3272 = vadd.f32 0.0, %v3271
      %v3273 = vpop.f32.mrf.mxu0
      %v3274 = vadd.f32 0.0, %v3273
      %3275 = vdwg.mxu0
      %v3276 = vmul.f32 %v3272, 0.35355338
      %v3277 = vmul.f32 %v3274, 0.35355338
      %v3278 = vsel %vm1394, %v3276, -inf
      %3279 = vmax.xlane.f32.xlu0 %v3278
      %v3280 = vpop.xlane.xlu0 %3279
      %v3281 = vsel %vm1394, %v3277, -inf
      %3282 = vmax.xlane.f32.xlu0 %v3281
      %v3283 = vpop.xlane.xlu0 %3282
      %v3284 = vsub.f32 %v3276, %v3280
      %v3285 = vsub.f32 %v3277, %v3283
      %v3286 = vmul.f32 %v3284, 1.442695
      %v3287 = vpow.pop %v3286
      %v3288 = vmul.f32 %v3285, 1.442695
      %v3289 = vpow.pop %v3288
      %v3290 = vsel %vm1394, %v3287, 0.0
      %3291 = vadd.xlane.f32.xlu0 %v3290
      %v3292 = vpop.xlane.xlu0 %3291
      %v3293 = vsel %vm1394, %v3289, 0.0
      %3294 = vadd.xlane.f32.xlu0 %v3293
      %v3295 = vpop.xlane.xlu0 %3294
      %v3296 = vrcp.pop %v3292
      %v3297 = vrcp.pop %v3295
      %v3298 = vmul.f32 %v3287, %v3296
      %v3299 = vmul.f32 %v3289, %v3297
      %v3300 = vpack.c.bf16 %v3299, %v3298
      %3301 = vrot.lane.b32.xlu0 %v3252, 64
      %v3302 = vpop.permute.xlu0 %3301
      %v3305 = vsel %vm1394, %v3300, 0
      %3307 = vmatpush.bf16.msra.mxu0 0
      %3308 = vmatpush.bf16.msra.mxu0 0
      %3309 = vmatpush.bf16.msra.mxu0 0
      %3310 = vmatpush.bf16.msra.mxu0 0
      %3311 = vmatpush.bf16.msra.mxu0 0
      %3312 = vmatpush.bf16.msra.mxu0 0
      %3313 = vmatpush.bf16.msra.mxu0 0
      %3314 = vmatpush.bf16.msra.mxu0 %v3302
      %3315 = vmatmul.bf16.gmra.mxu0 %v3305
      %v3316 = vpop.f32.mrf.mxu0
      %v3317 = vadd.f32 0.0, %v3316
      %v3318 = vpop.f32.mrf.mxu0
      %v3319 = vadd.f32 0.0, %v3318
      %3320 = vdwg.mxu0
      %3321 = vrot.lane.b32.xlu0 %v3252, 120
      %v3322 = vpop.permute.xlu0 %3321
      %3323 = vrot.lane.b32.xlu0 %v3252, 88
      %v3324 = vpop.permute.xlu0 %3323
      %v3326 = vsel %vm1371, %v3322, 0
      %v3329 = vsel %vm1371, %v3324, 0
      %3331 = vmatpush.bf16.xpose.msra.mxu0 0
      %3332 = vmatpush.bf16.xpose.msra.mxu0 0
      %3333 = vmatpush.bf16.xpose.msra.mxu0 0
      %3334 = vmatpush.bf16.xpose.msra.mxu0 0
      %3335 = vmatpush.bf16.xpose.msra.mxu0 0
      %3336 = vmatpush.bf16.xpose.msra.mxu0 0
      %3337 = vmatpush.bf16.xpose.msra.mxu0 0
      %3338 = vmatpush.bf16.xpose.msra.mxu0 %v3329
      %3339 = vmatmul.bf16.gmra.mxu0 %v3326
      %v3340 = vpop.f32.mrf.mxu0
      %v3341 = vadd.f32 0.0, %v3340
      %v3342 = vpop.f32.mrf.mxu0
      %v3343 = vadd.f32 0.0, %v3342
      %3344 = vdwg.mxu0
      %v3345 = vmul.f32 %v3341, 0.35355338
      %v3346 = vmul.f32 %v3343, 0.35355338
      %v3347 = vsel %vm1394, %v3345, -inf
      %3348 = vmax.xlane.f32.xlu0 %v3347
      %v3349 = vpop.xlane.xlu0 %3348
      %v3350 = vsel %vm1394, %v3346, -inf
      %3351 = vmax.xlane.f32.xlu0 %v3350
      %v3352 = vpop.xlane.xlu0 %3351
      %v3353 = vsub.f32 %v3345, %v3349
      %v3354 = vsub.f32 %v3346, %v3352
      %v3355 = vmul.f32 %v3353, 1.442695
      %v3356 = vpow.pop %v3355
      %v3357 = vmul.f32 %v3354, 1.442695
      %v3358 = vpow.pop %v3357
      %v3359 = vsel %vm1394, %v3356, 0.0
      %3360 = vadd.xlane.f32.xlu0 %v3359
      %v3361 = vpop.xlane.xlu0 %3360
      %v3362 = vsel %vm1394, %v3358, 0.0
      %3363 = vadd.xlane.f32.xlu0 %v3362
      %v3364 = vpop.xlane.xlu0 %3363
      %v3365 = vrcp.pop %v3361
      %v3366 = vrcp.pop %v3364
      %v3367 = vmul.f32 %v3356, %v3365
      %v3368 = vmul.f32 %v3358, %v3366
      %v3369 = vpack.c.bf16 %v3368, %v3367
      %3370 = vrot.lane.b32.xlu0 %v3252, 56
      %v3371 = vpop.permute.xlu0 %3370
      %v3374 = vsel %vm1394, %v3369, 0
      %3376 = vmatpush.bf16.msra.mxu0 0
      %3377 = vmatpush.bf16.msra.mxu0 0
      %3378 = vmatpush.bf16.msra.mxu0 0
      %3379 = vmatpush.bf16.msra.mxu0 0
      %3380 = vmatpush.bf16.msra.mxu0 0
      %3381 = vmatpush.bf16.msra.mxu0 0
      %3382 = vmatpush.bf16.msra.mxu0 0
      %3383 = vmatpush.bf16.msra.mxu0 %v3371
      %3384 = vmatmul.bf16.gmra.mxu0 %v3374
      %v3385 = vpop.f32.mrf.mxu0
      %v3386 = vadd.f32 0.0, %v3385
      %v3387 = vpop.f32.mrf.mxu0
      %v3388 = vadd.f32 0.0, %v3387
      %3389 = vdwg.mxu0
      %3390 = vrot.lane.b32.xlu0 %v3252, 112
      %v3391 = vpop.permute.xlu0 %3390
      %3392 = vrot.lane.b32.xlu0 %v3252, 80
      %v3393 = vpop.permute.xlu0 %3392
      %v3395 = vsel %vm1371, %v3391, 0
      %v3398 = vsel %vm1371, %v3393, 0
      %3400 = vmatpush.bf16.xpose.msra.mxu0 0
      %3401 = vmatpush.bf16.xpose.msra.mxu0 0
      %3402 = vmatpush.bf16.xpose.msra.mxu0 0
      %3403 = vmatpush.bf16.xpose.msra.mxu0 0
      %3404 = vmatpush.bf16.xpose.msra.mxu0 0
      %3405 = vmatpush.bf16.xpose.msra.mxu0 0
      %3406 = vmatpush.bf16.xpose.msra.mxu0 0
      %3407 = vmatpush.bf16.xpose.msra.mxu0 %v3398
      %3408 = vmatmul.bf16.gmra.mxu0 %v3395
      %v3409 = vpop.f32.mrf.mxu0
      %v3410 = vadd.f32 0.0, %v3409
      %v3411 = vpop.f32.mrf.mxu0
      %v3412 = vadd.f32 0.0, %v3411
      %3413 = vdwg.mxu0
      %v3414 = vmul.f32 %v3410, 0.35355338
      %v3415 = vmul.f32 %v3412, 0.35355338
      %v3416 = vsel %vm1394, %v3414, -inf
      %3417 = vmax.xlane.f32.xlu0 %v3416
      %v3418 = vpop.xlane.xlu0 %3417
      %v3419 = vsel %vm1394, %v3415, -inf
      %3420 = vmax.xlane.f32.xlu0 %v3419
      %v3421 = vpop.xlane.xlu0 %3420
      %v3422 = vsub.f32 %v3414, %v3418
      %v3423 = vsub.f32 %v3415, %v3421
      %v3424 = vmul.f32 %v3422, 1.442695
      %v3425 = vpow.pop %v3424
      %v3426 = vmul.f32 %v3423, 1.442695
      %v3427 = vpow.pop %v3426
      %v3428 = vsel %vm1394, %v3425, 0.0
      %3429 = vadd.xlane.f32.xlu0 %v3428
      %v3430 = vpop.xlane.xlu0 %3429
      %v3431 = vsel %vm1394, %v3427, 0.0
      %3432 = vadd.xlane.f32.xlu0 %v3431
      %v3433 = vpop.xlane.xlu0 %3432
      %v3434 = vrcp.pop %v3430
      %v3435 = vrcp.pop %v3433
      %v3436 = vmul.f32 %v3425, %v3434
      %v3437 = vmul.f32 %v3427, %v3435
      %v3438 = vpack.c.bf16 %v3437, %v3436
      %3439 = vrot.lane.b32.xlu0 %v3252, 48
      %v3440 = vpop.permute.xlu0 %3439
      %v3443 = vsel %vm1394, %v3438, 0
      %3445 = vmatpush.bf16.msra.mxu0 0
      %3446 = vmatpush.bf16.msra.mxu0 0
      %3447 = vmatpush.bf16.msra.mxu0 0
      %3448 = vmatpush.bf16.msra.mxu0 0
      %3449 = vmatpush.bf16.msra.mxu0 0
      %3450 = vmatpush.bf16.msra.mxu0 0
      %3451 = vmatpush.bf16.msra.mxu0 0
      %3452 = vmatpush.bf16.msra.mxu0 %v3440
      %3453 = vmatmul.bf16.gmra.mxu0 %v3443
      %v3454 = vpop.f32.mrf.mxu0
      %v3455 = vadd.f32 0.0, %v3454
      %v3456 = vpop.f32.mrf.mxu0
      %v3457 = vadd.f32 0.0, %v3456
      %3458 = vdwg.mxu0
      %3459 = vrot.lane.b32.xlu0 %v3252, 104
      %v3460 = vpop.permute.xlu0 %3459
      %3461 = vrot.lane.b32.xlu0 %v3252, 72
      %v3462 = vpop.permute.xlu0 %3461
      %v3464 = vsel %vm1371, %v3460, 0
      %v3467 = vsel %vm1371, %v3462, 0
      %3469 = vmatpush.bf16.xpose.msra.mxu0 0
      %3470 = vmatpush.bf16.xpose.msra.mxu0 0
      %3471 = vmatpush.bf16.xpose.msra.mxu0 0
      %3472 = vmatpush.bf16.xpose.msra.mxu0 0
      %3473 = vmatpush.bf16.xpose.msra.mxu0 0
      %3474 = vmatpush.bf16.xpose.msra.mxu0 0
      %3475 = vmatpush.bf16.xpose.msra.mxu0 0
      %3476 = vmatpush.bf16.xpose.msra.mxu0 %v3467
      %3477 = vmatmul.bf16.gmra.mxu0 %v3464
      %v3478 = vpop.f32.mrf.mxu0
      %v3479 = vadd.f32 0.0, %v3478
      %v3480 = vpop.f32.mrf.mxu0
      %v3481 = vadd.f32 0.0, %v3480
      %3482 = vdwg.mxu0
      %v3483 = vmul.f32 %v3479, 0.35355338
      %v3484 = vmul.f32 %v3481, 0.35355338
      %v3485 = vsel %vm1394, %v3483, -inf
      %3486 = vmax.xlane.f32.xlu0 %v3485
      %v3487 = vpop.xlane.xlu0 %3486
      %v3488 = vsel %vm1394, %v3484, -inf
      %3489 = vmax.xlane.f32.xlu0 %v3488
      %v3490 = vpop.xlane.xlu0 %3489
      %v3491 = vsub.f32 %v3483, %v3487
      %v3492 = vsub.f32 %v3484, %v3490
      %v3493 = vmul.f32 %v3491, 1.442695
      %v3494 = vpow.pop %v3493
      %v3495 = vmul.f32 %v3492, 1.442695
      %v3496 = vpow.pop %v3495
      %v3497 = vsel %vm1394, %v3494, 0.0
      %3498 = vadd.xlane.f32.xlu0 %v3497
      %v3499 = vpop.xlane.xlu0 %3498
      %v3500 = vsel %vm1394, %v3496, 0.0
      %3501 = vadd.xlane.f32.xlu0 %v3500
      %v3502 = vpop.xlane.xlu0 %3501
      %v3503 = vrcp.pop %v3499
      %v3504 = vrcp.pop %v3502
      %v3505 = vmul.f32 %v3494, %v3503
      %v3506 = vmul.f32 %v3496, %v3504
      %v3507 = vpack.c.bf16 %v3506, %v3505
      %3508 = vrot.lane.b32.xlu0 %v3252, 40
      %v3509 = vpop.permute.xlu0 %3508
      %v3512 = vsel %vm1394, %v3507, 0
      %3514 = vmatpush.bf16.msra.mxu0 0
      %3515 = vmatpush.bf16.msra.mxu0 0
      %3516 = vmatpush.bf16.msra.mxu0 0
      %3517 = vmatpush.bf16.msra.mxu0 0
      %3518 = vmatpush.bf16.msra.mxu0 0
      %3519 = vmatpush.bf16.msra.mxu0 0
      %3520 = vmatpush.bf16.msra.mxu0 0
      %3521 = vmatpush.bf16.msra.mxu0 %v3509
      %3522 = vmatmul.bf16.gmra.mxu0 %v3512
      %v3523 = vpop.f32.mrf.mxu0
      %v3524 = vadd.f32 0.0, %v3523
      %v3525 = vpop.f32.mrf.mxu0
      %v3526 = vadd.f32 0.0, %v3525
      %3527 = vdwg.mxu0
      %3530 = vrot.lane.b32.xlu0 %v3386, 8
      %v3531 = vpop.permute.xlu0 %3530
      %3532 = vrot.lane.b32.xlu0 %v3388, 8
      %v3533 = vpop.permute.xlu0 %3532
      %3538 = vrot.lane.b32.xlu0 %v3455, 16
      %v3539 = vpop.permute.xlu0 %3538
      %3540 = vrot.lane.b32.xlu0 %v3457, 16
      %v3541 = vpop.permute.xlu0 %3540
      %3546 = vrot.lane.b32.xlu0 %v3524, 24
      %v3547 = vpop.permute.xlu0 %3546
      %3548 = vrot.lane.b32.xlu0 %v3526, 24
      %v3549 = vpop.permute.xlu0 %3548
      %v3552 = vsel %vm1371, %v3317, %v3531
      %v3553 = vsel %vm1371, %v3319, %v3533
      %v3554 = vsel %vm1394, %v3552, %v3539
      %v3555 = vsel %vm1394, %v3553, %v3541
      %v3556 = vsel %vm1673, %v3554, %v3547
      %v3557 = vsel %vm1673, %v3555, %v3549
      %s3558 = scalar_lea.vmem %s23, 96
      %v3559 = vld [vmem:[%s3558] sm:$0xff]
      %v3560 = vld [vmem:[%s3558 + $0x8] sm:$0xff]
      %v3561 = vld [vmem:[%s3558 + $0x10] sm:$0xff]
      %v3562 = vld [vmem:[%s3558 + $0x18] sm:$0xff]
      %v3563 = vpack.c.bf16 %v3557, %v3556
      %v3564 = vpack.c.bf16 %v3560, %v3559
      %v3565 = vpack.c.bf16 %v3562, %v3561
      %v3567 = vsel %vm1277, %v3563, 0
      %3569 = vmatpush.bf16.msra.mxu0 0
      %3570 = vmatpush.bf16.msra.mxu0 0
      %3571 = vmatpush.bf16.msra.mxu0 0
      %3572 = vmatpush.bf16.msra.mxu0 0
      %3573 = vmatpush.bf16.msra.mxu0 0
      %3574 = vmatpush.bf16.msra.mxu0 0
      %3575 = vmatpush.bf16.msra.mxu0 %v3565
      %3576 = vmatpush.bf16.msra.mxu0 %v3564
      %3577 = vmatmul.bf16.gmra.mxu0 %v3567
      %v3578 = vpop.f32.mrf.mxu0
      %v3579 = vadd.f32 0.0, %v3578
      %v3580 = vpop.f32.mrf.mxu0
      %v3581 = vadd.f32 0.0, %v3580
      %3582 = vdwg.mxu0
      %v3583 = vadd.f32 %v3162, %v3579
      %v3584 = vadd.f32 %v3163, %v3581
      %s3585 = scalar_lea.vmem %s25, 3
      %v3586 = vld [vmem:[%s3585] sm:$0x1]
      %v3588 = vperm.slane %v3586, 0
      %v3590 = vadd.f32 %v3583, %v3588
      %v3591 = vadd.f32 %v3584, %v3588
      %s3592 = scalar_lea.vmem %s27, 3
      %v3593 = vld [vmem:[%s3592] sm:$0x1]
      %s3594 = scalar_lea.vmem %s29, 3
      %v3595 = vld [vmem:[%s3594] sm:$0x1]
      %v3596 = vsel %vm1277, %v3590, 0.0
      %3597 = vadd.xlane.f32.xlu0 %v3596
      %v3598 = vpop.xlane.xlu0 %3597
      %v3599 = vsel %vm1277, %v3591, 0.0
      %3600 = vadd.xlane.f32.xlu0 %v3599
      %v3601 = vpop.xlane.xlu0 %3600
      %v3602 = vmul.f32 %v3598, %v1290
      %v3603 = vmul.f32 %v3601, %v1290
      %v3604 = vsub.f32 %v3590, %v3602
      %v3605 = vsub.f32 %v3591, %v3603
      %v3606 = vmul.f32 %v3604, %v3604
      %v3607 = vmul.f32 %v3605, %v3605
      %v3608 = vsel %vm1277, %v3606, 0.0
      %3609 = vadd.xlane.f32.xlu0 %v3608
      %v3610 = vpop.xlane.xlu0 %3609
      %v3611 = vsel %vm1277, %v3607, 0.0
      %3612 = vadd.xlane.f32.xlu0 %v3611
      %v3613 = vpop.xlane.xlu0 %3612
      %v3614 = vmul.f32 %v3610, %v1290
      %v3615 = vmul.f32 %v3613, %v1290
      %v3616 = vadd.f32 %v3614, 1e-05
      %v3617 = vadd.f32 %v3615, 1e-05
      %v3618 = vrsqrt.pop %v3616
      %v3619 = vmul.f32 %v3618, %v3616
      %v3620 = vmul.f32 %v3619, %v3618
      %v3621 = vmul.f32 0.5, %v3620
      %v3622 = vsub.f32 1.5, %v3621
      %v3623 = vmul.f32 %v3618, %v3622
      %vm3624 = vweird.f32 %v3616
      %vm3625 = vweird.f32 %v3618
      %vm3626 = vmor %vm3624, %vm3625
      %v3627 = vsel %vm3626, %v3618, %v3623
      %v3628 = vrsqrt.pop %v3617
      %v3629 = vmul.f32 %v3628, %v3617
      %v3630 = vmul.f32 %v3629, %v3628
      %v3631 = vmul.f32 0.5, %v3630
      %v3632 = vsub.f32 1.5, %v3631
      %v3633 = vmul.f32 %v3628, %v3632
      %vm3634 = vweird.f32 %v3617
      %vm3635 = vweird.f32 %v3628
      %vm3636 = vmor %vm3634, %vm3635
      %v3637 = vsel %vm3636, %v3628, %v3633
      %v3638 = vmul.f32 %v3604, %v3627
      %v3639 = vmul.f32 %v3605, %v3637
      %v3641 = vperm.slane %v3593, 0
      %v3643 = vmul.f32 %v3638, %v3641
      %v3644 = vmul.f32 %v3639, %v3641
      %v3646 = vperm.slane %v3595, 0
      %v3648 = vadd.f32 %v3643, %v3646
      %v3649 = vadd.f32 %v3644, %v3646
      %s3650 = scalar_lea.vmem %s31, 96
      %v3651 = vld [vmem:[%s3650] sm:$0xff]
      %v3652 = vld [vmem:[%s3650 + $0x8] sm:$0xff]
      %v3653 = vld [vmem:[%s3650 + $0x10] sm:$0xff]
      %v3654 = vld [vmem:[%s3650 + $0x18] sm:$0xff]
      %v3655 = vpack.c.bf16 %v3649, %v3648
      %v3656 = vpack.c.bf16 %v3652, %v3651
      %v3657 = vpack.c.bf16 %v3654, %v3653
      %s3658 = scalar_lea.vmem %s33, 3
      %v3659 = vld [vmem:[%s3658] sm:$0x1]
      %v3661 = vperm.slane %v3659, 0
      %v3664 = vsel %vm1277, %v3655, 0
      %3666 = vmatpush.bf16.msra.mxu0 0
      %3667 = vmatpush.bf16.msra.mxu0 0
      %3668 = vmatpush.bf16.msra.mxu0 0
      %3669 = vmatpush.bf16.msra.mxu0 0
      %3670 = vmatpush.bf16.msra.mxu0 0
      %3671 = vmatpush.bf16.msra.mxu0 0
      %3672 = vmatpush.bf16.msra.mxu0 %v3657
      %3673 = vmatpush.bf16.msra.mxu0 %v3656
      %3674 = vmatmul.bf16.gmra.mxu0 %v3664
      %v3675 = vpop.f32.mrf.mxu0
      %v3676 = vadd.f32 %v3661, %v3675
      %v3677 = vpop.f32.mrf.mxu0
      %v3678 = vadd.f32 %v3661, %v3677
      %3679 = vdwg.mxu0
      %v3680 = vmul.f32 %v3676, 0.5
      %v3681 = vmul.f32 %v3678, 0.5
      %v3682 = vmul.f32 %v3676, 0.044715
      %v3683 = vmul.f32 %v3678, 0.044715
      %v3684 = vmul.f32 %v3682, %v3676
      %v3685 = vmul.f32 %v3683, %v3678
      %v3686 = vmul.f32 %v3684, %v3676
      %v3687 = vmul.f32 %v3685, %v3678
      %v3688 = vadd.f32 %v3676, %v3686
      %v3689 = vadd.f32 %v3678, %v3687
      %v3690 = vmul.f32 %v3688, 0.7978846
      %v3691 = vmul.f32 %v3689, 0.7978846
      %v3692 = vtanh.pop %v3690
      %v3693 = vtanh.pop %v3691
      %v3694 = vadd.f32 %v3692, 1.0
      %v3695 = vadd.f32 %v3693, 1.0
      %v3696 = vmul.f32 %v3680, %v3694
      %v3697 = vmul.f32 %v3681, %v3695
      %s3698 = scalar_lea.vmem %s35, 384
      %v3699 = vld [vmem:[%s3698] sm:$0xff]
      %v3700 = vld [vmem:[%s3698 + $0x8] sm:$0xff]
      %v3701 = vld [vmem:[%s3698 + $0x10] sm:$0xff]
      %v3702 = vld [vmem:[%s3698 + $0x18] sm:$0xff]
      %v3703 = vld [vmem:[%s3698 + $0x20] sm:$0xff]
      %v3704 = vld [vmem:[%s3698 + $0x28] sm:$0xff]
      %v3705 = vld [vmem:[%s3698 + $0x30] sm:$0xff]
      %v3706 = vld [vmem:[%s3698 + $0x38] sm:$0xff]
      %v3707 = vld [vmem:[%s3698 + $0x40] sm:$0xff]
      %v3708 = vld [vmem:[%s3698 + $0x48] sm:$0xff]
      %v3709 = vld [vmem:[%s3698 + $0x50] sm:$0xff]
      %v3710 = vld [vmem:[%s3698 + $0x58] sm:$0xff]
      %v3711 = vld [vmem:[%s3698 + $0x60] sm:$0xff]
      %v3712 = vld [vmem:[%s3698 + $0x68] sm:$0xff]
      %v3713 = vld [vmem:[%s3698 + $0x70] sm:$0xff]
      %v3714 = vld [vmem:[%s3698 + $0x78] sm:$0xff]
      %v3715 = vpack.c.bf16 %v3697, %v3696
      %v3716 = vpack.c.bf16 %v3700, %v3699
      %v3717 = vpack.c.bf16 %v3702, %v3701
      %v3718 = vpack.c.bf16 %v3704, %v3703
      %v3719 = vpack.c.bf16 %v3706, %v3705
      %v3720 = vpack.c.bf16 %v3708, %v3707
      %v3721 = vpack.c.bf16 %v3710, %v3709
      %v3722 = vpack.c.bf16 %v3712, %v3711
      %v3723 = vpack.c.bf16 %v3714, %v3713
      %3724 = vmatpush.bf16.msra.mxu0 %v3723
      %3725 = vmatpush.bf16.msra.mxu0 %v3722
      %3726 = vmatpush.bf16.msra.mxu0 %v3721
      %3727 = vmatpush.bf16.msra.mxu0 %v3720
      %3728 = vmatpush.bf16.msra.mxu0 %v3719
      %3729 = vmatpush.bf16.msra.mxu0 %v3718
      %3730 = vmatpush.bf16.msra.mxu0 %v3717
      %3731 = vmatpush.bf16.msra.mxu0 %v3716
      %3732 = vmatmul.bf16.gmra.mxu0 %v3715
      %v3733 = vpop.f32.mrf.mxu0
      %v3734 = vadd.f32 0.0, %v3733
      %v3735 = vpop.f32.mrf.mxu0
      %3736 = vdwg.mxu0
      %v3737 = vadd.f32 %v3590, %v3734
      %s3738 = scalar_lea.vmem %s37, 3
      %v3739 = vld [vmem:[%s3738] sm:$0x1]
      %v3741 = vperm.slane %v3739, 0
      %v3743 = vadd.f32 %v3737, %v3741
      %v3744 = vld [vmem:[%s63] sm:$0x1]
      %v3745 = vld [vmem:[%s65] sm:$0x1]
      %v3746 = vsel %vm1277, %v3743, 0.0
      %3747 = vadd.xlane.f32.xlu0 %v3746
      %v3748 = vpop.xlane.xlu0 %3747
      %v3749 = vmul.f32 %v3748, %v1290
      %v3750 = vsub.f32 %v3743, %v3749
      %v3751 = vmul.f32 %v3750, %v3750
      %v3752 = vsel %vm1277, %v3751, 0.0
      %3753 = vadd.xlane.f32.xlu0 %v3752
      %v3754 = vpop.xlane.xlu0 %3753
      %v3755 = vmul.f32 %v3754, %v1290
      %v3756 = vadd.f32 %v3755, 1e-05
      %v3757 = vrsqrt.pop %v3756
      %v3758 = vmul.f32 %v3757, %v3756
      %v3759 = vmul.f32 %v3758, %v3757
      %v3760 = vmul.f32 0.5, %v3759
      %v3761 = vsub.f32 1.5, %v3760
      %v3762 = vmul.f32 %v3757, %v3761
      %vm3763 = vweird.f32 %v3756
      %vm3764 = vweird.f32 %v3757
      %vm3765 = vmor %vm3763, %vm3764
      %v3766 = vsel %vm3765, %v3757, %v3762
      %v3767 = vmul.f32 %v3750, %v3766
      %v3769 = vperm.slane %v3744, 0
      %v3771 = vmul.f32 %v3767, %v3769
      %v3773 = vperm.slane %v3745, 0
      %v3775 = vadd.f32 %v3771, %v3773
      %v3776 = vld [vmem:[%s67] sm:$0xff]
      %v3777 = vld [vmem:[%s67 + $0x8] sm:$0xff]
      %v3778 = vld [vmem:[%s67 + $0x10] sm:$0xff]
      %v3779 = vld [vmem:[%s67 + $0x18] sm:$0xff]
      %v3780 = vld [vmem:[%s67 + $0x20] sm:$0xff]
      %v3781 = vld [vmem:[%s67 + $0x28] sm:$0xff]
      %v3782 = vld [vmem:[%s67 + $0x30] sm:$0xff]
      %v3783 = vld [vmem:[%s67 + $0x38] sm:$0xff]
      %v3784 = vld [vmem:[%s67 + $0x40] sm:$0xff]
      %v3785 = vld [vmem:[%s67 + $0x48] sm:$0xff]
      %v3786 = vld [vmem:[%s67 + $0x50] sm:$0xff]
      %v3787 = vld [vmem:[%s67 + $0x58] sm:$0xff]
      %v3788 = vpack.c.bf16 %v3775, %v3775
      %v3789 = vpack.c.bf16 %v3779, %v3776
      %v3790 = vpack.c.bf16 %v3780, %v3777
      %v3791 = vpack.c.bf16 %v3781, %v3778
      %v3792 = vpack.c.bf16 %v3785, %v3782
      %v3793 = vpack.c.bf16 %v3786, %v3783
      %v3794 = vpack.c.bf16 %v3787, %v3784
      %v3795 = vld [vmem:[%s69] sm:$0x7]
      %v3797 = vperm.slane %v3795, 0
      %v3798 = vperm.slane %v3795, 1
      %v3799 = vperm.slane %v3795, 2
      %v3804 = vsel %vm1277, %v3788, 0
      %3806 = vmatpush.bf16.msra.mxu0 0
      %3807 = vmatpush.bf16.msra.mxu0 0
      %3808 = vmatpush.bf16.msra.mxu0 0
      %3809 = vmatpush.bf16.msra.mxu0 0
      %3810 = vmatpush.bf16.msra.mxu0 0
      %3811 = vmatpush.bf16.msra.mxu0 0
      %3812 = vmatpush.bf16.msra.mxu0 %v3792
      %3813 = vmatpush.bf16.msra.mxu0 %v3789
      %3814 = vmatmul.bf16.gmra.mxu0 %v3804
      %v3815 = vpop.f32.mrf.mxu0
      %v3816 = vadd.f32 %v3797, %v3815
      %v3817 = vpop.f32.mrf.mxu0
      %3818 = vdwg.mxu0
      %3819 = vmatpush.bf16.msra.mxu0 0
      %3820 = vmatpush.bf16.msra.mxu0 0
      %3821 = vmatpush.bf16.msra.mxu0 0
      %3822 = vmatpush.bf16.msra.mxu0 0
      %3823 = vmatpush.bf16.msra.mxu0 0
      %3824 = vmatpush.bf16.msra.mxu0 0
      %3825 = vmatpush.bf16.msra.mxu0 %v3793
      %3826 = vmatpush.bf16.msra.mxu0 %v3790
      %3827 = vmatmul.bf16.gmra.mxu0 %v3804
      %v3828 = vpop.f32.mrf.mxu0
      %v3829 = vadd.f32 %v3798, %v3828
      %v3830 = vpop.f32.mrf.mxu0
      %3831 = vdwg.mxu0
      %3832 = vmatpush.bf16.msra.mxu0 0
      %3833 = vmatpush.bf16.msra.mxu0 0
      %3834 = vmatpush.bf16.msra.mxu0 0
      %3835 = vmatpush.bf16.msra.mxu0 0
      %3836 = vmatpush.bf16.msra.mxu0 0
      %3837 = vmatpush.bf16.msra.mxu0 0
      %3838 = vmatpush.bf16.msra.mxu0 %v3794
      %3839 = vmatpush.bf16.msra.mxu0 %v3791
      %3840 = vmatmul.bf16.gmra.mxu0 %v3804
      %v3841 = vpop.f32.mrf.mxu0
      %v3842 = vadd.f32 %v3799, %v3841
      %v3843 = vpop.f32.mrf.mxu0
      %3844 = vdwg.mxu0
      %3845 = vst [vmem:[%s1139] sm:$0xff] %v3816
      %3846 = vst [vmem:[%s1139 + $0x8] sm:$0xff] %v3829
      %3847 = vst [vmem:[%s1139 + $0x10] sm:$0xff] %v3842
      %p3848 = scmp.lt.s32.totalorder %s87, 1
      %s3849 = scalar_select %p3848, %s87, 1
      %s3850 = smul.addr %s3849, 3
      %s3851 = smul.addr %s3850, 8
      %s3852 = scalar_lea.vmem %s71, %s3851
      %p3853 = scmp.lt.s32.totalorder %s87, 1
      %s3854 = scalar_select %p3853, %s87, 1
      %s3855 = smul.addr %s3854, 8
      %s3856 = scalar_lea.vmem %s73, %s3855
      %p3857 = scmp.lt.s32.totalorder %s87, 1
      %s3858 = scalar_select %p3857, %s87, 1
      %s3859 = smul.addr %s3858, 8
      %s3860 = scalar_lea.vmem %s75, %s3859
      // Predicated region
      $region161: #{titok_forward.1} parent=159 // pred_check
        %p3861 = pneg %p845
      $region162: #{titok_forward.1} parent=159 // pred_check_branch
        %3863 = sbr.rel (%p3861) target = $region164
      $region163: #{titok_forward.1} parent=159 // pred_region
        _
      $region164: #{titok_forward.1} parent=159 // pred_fallthru
        _
      // Predicated region
      $region165: #{titok_forward.1} parent=159 // pred_check
        %p3864 = pneg %p871
      $region166: #{titok_forward.1} parent=159 // pred_check_branch
        %3866 = sbr.rel (%p3864) target = $region168
      $region167: #{titok_forward.1} parent=159 // pred_region
        _
      $region168: #{titok_forward.1} parent=159 // pred_fallthru
        _
      // Predicated region
      $region169: #{titok_forward.1} parent=159 // pred_check
        %p3867 = pneg %p897
      $region170: #{titok_forward.1} parent=159 // pred_check_branch
        %3869 = sbr.rel (%p3867) target = $region172
      $region171: #{titok_forward.1} parent=159 // pred_region
        _
      $region172: #{titok_forward.1} parent=159 // pred_fallthru
        _
    $region160: #{titok_forward.1} parent=5 // pred_fallthru
      _
    %p3870 = scmp.le.s32.totalorder 2, %s82
    // Predicated region
    $region173: #{titok_forward.1} parent=5 // pred_check
      %p3871 = pneg %p3870
    $region174: #{titok_forward.1} parent=5 // pred_check_branch
      %3873 = sbr.rel (%p3871) target = $region176
    $region175: #{titok_forward.1} parent=5 // pred_region
      %s3874 = ssub.s32 %s82, 2
      // Predicated region
      $region177: #{titok_forward.1} parent=175 // pred_check
        %p3875 = pneg %p851
      $region178: #{titok_forward.1} parent=175 // pred_check_branch
        %3877 = sbr.rel (%p3875) target = $region180
      $region179: #{titok_forward.1} parent=175 // pred_region
        %p3878 = scmp.lt.s32.totalorder %s88, 1
        %s3879 = scalar_select %p3878, %s88, 1
        %s3880 = smul.addr %s3879, 3
        %s3881 = smul.addr %s3880, 8
        %s3882 = scalar_lea.vmem %s71, %s3881
      $region180: #{titok_forward.1} parent=175 // pred_fallthru
        _
      // Predicated region
      $region181: #{titok_forward.1} parent=175 // pred_check
        %p3883 = pneg %p877
      $region182: #{titok_forward.1} parent=175 // pred_check_branch
        %3885 = sbr.rel (%p3883) target = $region184
      $region183: #{titok_forward.1} parent=175 // pred_region
        %p3886 = scmp.lt.s32.totalorder %s88, 1
        %s3887 = scalar_select %p3886, %s88, 1
        %s3888 = smul.addr %s3887, 8
        %s3889 = scalar_lea.vmem %s73, %s3888
      $region184: #{titok_forward.1} parent=175 // pred_fallthru
        _
      // Predicated region
      $region185: #{titok_forward.1} parent=175 // pred_check
        %p3890 = pneg %p903
      $region186: #{titok_forward.1} parent=175 // pred_check_branch
        %3892 = sbr.rel (%p3890) target = $region188
      $region187: #{titok_forward.1} parent=175 // pred_region
        %p3893 = scmp.lt.s32.totalorder %s88, 1
        %s3894 = scalar_select %p3893, %s88, 1
        %s3895 = smul.addr %s3894, 8
        %s3896 = scalar_lea.vmem %s75, %s3895
      $region188: #{titok_forward.1} parent=175 // pred_fallthru
        _
    $region176: #{titok_forward.1} parent=5 // pred_fallthru
      _
  $region6: #{titok_forward.1} parent=0 // loop_footer
    %s86 = sadd.s32 1, %s82
  $region7: #{titok_forward.1} parent=0 // loop_footer_branch
    %81 = sbr.rel target = $region3
  $region8: #{titok_forward.1} parent=0 // loop_exit
    _

</llo_original>
